<compile_context>
chip_gen: v7x
topology: tpu7x:2x2x1
jax: 0.10.0
libtpu: 0.0.40
codegen_flags: <defaults>
</compile_context>

<pallas_src>
import jax
import jax.numpy as jnp
from jax.experimental import pallas as pl
from jax.experimental.pallas import tpu as pltpu

_MB = 1024 * 1024


def _round_up(x, m):
    return (x + m - 1) // m * m


# ---------------------------------------------------------------------------
# Generation-aware VMEM budgeting.
# ---------------------------------------------------------------------------
def _vmem_generation_cap():
    """Scoped-VMEM ceiling per chip generation, leaving headroom for compiler scratch."""
    phys = 128 * _MB
    try:
        info = pltpu.get_tpu_info()
        phys = int(getattr(info, "vmem_capacity_bytes", phys))
    except Exception:
        pass
    if phys <= 64 * _MB:        # v7x-class: 64 MiB per TensorCore -> keep ~12 MiB headroom
        return 52 * _MB
    return 100 * _MB            # v5e / v6e-class: 128 MiB physical VMEM


def _vmem_limit(need_bytes):
    cap = _vmem_generation_cap()
    return int(min(max(int(1.5 * need_bytes), 8 * _MB), cap))


# ---------------------------------------------------------------------------
# Kernels.
# ---------------------------------------------------------------------------
def _embed_onehot_kernel(ids_ref, table_ref, out_ref, acc_ref):
    """One grid step = TM tokens x one vocab chunk of TV rows.

    ids_ref:   (TM, 1)  int32  token ids for this token tile (pre-clamped to [0, V-1]).
    table_ref: (TV, Dp) f32    current vocab chunk of the padded table.
    out_ref:   (TM, Dp) f32    lane/sublane-dense output tile (written on last chunk).
    acc_ref:   (TM, Dp) f32    VMEM accumulator, revisited across the vocab axis.
    """
    k = pl.program_id(1)
    ids = ids_ref[...]                                        # (TM, 1)
    tm = ids.shape[0]
    tv = table_ref.shape[0]

    # One-hot for this chunk: id matches (chunk offset + local row index).
    row = jax.lax.broadcasted_iota(jnp.int32, (tm, tv), 1) + k * tv
    one_hot = (row == ids).astype(table_ref.dtype)            # (TM, TV)

    # HIGHEST precision: keep the f32 multi-pass MXU path so table values are not
    # silently rounded to bf16 (exact nn.Embedding semantics).
    partial = jnp.dot(one_hot, table_ref[...],
                      preferred_element_type=jnp.float32,
                      precision=jax.lax.Precision.HIGHEST)

    @pl.when(k == 0)
    def _():
        acc_ref[...] = partial

    @pl.when(k > 0)
    def _():
        acc_ref[...] += partial

    @pl.when(k == pl.num_programs(1) - 1)
    def _():
        out_ref[...] = acc_ref[...].astype(out_ref.dtype)


def _embed_gather_kernel(ids_smem_ref, row_ref, out_ref):
    """Pure row gather: the data-dependent BlockSpec already fetched table[ids[i]]."""
    del ids_smem_ref  # consumed by the index_maps (scalar prefetch), not the body
    out_ref[...] = row_ref[...]


# ---------------------------------------------------------------------------
# Module wrapper (forward only).
# ---------------------------------------------------------------------------
class WordEmbedding:
    """Pallas equivalent of the torch `word_embedding` module's forward pass."""

    _ONEHOT_MAX_VOCAB = 4096   # beyond this, O(N*V*D) matmul work loses to the gather path

    def __init__(self, embedding_table, *, path="auto", tm=None):
        embedding_table = jnp.asarray(embedding_table, dtype=jnp.float32)
        self.V, self.D = embedding_table.shape
        # Lane-dense embedding dim; 256-aligned when D is large (v6e/v7x MXU is 2x256^2),
        # 128-aligned otherwise to avoid doubling output traffic for small D.
        self.Dp = _round_up(self.D, 128) if self.D <= 128 else _round_up(self.D, 256)

        if path == "auto":
            path = "onehot" if self.V <= self._ONEHOT_MAX_VOCAB else "gather"
        self.path = path

        if path == "onehot":
            # Tokens per grid step: multiple of 256 -> full MXU passes on v6e/v7x
            # (also a multiple of 128 for the v5e 4x128^2 MXU).
            self.tm = max(256, _round_up(int(tm), 256)) if tm else 512
            # Vocab chunk size: 256-aligned, shrunk until the per-step footprint fits.
            cap = _vmem_generation_cap()
            tv = min(2048, _round_up(self.V, 256))
            while tv > 256 and self._onehot_vmem_need(self.tm, tv) > cap:
                tv //= 2
            self.tv = tv
            self.Vp = _round_up(self.V, self.tv)
            self.nv = self.Vp // self.tv
            # Pad the table ONCE here (hoisted out of the hot path).  Padded rows are
            # never selected because ids are clamped to [0, V-1].
            self.table_onehot = jnp.pad(
                embedding_table, ((0, self.Vp - self.V), (0, self.Dp - self.D)))
        else:
            # Gather path: pad only the embedding dim and add a unit axis so every
            # block's last two dims equal the array's last two dims (clean (8,128) rule).
            self.table_gather = jnp.pad(
                embedding_table, ((0, 0), (0, self.Dp - self.D))
            ).reshape(self.V, 1, self.Dp)

    # ---- VMEM budget (honest: lane-padded id blocks, chunked one-hot) ----
    def _onehot_vmem_need(self, tm, tv):
        nv = _round_up(self.V, tv) // tv
        table_bufs = 1 if nv == 1 else 2        # single-buffered when table is resident
        return (table_bufs * tv * self.Dp * 4   # table chunk buffer(s)
                + 2 * tm * self.Dp * 4          # double-buffered output tiles
                + 2 * tm * 128 * 4              # double-buffered (TM,1) id tiles, lane-padded
                + tm * self.Dp * 4              # accumulator scratch
                + tm * tv * 4)                  # one-hot intermediate

    # ---- forward ----
    def __call__(self, input_sentence):
        idx_shape = input_sentence.shape
        # NOTE: PyTorch nn.Embedding raises on out-of-range ids; here they are clamped.
        flat_ids = jnp.clip(jnp.reshape(input_sentence, (-1,)).astype(jnp.int32),
                            0, self.V - 1)
        if self.path == "onehot":
            out = self._forward_onehot(flat_ids)
        else:
            out = self._forward_gather(flat_ids)
        return out.reshape(*idx_shape, self.D)

    def _forward_onehot(self, flat_ids):
        N = flat_ids.shape[0]
        tm = self.tm if N >= self.tm else max(256, _round_up(max(N, 1), 256))
        Np = _round_up(max(N, 1), tm)
        nt = Np // tm
        ids2d = jnp.pad(flat_ids, (0, Np - N)).reshape(Np, 1)

        table_spec = pl.BlockSpec(
            (self.tv, self.Dp), lambda i, k: (k, 0),
            # Constant index_map when nv == 1 -> resident table, single buffer only.
            pipeline_mode=pl.Buffered(1) if self.nv == 1 else pl.Buffered(2))

        out = pl.pallas_call(
            _embed_onehot_kernel,
            out_shape=jax.ShapeDtypeStruct((Np, self.Dp), jnp.float32),
            grid_spec=pltpu.PrefetchScalarGridSpec(
                num_scalar_prefetch=0,
                grid=(nt, self.nv),                         # vocab (reduction) axis last
                in_specs=[
                    pl.BlockSpec((tm, 1), lambda i, k: (i, 0)),   # per-tile token ids
                    table_spec,                                    # vocab chunk
                ],
                out_specs=pl.BlockSpec((tm, self.Dp), lambda i, k: (i, 0)),
                scratch_shapes=[pltpu.VMEM((tm, self.Dp), jnp.float32)],
            ),
            compiler_params=pltpu.CompilerParams(
                dimension_semantics=("parallel", "arbitrary"),
                vmem_limit_bytes=_vmem_limit(self._onehot_vmem_need(tm, self.tv)),
            ),
        )(ids2d, self.table_onehot)
        return out[:N, :self.D]

    def _forward_gather(self, flat_ids):
        N = flat_ids.shape[0]
        # TODO(synk): for very large N, amortize the ~0.35us/step grid overhead by gathering
        # TM rows per step with manual make_async_copy DMAs from a memory_space=pl.ANY table.
        out = pl.pallas_call(
            _embed_gather_kernel,
            out_shape=jax.ShapeDtypeStruct((N, 1, self.Dp), jnp.float32),
            grid_spec=pltpu.PrefetchScalarGridSpec(
                num_scalar_prefetch=1,                       # flat ids land in SMEM
                grid=(N,),
                in_specs=[
                    # Data-dependent row fetch: table[ids[i]] for grid step i.
                    pl.BlockSpec((1, 1, self.Dp), lambda i, ids: (ids[i], 0, 0)),
                ],
                out_specs=pl.BlockSpec((1, 1, self.Dp), lambda i, ids: (i, 0, 0)),
            ),
            compiler_params=pltpu.CompilerParams(
                dimension_semantics=("arbitrary",),
                vmem_limit_bytes=_vmem_limit(8 * self.Dp * 4),
            ),
        )(flat_ids, self.table_gather)
        return out[:, 0, :self.D]


if __name__ == "__main__":
    # Small shapes consistent with the torch module.
    vocab_length = 50
    embedding_dim = 32
    batch, seq = 2, 8

    key = jax.random.PRNGKey(0)
    k_w, k_idx = jax.random.split(key)

    # nn.Embedding weight initialized uniform(-1, 1), deterministic here.
    embedding_table = jax.random.uniform(
        k_w, (vocab_length, embedding_dim), dtype=jnp.float32, minval=-1.0, maxval=1.0)
    input_sentence = jax.random.randint(
        k_idx, (batch, seq), minval=0, maxval=vocab_length, dtype=jnp.int32)

    ref = jnp.take(embedding_table, input_sentence, axis=0)

    # Path 1: auto -> VMEM-resident one-hot MXU contraction (toy vocab).
    emb = WordEmbedding(embedding_table)
    out = jax.block_until_ready(emb(input_sentence))
    assert out.shape == (batch, seq, embedding_dim)
    assert out.dtype == jnp.float32
    assert jnp.allclose(out, ref, atol=1e-6, rtol=1e-6), "one-hot path mismatch"

    # Path 2: scalar-prefetch row gather (the production-size-vocab path), verified too.
    emb_gather = WordEmbedding(embedding_table, path="gather")
    out_g = jax.block_until_ready(emb_gather(input_sentence))
    assert out_g.shape == (batch, seq, embedding_dim)
    assert out_g.dtype == jnp.float32
    assert jnp.allclose(out_g, ref, atol=1e-6, rtol=1e-6), "gather path mismatch"

    print("KERNEL_OK")
</pallas_src>

<mosaic_0001>
module attributes {stable_mosaic.version = 11 : i64} {
  func.func @_embed_onehot_kernel(%arg0: i32, %arg1: i32, %arg2: memref<256x1xi32, #tpu.memory_space<vmem>>, %arg3: memref<256x128xf32, #tpu.memory_space<vmem>>, %arg4: memref<256x128xf32, #tpu.memory_space<vmem>>, %arg5: memref<256x128xf32, #tpu.memory_space<vmem>>) attributes {dimension_semantics = [#tpu.dimension_semantics<parallel>, #tpu.dimension_semantics<arbitrary>], iteration_bounds = array<i64: 1, 1>, scalar_prefetch = 0 : i64, scratch_operands = 1 : i64, tpu.core_type = #tpu.core_type<tc>, window_params = [{transform_indices = @transform_0, window_bounds = array<i64: 256, 1>}, {pipeline_mode = #tpu.pipeline_mode<synchronous>, transform_indices = @transform_1, window_bounds = array<i64: 256, 128>}, {transform_indices = @transform_2, window_bounds = array<i64: 256, 128>}]} {
    %c0 = arith.constant 0 : index
    %c0_0 = arith.constant 0 : index
    %0 = vector.load %arg2[%c0, %c0_0] : memref<256x1xi32, #tpu.memory_space<vmem>>, vector<256x1xi32>
    %1 = tpu.iota {dimensions = array<i32: 1>} : vector<256x256xi32>
    %c256_i32 = arith.constant 256 : i32
    %2 = arith.muli %arg1, %c256_i32 : i32
    %3 = vector.broadcast %2 : i32 to vector<256x256xi32>
    %4 = arith.addi %1, %3 : vector<256x256xi32>
    %5 = vector.broadcast %0 : vector<256x1xi32> to vector<256x256xi32>
    %6 = arith.cmpi eq, %4, %5 : vector<256x256xi32>
    %7 = arith.extui %6 : vector<256x256xi1> to vector<256x256xi32>
    %8 = arith.sitofp %7 : vector<256x256xi32> to vector<256x256xf32>
    %c0_1 = arith.constant 0 : index
    %c0_2 = arith.constant 0 : index
    %9 = vector.load %arg3[%c0_1, %c0_2] : memref<256x128xf32, #tpu.memory_space<vmem>>, vector<256x128xf32>
    %cst = arith.constant dense<0.000000e+00> : vector<256x128xf32>
    %10 = tpu.matmul %8, %9, %cst {dimension_numbers = #tpu.dot_dimension_numbers<[1], [0], [0], [1], [0, 0, 1, 1], [], []>, precision = #tpu.contract_precision<fp32>} : vector<256x256xf32>, vector<256x128xf32>, vector<256x128xf32> -> vector<256x128xf32>
    %c0_i32 = arith.constant 0 : i32
    %11 = arith.cmpi eq, %arg1, %c0_i32 : i32
    %12 = arith.extui %11 : i1 to i32
    %c0_i32_3 = arith.constant 0 : i32
    %13 = arith.cmpi ne, %12, %c0_i32_3 : i32
    scf.if %13 {
      %c0_8 = arith.constant 0 : index
      %c0_9 = arith.constant 0 : index
      %20 = vector.load %arg5[%c0_8, %c0_9] : memref<256x128xf32, #tpu.memory_space<vmem>>, vector<256x128xf32>
      tpu.vector_store %arg5[%c0_8, %c0_9], %10 {strides = array<i32>} : memref<256x128xf32, #tpu.memory_space<vmem>>, vector<256x128xf32>,
    } else {
    }
    %c0_i32_4 = arith.constant 0 : i32
    %14 = arith.cmpi sgt, %arg1, %c0_i32_4 : i32
    %15 = arith.extui %14 : i1 to i32
    %c0_i32_5 = arith.constant 0 : i32
    %16 = arith.cmpi ne, %15, %c0_i32_5 : i32
    scf.if %16 {
      %c0_8 = arith.constant 0 : index
      %c0_9 = arith.constant 0 : index
      %20 = vector.load %arg5[%c0_8, %c0_9] : memref<256x128xf32, #tpu.memory_space<vmem>>, vector<256x128xf32>
      %21 = arith.addf %20, %10 : vector<256x128xf32>
      %c0_10 = arith.constant 0 : index
      %c0_11 = arith.constant 0 : index
      %22 = vector.load %arg5[%c0_10, %c0_11] : memref<256x128xf32, #tpu.memory_space<vmem>>, vector<256x128xf32>
      tpu.vector_store %arg5[%c0_10, %c0_11], %21 {strides = array<i32>} : memref<256x128xf32, #tpu.memory_space<vmem>>, vector<256x128xf32>,
    } else {
    }
    %c0_i32_6 = arith.constant 0 : i32
    %17 = arith.cmpi eq, %arg1, %c0_i32_6 : i32
    %18 = arith.extui %17 : i1 to i32
    %c0_i32_7 = arith.constant 0 : i32
    %19 = arith.cmpi ne, %18, %c0_i32_7 : i32
    scf.if %19 {
      %c0_8 = arith.constant 0 : index
      %c0_9 = arith.constant 0 : index
      %20 = vector.load %arg5[%c0_8, %c0_9] : memref<256x128xf32, #tpu.memory_space<vmem>>, vector<256x128xf32>
      %c0_10 = arith.constant 0 : index
      %c0_11 = arith.constant 0 : index
      %21 = vector.load %arg4[%c0_10, %c0_11] : memref<256x128xf32, #tpu.memory_space<vmem>>, vector<256x128xf32>
      tpu.vector_store %arg4[%c0_10, %c0_11], %20 {strides = array<i32>} : memref<256x128xf32, #tpu.memory_space<vmem>>, vector<256x128xf32>,
    } else {
    }
    return
  }
  func.func @transform_0(%arg0: i32, %arg1: i32) -> (i32, i32) {
    %c0_i32 = arith.constant 0 : i32
    %c0_i32_0 = arith.constant 0 : i32
    return %arg0, %c0_i32 : i32, i32
  }
  func.func @transform_1(%arg0: i32, %arg1: i32) -> (i32, i32) {
    %c0_i32 = arith.constant 0 : i32
    %c0_i32_0 = arith.constant 0 : i32
    return %arg1, %c0_i32 : i32, i32
  }
  func.func @transform_2(%arg0: i32, %arg1: i32) -> (i32, i32) {
    %c0_i32 = arith.constant 0 : i32
    %c0_i32_0 = arith.constant 0 : i32
    return %arg0, %c0_i32 : i32, i32
  }
}

</mosaic_0001>

<llo_original>
// kernel: tpu_custom_call.1
$region0: #{tpu_custom_call.1}
  #allocation0 [shape = 'u32[]', space=smem, size = 0x4, offset = 0x4, fixed_abs, tag = 'smem constant byte address 0x4 - core index']
  #allocation1 [shape = 'u32[144,128]{1,0:T(1,128)}', space=vmem, size = 0x12000, scoped, tag = 'internal scratch']
  #allocation2 [shape = 'f32[256,128]{1,0:T(8,128)}', space=vmem, size = 0x20000, scoped, tag = 'scratch operand']
  %s0 = inlined_call_operand.vmem [shape: s32[256,1], index: 0, kind: input, shape index: {}]
  %s1 = inlined_call_operand.vmem [shape: f32[256,128], index: 1, kind: input, shape index: {}]
  %s2 = inlined_call_operand.hbm [shape: f32[256,128], index: 2, kind: output, shape index: {}]
  %s3 = sld [smem:[#allocation0]]
  $region30: #{tpu_custom_call.1} parent=0
    _
  %s5 = ssub.s32 1, %s3
  %s6 = scalar_select 0, %s5, %s3
  $region1: #{tpu_custom_call.1} parent=0
    #allocation3 [shape = 'u8[131072]{0}', space=vmem, size = 0x20000, scoped, tag = 'output window, operand 0, single buffered']
    #allocation4 [shape = 's32[1]{0}', space=sflag, size = 0x4, scoped, tag = 'scoped memory for tpu_custom_call.1']
    %7 = vsyncpa [#allocation4], 0
    // Predicated region
    $region2: #{tpu_custom_call.1} parent=1 // pred_check
      _
    $region3: #{tpu_custom_call.1} parent=1 // pred_check_branch
      %9 = sbr.rel (0) target = $region5
    $region4: #{tpu_custom_call.1} parent=1 // pred_region
      _
    $region5: #{tpu_custom_call.1} parent=1 // pred_fallthru
      _
    // Predicated region
    $region6: #{tpu_custom_call.1} parent=1 // pred_check
      _
    $region7: #{tpu_custom_call.1} parent=1 // pred_check_branch
      %11 = sbr.rel (0) target = $region9
    $region8: #{tpu_custom_call.1} parent=1 // pred_region
      _
    $region9: #{tpu_custom_call.1} parent=1 // pred_fallthru
      _
    %v12 = vld [vmem:[%s0] sm:$0xff]
    %v13 = vld [vmem:[%s0 + $0x8] sm:$0xff]
    %v14 = vld [vmem:[%s0 + $0x10] sm:$0xff]
    %v15 = vld [vmem:[%s0 + $0x18] sm:$0xff]
    %v16 = vld [vmem:[%s0 + $0x20] sm:$0xff]
    %v17 = vld [vmem:[%s0 + $0x28] sm:$0xff]
    %v18 = vld [vmem:[%s0 + $0x30] sm:$0xff]
    %v19 = vld [vmem:[%s0 + $0x38] sm:$0xff]
    %v20 = vld [vmem:[%s0 + $0x40] sm:$0xff]
    %v21 = vld [vmem:[%s0 + $0x48] sm:$0xff]
    %v22 = vld [vmem:[%s0 + $0x50] sm:$0xff]
    %v23 = vld [vmem:[%s0 + $0x58] sm:$0xff]
    %v24 = vld [vmem:[%s0 + $0x60] sm:$0xff]
    %v25 = vld [vmem:[%s0 + $0x68] sm:$0xff]
    %v26 = vld [vmem:[%s0 + $0x70] sm:$0xff]
    %v27 = vld [vmem:[%s0 + $0x78] sm:$0xff]
    %v28 = vld [vmem:[%s0 + $0x80] sm:$0xff]
    %v29 = vld [vmem:[%s0 + $0x88] sm:$0xff]
    %v30 = vld [vmem:[%s0 + $0x90] sm:$0xff]
    %v31 = vld [vmem:[%s0 + $0x98] sm:$0xff]
    %v32 = vld [vmem:[%s0 + $0xa0] sm:$0xff]
    %v33 = vld [vmem:[%s0 + $0xa8] sm:$0xff]
    %v34 = vld [vmem:[%s0 + $0xb0] sm:$0xff]
    %v35 = vld [vmem:[%s0 + $0xb8] sm:$0xff]
    %v36 = vld [vmem:[%s0 + $0xc0] sm:$0xff]
    %v37 = vld [vmem:[%s0 + $0xc8] sm:$0xff]
    %v38 = vld [vmem:[%s0 + $0xd0] sm:$0xff]
    %v39 = vld [vmem:[%s0 + $0xd8] sm:$0xff]
    %v40 = vld [vmem:[%s0 + $0xe0] sm:$0xff]
    %v41 = vld [vmem:[%s0 + $0xe8] sm:$0xff]
    %v42 = vld [vmem:[%s0 + $0xf0] sm:$0xff]
    %v43 = vld [vmem:[%s0 + $0xf8] sm:$0xff]
    %v44 = vlaneseq
    %v45 = vand.u32 %v44, 127
    %v46 = vadd.s32 %v45, 128
    %s47 = smul.u32 0, 256
    %v48 = vstv %s47
    %v49 = vadd.s32 %v45, %v48
    %v50 = vadd.s32 %v46, %v48
    %51 = vset.pattern.permute.xlu0 0
    %52 = vperm.xlu0 %51, %v12
    %v53 = vpop.permute.xlu0 %52
    %54 = vset.pattern.permute.xlu0 0
    %55 = vperm.xlu0 %54, %v13
    %v56 = vpop.permute.xlu0 %55
    %57 = vset.pattern.permute.xlu0 0
    %58 = vperm.xlu0 %57, %v14
    %v59 = vpop.permute.xlu0 %58
    %60 = vset.pattern.permute.xlu0 0
    %61 = vperm.xlu0 %60, %v15
    %v62 = vpop.permute.xlu0 %61
    %63 = vset.pattern.permute.xlu0 0
    %64 = vperm.xlu0 %63, %v16
    %v65 = vpop.permute.xlu0 %64
    %66 = vset.pattern.permute.xlu0 0
    %67 = vperm.xlu0 %66, %v17
    %v68 = vpop.permute.xlu0 %67
    %69 = vset.pattern.permute.xlu0 0
    %70 = vperm.xlu0 %69, %v18
    %v71 = vpop.permute.xlu0 %70
    %72 = vset.pattern.permute.xlu0 0
    %73 = vperm.xlu0 %72, %v19
    %v74 = vpop.permute.xlu0 %73
    %75 = vset.pattern.permute.xlu0 0
    %76 = vperm.xlu0 %75, %v20
    %v77 = vpop.permute.xlu0 %76
    %78 = vset.pattern.permute.xlu0 0
    %79 = vperm.xlu0 %78, %v21
    %v80 = vpop.permute.xlu0 %79
    %81 = vset.pattern.permute.xlu0 0
    %82 = vperm.xlu0 %81, %v22
    %v83 = vpop.permute.xlu0 %82
    %84 = vset.pattern.permute.xlu0 0
    %85 = vperm.xlu0 %84, %v23
    %v86 = vpop.permute.xlu0 %85
    %87 = vset.pattern.permute.xlu0 0
    %88 = vperm.xlu0 %87, %v24
    %v89 = vpop.permute.xlu0 %88
    %90 = vset.pattern.permute.xlu0 0
    %91 = vperm.xlu0 %90, %v25
    %v92 = vpop.permute.xlu0 %91
    %93 = vset.pattern.permute.xlu0 0
    %94 = vperm.xlu0 %93, %v26
    %v95 = vpop.permute.xlu0 %94
    %96 = vset.pattern.permute.xlu0 0
    %97 = vperm.xlu0 %96, %v27
    %v98 = vpop.permute.xlu0 %97
    %99 = vset.pattern.permute.xlu0 0
    %100 = vperm.xlu0 %99, %v28
    %v101 = vpop.permute.xlu0 %100
    %102 = vset.pattern.permute.xlu0 0
    %103 = vperm.xlu0 %102, %v29
    %v104 = vpop.permute.xlu0 %103
    %105 = vset.pattern.permute.xlu0 0
    %106 = vperm.xlu0 %105, %v30
    %v107 = vpop.permute.xlu0 %106
    %108 = vset.pattern.permute.xlu0 0
    %109 = vperm.xlu0 %108, %v31
    %v110 = vpop.permute.xlu0 %109
    %111 = vset.pattern.permute.xlu0 0
    %112 = vperm.xlu0 %111, %v32
    %v113 = vpop.permute.xlu0 %112
    %114 = vset.pattern.permute.xlu0 0
    %115 = vperm.xlu0 %114, %v33
    %v116 = vpop.permute.xlu0 %115
    %117 = vset.pattern.permute.xlu0 0
    %118 = vperm.xlu0 %117, %v34
    %v119 = vpop.permute.xlu0 %118
    %120 = vset.pattern.permute.xlu0 0
    %121 = vperm.xlu0 %120, %v35
    %v122 = vpop.permute.xlu0 %121
    %123 = vset.pattern.permute.xlu0 0
    %124 = vperm.xlu0 %123, %v36
    %v125 = vpop.permute.xlu0 %124
    %126 = vset.pattern.permute.xlu0 0
    %127 = vperm.xlu0 %126, %v37
    %v128 = vpop.permute.xlu0 %127
    %129 = vset.pattern.permute.xlu0 0
    %130 = vperm.xlu0 %129, %v38
    %v131 = vpop.permute.xlu0 %130
    %132 = vset.pattern.permute.xlu0 0
    %133 = vperm.xlu0 %132, %v39
    %v134 = vpop.permute.xlu0 %133
    %135 = vset.pattern.permute.xlu0 0
    %136 = vperm.xlu0 %135, %v40
    %v137 = vpop.permute.xlu0 %136
    %138 = vset.pattern.permute.xlu0 0
    %139 = vperm.xlu0 %138, %v41
    %v140 = vpop.permute.xlu0 %139
    %141 = vset.pattern.permute.xlu0 0
    %142 = vperm.xlu0 %141, %v42
    %v143 = vpop.permute.xlu0 %142
    %144 = vset.pattern.permute.xlu0 0
    %145 = vperm.xlu0 %144, %v43
    %v146 = vpop.permute.xlu0 %145
    %vm147 = vcmp.eq.s32.totalorder %v49, %v53
    %vm148 = vcmp.eq.s32.totalorder %v50, %v53
    %vm149 = vcmp.eq.s32.totalorder %v49, %v56
    %vm150 = vcmp.eq.s32.totalorder %v50, %v56
    %vm151 = vcmp.eq.s32.totalorder %v49, %v59
    %vm152 = vcmp.eq.s32.totalorder %v50, %v59
    %vm153 = vcmp.eq.s32.totalorder %v49, %v62
    %vm154 = vcmp.eq.s32.totalorder %v50, %v62
    %vm155 = vcmp.eq.s32.totalorder %v49, %v65
    %vm156 = vcmp.eq.s32.totalorder %v50, %v65
    %vm157 = vcmp.eq.s32.totalorder %v49, %v68
    %vm158 = vcmp.eq.s32.totalorder %v50, %v68
    %vm159 = vcmp.eq.s32.totalorder %v49, %v71
    %vm160 = vcmp.eq.s32.totalorder %v50, %v71
    %vm161 = vcmp.eq.s32.totalorder %v49, %v74
    %vm162 = vcmp.eq.s32.totalorder %v50, %v74
    %vm163 = vcmp.eq.s32.totalorder %v49, %v77
    %vm164 = vcmp.eq.s32.totalorder %v50, %v77
    %vm165 = vcmp.eq.s32.totalorder %v49, %v80
    %vm166 = vcmp.eq.s32.totalorder %v50, %v80
    %vm167 = vcmp.eq.s32.totalorder %v49, %v83
    %vm168 = vcmp.eq.s32.totalorder %v50, %v83
    %vm169 = vcmp.eq.s32.totalorder %v49, %v86
    %vm170 = vcmp.eq.s32.totalorder %v50, %v86
    %vm171 = vcmp.eq.s32.totalorder %v49, %v89
    %vm172 = vcmp.eq.s32.totalorder %v50, %v89
    %vm173 = vcmp.eq.s32.totalorder %v49, %v92
    %vm174 = vcmp.eq.s32.totalorder %v50, %v92
    %vm175 = vcmp.eq.s32.totalorder %v49, %v95
    %vm176 = vcmp.eq.s32.totalorder %v50, %v95
    %vm177 = vcmp.eq.s32.totalorder %v49, %v98
    %vm178 = vcmp.eq.s32.totalorder %v50, %v98
    %vm179 = vcmp.eq.s32.totalorder %v49, %v101
    %vm180 = vcmp.eq.s32.totalorder %v50, %v101
    %vm181 = vcmp.eq.s32.totalorder %v49, %v104
    %vm182 = vcmp.eq.s32.totalorder %v50, %v104
    %vm183 = vcmp.eq.s32.totalorder %v49, %v107
    %vm184 = vcmp.eq.s32.totalorder %v50, %v107
    %vm185 = vcmp.eq.s32.totalorder %v49, %v110
    %vm186 = vcmp.eq.s32.totalorder %v50, %v110
    %vm187 = vcmp.eq.s32.totalorder %v49, %v113
    %vm188 = vcmp.eq.s32.totalorder %v50, %v113
    %vm189 = vcmp.eq.s32.totalorder %v49, %v116
    %vm190 = vcmp.eq.s32.totalorder %v50, %v116
    %vm191 = vcmp.eq.s32.totalorder %v49, %v119
    %vm192 = vcmp.eq.s32.totalorder %v50, %v119
    %vm193 = vcmp.eq.s32.totalorder %v49, %v122
    %vm194 = vcmp.eq.s32.totalorder %v50, %v122
    %vm195 = vcmp.eq.s32.totalorder %v49, %v125
    %vm196 = vcmp.eq.s32.totalorder %v50, %v125
    %vm197 = vcmp.eq.s32.totalorder %v49, %v128
    %vm198 = vcmp.eq.s32.totalorder %v50, %v128
    %vm199 = vcmp.eq.s32.totalorder %v49, %v131
    %vm200 = vcmp.eq.s32.totalorder %v50, %v131
    %vm201 = vcmp.eq.s32.totalorder %v49, %v134
    %vm202 = vcmp.eq.s32.totalorder %v50, %v134
    %vm203 = vcmp.eq.s32.totalorder %v49, %v137
    %vm204 = vcmp.eq.s32.totalorder %v50, %v137
    %vm205 = vcmp.eq.s32.totalorder %v49, %v140
    %vm206 = vcmp.eq.s32.totalorder %v50, %v140
    %vm207 = vcmp.eq.s32.totalorder %v49, %v143
    %vm208 = vcmp.eq.s32.totalorder %v50, %v143
    %vm209 = vcmp.eq.s32.totalorder %v49, %v146
    %vm210 = vcmp.eq.s32.totalorder %v50, %v146
    %v211 = vsel %vm147, 1, 0
    %v212 = vsel %vm148, 1, 0
    %v213 = vsel %vm149, 1, 0
    %v214 = vsel %vm150, 1, 0
    %v215 = vsel %vm151, 1, 0
    %v216 = vsel %vm152, 1, 0
    %v217 = vsel %vm153, 1, 0
    %v218 = vsel %vm154, 1, 0
    %v219 = vsel %vm155, 1, 0
    %v220 = vsel %vm156, 1, 0
    %v221 = vsel %vm157, 1, 0
    %v222 = vsel %vm158, 1, 0
    %v223 = vsel %vm159, 1, 0
    %v224 = vsel %vm160, 1, 0
    %v225 = vsel %vm161, 1, 0
    %v226 = vsel %vm162, 1, 0
    %v227 = vsel %vm163, 1, 0
    %v228 = vsel %vm164, 1, 0
    %v229 = vsel %vm165, 1, 0
    %v230 = vsel %vm166, 1, 0
    %v231 = vsel %vm167, 1, 0
    %v232 = vsel %vm168, 1, 0
    %v233 = vsel %vm169, 1, 0
    %v234 = vsel %vm170, 1, 0
    %v235 = vsel %vm171, 1, 0
    %v236 = vsel %vm172, 1, 0
    %v237 = vsel %vm173, 1, 0
    %v238 = vsel %vm174, 1, 0
    %v239 = vsel %vm175, 1, 0
    %v240 = vsel %vm176, 1, 0
    %v241 = vsel %vm177, 1, 0
    %v242 = vsel %vm178, 1, 0
    %v243 = vsel %vm179, 1, 0
    %v244 = vsel %vm180, 1, 0
    %v245 = vsel %vm181, 1, 0
    %v246 = vsel %vm182, 1, 0
    %v247 = vsel %vm183, 1, 0
    %v248 = vsel %vm184, 1, 0
    %v249 = vsel %vm185, 1, 0
    %v250 = vsel %vm186, 1, 0
    %v251 = vsel %vm187, 1, 0
    %v252 = vsel %vm188, 1, 0
    %v253 = vsel %vm189, 1, 0
    %v254 = vsel %vm190, 1, 0
    %v255 = vsel %vm191, 1, 0
    %v256 = vsel %vm192, 1, 0
    %v257 = vsel %vm193, 1, 0
    %v258 = vsel %vm194, 1, 0
    %v259 = vsel %vm195, 1, 0
    %v260 = vsel %vm196, 1, 0
    %v261 = vsel %vm197, 1, 0
    %v262 = vsel %vm198, 1, 0
    %v263 = vsel %vm199, 1, 0
    %v264 = vsel %vm200, 1, 0
    %v265 = vsel %vm201, 1, 0
    %v266 = vsel %vm202, 1, 0
    %v267 = vsel %vm203, 1, 0
    %v268 = vsel %vm204, 1, 0
    %v269 = vsel %vm205, 1, 0
    %v270 = vsel %vm206, 1, 0
    %v271 = vsel %vm207, 1, 0
    %v272 = vsel %vm208, 1, 0
    %v273 = vsel %vm209, 1, 0
    %v274 = vsel %vm210, 1, 0
    %v275 = vcvt.s32.f32 %v211
    %v276 = vcvt.s32.f32 %v212
    %v277 = vcvt.s32.f32 %v213
    %v278 = vcvt.s32.f32 %v214
    %v279 = vcvt.s32.f32 %v215
    %v280 = vcvt.s32.f32 %v216
    %v281 = vcvt.s32.f32 %v217
    %v282 = vcvt.s32.f32 %v218
    %v283 = vcvt.s32.f32 %v219
    %v284 = vcvt.s32.f32 %v220
    %v285 = vcvt.s32.f32 %v221
    %v286 = vcvt.s32.f32 %v222
    %v287 = vcvt.s32.f32 %v223
    %v288 = vcvt.s32.f32 %v224
    %v289 = vcvt.s32.f32 %v225
    %v290 = vcvt.s32.f32 %v226
    %v291 = vcvt.s32.f32 %v227
    %v292 = vcvt.s32.f32 %v228
    %v293 = vcvt.s32.f32 %v229
    %v294 = vcvt.s32.f32 %v230
    %v295 = vcvt.s32.f32 %v231
    %v296 = vcvt.s32.f32 %v232
    %v297 = vcvt.s32.f32 %v233
    %v298 = vcvt.s32.f32 %v234
    %v299 = vcvt.s32.f32 %v235
    %v300 = vcvt.s32.f32 %v236
    %v301 = vcvt.s32.f32 %v237
    %v302 = vcvt.s32.f32 %v238
    %v303 = vcvt.s32.f32 %v239
    %v304 = vcvt.s32.f32 %v240
    %v305 = vcvt.s32.f32 %v241
    %v306 = vcvt.s32.f32 %v242
    %v307 = vcvt.s32.f32 %v243
    %v308 = vcvt.s32.f32 %v244
    %v309 = vcvt.s32.f32 %v245
    %v310 = vcvt.s32.f32 %v246
    %v311 = vcvt.s32.f32 %v247
    %v312 = vcvt.s32.f32 %v248
    %v313 = vcvt.s32.f32 %v249
    %v314 = vcvt.s32.f32 %v250
    %v315 = vcvt.s32.f32 %v251
    %v316 = vcvt.s32.f32 %v252
    %v317 = vcvt.s32.f32 %v253
    %v318 = vcvt.s32.f32 %v254
    %v319 = vcvt.s32.f32 %v255
    %v320 = vcvt.s32.f32 %v256
    %v321 = vcvt.s32.f32 %v257
    %v322 = vcvt.s32.f32 %v258
    %v323 = vcvt.s32.f32 %v259
    %v324 = vcvt.s32.f32 %v260
    %v325 = vcvt.s32.f32 %v261
    %v326 = vcvt.s32.f32 %v262
    %v327 = vcvt.s32.f32 %v263
    %v328 = vcvt.s32.f32 %v264
    %v329 = vcvt.s32.f32 %v265
    %v330 = vcvt.s32.f32 %v266
    %v331 = vcvt.s32.f32 %v267
    %v332 = vcvt.s32.f32 %v268
    %v333 = vcvt.s32.f32 %v269
    %v334 = vcvt.s32.f32 %v270
    %v335 = vcvt.s32.f32 %v271
    %v336 = vcvt.s32.f32 %v272
    %v337 = vcvt.s32.f32 %v273
    %v338 = vcvt.s32.f32 %v274
    %v339 = vld [vmem:[%s1] sm:$0xff]
    %v340 = vld [vmem:[%s1 + $0x8] sm:$0xff]
    %v341 = vld [vmem:[%s1 + $0x10] sm:$0xff]
    %v342 = vld [vmem:[%s1 + $0x18] sm:$0xff]
    %v343 = vld [vmem:[%s1 + $0x20] sm:$0xff]
    %v344 = vld [vmem:[%s1 + $0x28] sm:$0xff]
    %v345 = vld [vmem:[%s1 + $0x30] sm:$0xff]
    %v346 = vld [vmem:[%s1 + $0x38] sm:$0xff]
    %v347 = vld [vmem:[%s1 + $0x40] sm:$0xff]
    %v348 = vld [vmem:[%s1 + $0x48] sm:$0xff]
    %v349 = vld [vmem:[%s1 + $0x50] sm:$0xff]
    %v350 = vld [vmem:[%s1 + $0x58] sm:$0xff]
    %v351 = vld [vmem:[%s1 + $0x60] sm:$0xff]
    %v352 = vld [vmem:[%s1 + $0x68] sm:$0xff]
    %v353 = vld [vmem:[%s1 + $0x70] sm:$0xff]
    %v354 = vld [vmem:[%s1 + $0x78] sm:$0xff]
    %v355 = vld [vmem:[%s1 + $0x80] sm:$0xff]
    %v356 = vld [vmem:[%s1 + $0x88] sm:$0xff]
    %v357 = vld [vmem:[%s1 + $0x90] sm:$0xff]
    %v358 = vld [vmem:[%s1 + $0x98] sm:$0xff]
    %v359 = vld [vmem:[%s1 + $0xa0] sm:$0xff]
    %v360 = vld [vmem:[%s1 + $0xa8] sm:$0xff]
    %v361 = vld [vmem:[%s1 + $0xb0] sm:$0xff]
    %v362 = vld [vmem:[%s1 + $0xb8] sm:$0xff]
    %v363 = vld [vmem:[%s1 + $0xc0] sm:$0xff]
    %v364 = vld [vmem:[%s1 + $0xc8] sm:$0xff]
    %v365 = vld [vmem:[%s1 + $0xd0] sm:$0xff]
    %v366 = vld [vmem:[%s1 + $0xd8] sm:$0xff]
    %v367 = vld [vmem:[%s1 + $0xe0] sm:$0xff]
    %v368 = vld [vmem:[%s1 + $0xe8] sm:$0xff]
    %v369 = vld [vmem:[%s1 + $0xf0] sm:$0xff]
    %v370 = vld [vmem:[%s1 + $0xf8] sm:$0xff]
    %371 = vmatprep.subr.mxu0 0.0
    %v372 = vand.u32 %v339, 4294901760
    %373 = vmatpush1.msra.mxu0 %v372
    %374 = vmatprep.subr.mxu0 0.0
    %v375 = vand.u32 %v340, 4294901760
    %376 = vmatpush1.msra.mxu0 %v375
    %377 = vmatprep.subr.mxu0 0.0
    %v378 = vand.u32 %v341, 4294901760
    %379 = vmatpush1.msra.mxu0 %v378
    %380 = vmatprep.subr.mxu0 0.0
    %v381 = vand.u32 %v342, 4294901760
    %382 = vmatpush1.msra.mxu0 %v381
    %383 = vmatprep.subr.mxu0 0.0
    %v384 = vand.u32 %v343, 4294901760
    %385 = vmatpush1.msra.mxu0 %v384
    %386 = vmatprep.subr.mxu0 0.0
    %v387 = vand.u32 %v344, 4294901760
    %388 = vmatpush1.msra.mxu0 %v387
    %389 = vmatprep.subr.mxu0 0.0
    %v390 = vand.u32 %v345, 4294901760
    %391 = vmatpush1.msra.mxu0 %v390
    %392 = vmatprep.subr.mxu0 0.0
    %v393 = vand.u32 %v346, 4294901760
    %394 = vmatpush1.msra.mxu0 %v393
    %395 = vmatprep.subr.mxu0 0.0
    %v396 = vand.u32 %v347, 4294901760
    %397 = vmatpush1.msra.mxu0 %v396
    %398 = vmatprep.subr.mxu0 0.0
    %v399 = vand.u32 %v348, 4294901760
    %400 = vmatpush1.msra.mxu0 %v399
    %401 = vmatprep.subr.mxu0 0.0
    %v402 = vand.u32 %v349, 4294901760
    %403 = vmatpush1.msra.mxu0 %v402
    %404 = vmatprep.subr.mxu0 0.0
    %v405 = vand.u32 %v350, 4294901760
    %406 = vmatpush1.msra.mxu0 %v405
    %407 = vmatprep.subr.mxu0 0.0
    %v408 = vand.u32 %v351, 4294901760
    %409 = vmatpush1.msra.mxu0 %v408
    %410 = vmatprep.subr.mxu0 0.0
    %v411 = vand.u32 %v352, 4294901760
    %412 = vmatpush1.msra.mxu0 %v411
    %413 = vmatprep.subr.mxu0 0.0
    %v414 = vand.u32 %v353, 4294901760
    %415 = vmatpush1.msra.mxu0 %v414
    %416 = vmatprep.subr.mxu0 0.0
    %v417 = vand.u32 %v354, 4294901760
    %418 = vmatpush1.msra.mxu0 %v417
    %419 = vmatprep.subr.mxu0 0.0
    %v420 = vand.u32 %v355, 4294901760
    %421 = vmatpush1.msra.mxu0 %v420
    %422 = vmatprep.subr.mxu0 0.0
    %v423 = vand.u32 %v356, 4294901760
    %424 = vmatpush1.msra.mxu0 %v423
    %425 = vmatprep.subr.mxu0 0.0
    %v426 = vand.u32 %v357, 4294901760
    %427 = vmatpush1.msra.mxu0 %v426
    %428 = vmatprep.subr.mxu0 0.0
    %v429 = vand.u32 %v358, 4294901760
    %430 = vmatpush1.msra.mxu0 %v429
    %431 = vmatprep.subr.mxu0 0.0
    %v432 = vand.u32 %v359, 4294901760
    %433 = vmatpush1.msra.mxu0 %v432
    %434 = vmatprep.subr.mxu0 0.0
    %v435 = vand.u32 %v360, 4294901760
    %436 = vmatpush1.msra.mxu0 %v435
    %437 = vmatprep.subr.mxu0 0.0
    %v438 = vand.u32 %v361, 4294901760
    %439 = vmatpush1.msra.mxu0 %v438
    %440 = vmatprep.subr.mxu0 0.0
    %v441 = vand.u32 %v362, 4294901760
    %442 = vmatpush1.msra.mxu0 %v441
    %443 = vmatprep.subr.mxu0 0.0
    %v444 = vand.u32 %v363, 4294901760
    %445 = vmatpush1.msra.mxu0 %v444
    %446 = vmatprep.subr.mxu0 0.0
    %v447 = vand.u32 %v364, 4294901760
    %448 = vmatpush1.msra.mxu0 %v447
    %449 = vmatprep.subr.mxu0 0.0
    %v450 = vand.u32 %v365, 4294901760
    %451 = vmatpush1.msra.mxu0 %v450
    %452 = vmatprep.subr.mxu0 0.0
    %v453 = vand.u32 %v366, 4294901760
    %454 = vmatpush1.msra.mxu0 %v453
    %455 = vmatprep.subr.mxu0 0.0
    %v456 = vand.u32 %v367, 4294901760
    %457 = vmatpush1.msra.mxu0 %v456
    %458 = vmatprep.subr.mxu0 0.0
    %v459 = vand.u32 %v368, 4294901760
    %460 = vmatpush1.msra.mxu0 %v459
    %461 = vmatprep.subr.mxu0 0.0
    %v462 = vand.u32 %v369, 4294901760
    %463 = vmatpush1.msra.mxu0 %v462
    %464 = vmatprep.subr.mxu0 0.0
    %v465 = vand.u32 %v370, 4294901760
    %466 = vmatpush1.msra.mxu0 %v465
    %v467 = vand.u32 %v276, 4294901760
    %v468 = vsub.f32 %v276, %v467
    %v469 = vand.u32 %v468, 4294901760
    %v470 = vsub.f32 %v468, %v469
    %v471 = vand.u32 %v470, 4294901760
    %472 = vmatprep.mubr.f32.mxu0 %v471
    %v473 = vand.u32 %v275, 4294901760
    %v474 = vsub.f32 %v275, %v473
    %v475 = vand.u32 %v474, 4294901760
    %v476 = vsub.f32 %v474, %v475
    %v477 = vand.u32 %v476, 4294901760
    %478 = vmatmul.mubr.f32.gmra.mrb[0].mxu0 %v477
    %v479 = vpop.f32.mrb[0].mxu0
    %v480 = vadd.f32 0.0, %v479
    %v481 = vpop.f32.mrb[0].mxu0
    %v482 = vand.u32 %v278, 4294901760
    %v483 = vsub.f32 %v278, %v482
    %v484 = vand.u32 %v483, 4294901760
    %v485 = vsub.f32 %v483, %v484
    %v486 = vand.u32 %v485, 4294901760
    %487 = vmatprep.mubr.f32.mxu0 %v486
    %v488 = vand.u32 %v277, 4294901760
    %v489 = vsub.f32 %v277, %v488
    %v490 = vand.u32 %v489, 4294901760
    %v491 = vsub.f32 %v489, %v490
    %v492 = vand.u32 %v491, 4294901760
    %493 = vmatmul.mubr.f32.gmra.mrb[0].mxu0 %v492
    %v494 = vpop.f32.mrb[0].mxu0
    %v495 = vadd.f32 0.0, %v494
    %v496 = vpop.f32.mrb[0].mxu0
    %v497 = vand.u32 %v280, 4294901760
    %v498 = vsub.f32 %v280, %v497
    %v499 = vand.u32 %v498, 4294901760
    %v500 = vsub.f32 %v498, %v499
    %v501 = vand.u32 %v500, 4294901760
    %502 = vmatprep.mubr.f32.mxu0 %v501
    %v503 = vand.u32 %v279, 4294901760
    %v504 = vsub.f32 %v279, %v503
    %v505 = vand.u32 %v504, 4294901760
    %v506 = vsub.f32 %v504, %v505
    %v507 = vand.u32 %v506, 4294901760
    %508 = vmatmul.mubr.f32.gmra.mrb[0].mxu0 %v507
    %v509 = vpop.f32.mrb[0].mxu0
    %v510 = vadd.f32 0.0, %v509
    %v511 = vpop.f32.mrb[0].mxu0
    %v512 = vand.u32 %v282, 4294901760
    %v513 = vsub.f32 %v282, %v512
    %v514 = vand.u32 %v513, 4294901760
    %v515 = vsub.f32 %v513, %v514
    %v516 = vand.u32 %v515, 4294901760
    %517 = vmatprep.mubr.f32.mxu0 %v516
    %v518 = vand.u32 %v281, 4294901760
    %v519 = vsub.f32 %v281, %v518
    %v520 = vand.u32 %v519, 4294901760
    %v521 = vsub.f32 %v519, %v520
    %v522 = vand.u32 %v521, 4294901760
    %523 = vmatmul.mubr.f32.gmra.mrb[0].mxu0 %v522
    %v524 = vpop.f32.mrb[0].mxu0
    %v525 = vadd.f32 0.0, %v524
    %v526 = vpop.f32.mrb[0].mxu0
    %v527 = vand.u32 %v284, 4294901760
    %v528 = vsub.f32 %v284, %v527
    %v529 = vand.u32 %v528, 4294901760
    %v530 = vsub.f32 %v528, %v529
    %v531 = vand.u32 %v530, 4294901760
    %532 = vmatprep.mubr.f32.mxu0 %v531
    %v533 = vand.u32 %v283, 4294901760
    %v534 = vsub.f32 %v283, %v533
    %v535 = vand.u32 %v534, 4294901760
    %v536 = vsub.f32 %v534, %v535
    %v537 = vand.u32 %v536, 4294901760
    %538 = vmatmul.mubr.f32.gmra.mrb[0].mxu0 %v537
    %v539 = vpop.f32.mrb[0].mxu0
    %v540 = vadd.f32 0.0, %v539
    %v541 = vpop.f32.mrb[0].mxu0
    %v542 = vand.u32 %v286, 4294901760
    %v543 = vsub.f32 %v286, %v542
    %v544 = vand.u32 %v543, 4294901760
    %v545 = vsub.f32 %v543, %v544
    %v546 = vand.u32 %v545, 4294901760
    %547 = vmatprep.mubr.f32.mxu0 %v546
    %v548 = vand.u32 %v285, 4294901760
    %v549 = vsub.f32 %v285, %v548
    %v550 = vand.u32 %v549, 4294901760
    %v551 = vsub.f32 %v549, %v550
    %v552 = vand.u32 %v551, 4294901760
    %553 = vmatmul.mubr.f32.gmra.mrb[0].mxu0 %v552
    %v554 = vpop.f32.mrb[0].mxu0
    %v555 = vadd.f32 0.0, %v554
    %v556 = vpop.f32.mrb[0].mxu0
    %v557 = vand.u32 %v288, 4294901760
    %v558 = vsub.f32 %v288, %v557
    %v559 = vand.u32 %v558, 4294901760
    %v560 = vsub.f32 %v558, %v559
    %v561 = vand.u32 %v560, 4294901760
    %562 = vmatprep.mubr.f32.mxu0 %v561
    %v563 = vand.u32 %v287, 4294901760
    %v564 = vsub.f32 %v287, %v563
    %v565 = vand.u32 %v564, 4294901760
    %v566 = vsub.f32 %v564, %v565
    %v567 = vand.u32 %v566, 4294901760
    %568 = vmatmul.mubr.f32.gmra.mrb[0].mxu0 %v567
    %v569 = vpop.f32.mrb[0].mxu0
    %v570 = vadd.f32 0.0, %v569
    %v571 = vpop.f32.mrb[0].mxu0
    %v572 = vand.u32 %v290, 4294901760
    %v573 = vsub.f32 %v290, %v572
    %v574 = vand.u32 %v573, 4294901760
    %v575 = vsub.f32 %v573, %v574
    %v576 = vand.u32 %v575, 4294901760
    %577 = vmatprep.mubr.f32.mxu0 %v576
    %v578 = vand.u32 %v289, 4294901760
    %v579 = vsub.f32 %v289, %v578
    %v580 = vand.u32 %v579, 4294901760
    %v581 = vsub.f32 %v579, %v580
    %v582 = vand.u32 %v581, 4294901760
    %583 = vmatmul.mubr.f32.gmra.mrb[0].mxu0 %v582
    %v584 = vpop.f32.mrb[0].mxu0
    %v585 = vadd.f32 0.0, %v584
    %v586 = vpop.f32.mrb[0].mxu0
    %v587 = vand.u32 %v292, 4294901760
    %v588 = vsub.f32 %v292, %v587
    %v589 = vand.u32 %v588, 4294901760
    %v590 = vsub.f32 %v588, %v589
    %v591 = vand.u32 %v590, 4294901760
    %592 = vmatprep.mubr.f32.mxu0 %v591
    %v593 = vand.u32 %v291, 4294901760
    %v594 = vsub.f32 %v291, %v593
    %v595 = vand.u32 %v594, 4294901760
    %v596 = vsub.f32 %v594, %v595
    %v597 = vand.u32 %v596, 4294901760
    %598 = vmatmul.mubr.f32.gmra.mrb[0].mxu0 %v597
    %v599 = vpop.f32.mrb[0].mxu0
    %v600 = vadd.f32 0.0, %v599
    %v601 = vpop.f32.mrb[0].mxu0
    %v602 = vand.u32 %v294, 4294901760
    %v603 = vsub.f32 %v294, %v602
    %v604 = vand.u32 %v603, 4294901760
    %v605 = vsub.f32 %v603, %v604
    %v606 = vand.u32 %v605, 4294901760
    %607 = vmatprep.mubr.f32.mxu0 %v606
    %v608 = vand.u32 %v293, 4294901760
    %v609 = vsub.f32 %v293, %v608
    %v610 = vand.u32 %v609, 4294901760
    %v611 = vsub.f32 %v609, %v610
    %v612 = vand.u32 %v611, 4294901760
    %613 = vmatmul.mubr.f32.gmra.mrb[0].mxu0 %v612
    %v614 = vpop.f32.mrb[0].mxu0
    %v615 = vadd.f32 0.0, %v614
    %v616 = vpop.f32.mrb[0].mxu0
    %v617 = vand.u32 %v296, 4294901760
    %v618 = vsub.f32 %v296, %v617
    %v619 = vand.u32 %v618, 4294901760
    %v620 = vsub.f32 %v618, %v619
    %v621 = vand.u32 %v620, 4294901760
    %622 = vmatprep.mubr.f32.mxu0 %v621
    %v623 = vand.u32 %v295, 4294901760
    %v624 = vsub.f32 %v295, %v623
    %v625 = vand.u32 %v624, 4294901760
    %v626 = vsub.f32 %v624, %v625
    %v627 = vand.u32 %v626, 4294901760
    %628 = vmatmul.mubr.f32.gmra.mrb[0].mxu0 %v627
    %v629 = vpop.f32.mrb[0].mxu0
    %v630 = vadd.f32 0.0, %v629
    %v631 = vpop.f32.mrb[0].mxu0
    %v632 = vand.u32 %v298, 4294901760
    %v633 = vsub.f32 %v298, %v632
    %v634 = vand.u32 %v633, 4294901760
    %v635 = vsub.f32 %v633, %v634
    %v636 = vand.u32 %v635, 4294901760
    %637 = vmatprep.mubr.f32.mxu0 %v636
    %v638 = vand.u32 %v297, 4294901760
    %v639 = vsub.f32 %v297, %v638
    %v640 = vand.u32 %v639, 4294901760
    %v641 = vsub.f32 %v639, %v640
    %v642 = vand.u32 %v641, 4294901760
    %643 = vmatmul.mubr.f32.gmra.mrb[0].mxu0 %v642
    %v644 = vpop.f32.mrb[0].mxu0
    %v645 = vadd.f32 0.0, %v644
    %v646 = vpop.f32.mrb[0].mxu0
    %v647 = vand.u32 %v300, 4294901760
    %v648 = vsub.f32 %v300, %v647
    %v649 = vand.u32 %v648, 4294901760
    %v650 = vsub.f32 %v648, %v649
    %v651 = vand.u32 %v650, 4294901760
    %652 = vmatprep.mubr.f32.mxu0 %v651
    %v653 = vand.u32 %v299, 4294901760
    %v654 = vsub.f32 %v299, %v653
    %v655 = vand.u32 %v654, 4294901760
    %v656 = vsub.f32 %v654, %v655
    %v657 = vand.u32 %v656, 4294901760
    %658 = vmatmul.mubr.f32.gmra.mrb[0].mxu0 %v657
    %v659 = vpop.f32.mrb[0].mxu0
    %v660 = vadd.f32 0.0, %v659
    %v661 = vpop.f32.mrb[0].mxu0
    %v662 = vand.u32 %v302, 4294901760
    %v663 = vsub.f32 %v302, %v662
    %v664 = vand.u32 %v663, 4294901760
    %v665 = vsub.f32 %v663, %v664
    %v666 = vand.u32 %v665, 4294901760
    %667 = vmatprep.mubr.f32.mxu0 %v666
    %v668 = vand.u32 %v301, 4294901760
    %v669 = vsub.f32 %v301, %v668
    %v670 = vand.u32 %v669, 4294901760
    %v671 = vsub.f32 %v669, %v670
    %v672 = vand.u32 %v671, 4294901760
    %673 = vmatmul.mubr.f32.gmra.mrb[0].mxu0 %v672
    %v674 = vpop.f32.mrb[0].mxu0
    %v675 = vadd.f32 0.0, %v674
    %v676 = vpop.f32.mrb[0].mxu0
    %v677 = vand.u32 %v304, 4294901760
    %v678 = vsub.f32 %v304, %v677
    %v679 = vand.u32 %v678, 4294901760
    %v680 = vsub.f32 %v678, %v679
    %v681 = vand.u32 %v680, 4294901760
    %682 = vmatprep.mubr.f32.mxu0 %v681
    %v683 = vand.u32 %v303, 4294901760
    %v684 = vsub.f32 %v303, %v683
    %v685 = vand.u32 %v684, 4294901760
    %v686 = vsub.f32 %v684, %v685
    %v687 = vand.u32 %v686, 4294901760
    %688 = vmatmul.mubr.f32.gmra.mrb[0].mxu0 %v687
    %v689 = vpop.f32.mrb[0].mxu0
    %v690 = vadd.f32 0.0, %v689
    %v691 = vpop.f32.mrb[0].mxu0
    %v692 = vand.u32 %v306, 4294901760
    %v693 = vsub.f32 %v306, %v692
    %v694 = vand.u32 %v693, 4294901760
    %v695 = vsub.f32 %v693, %v694
    %v696 = vand.u32 %v695, 4294901760
    %697 = vmatprep.mubr.f32.mxu0 %v696
    %v698 = vand.u32 %v305, 4294901760
    %v699 = vsub.f32 %v305, %v698
    %v700 = vand.u32 %v699, 4294901760
    %v701 = vsub.f32 %v699, %v700
    %v702 = vand.u32 %v701, 4294901760
    %703 = vmatmul.mubr.f32.gmra.mrb[0].mxu0 %v702
    %v704 = vpop.f32.mrb[0].mxu0
    %v705 = vadd.f32 0.0, %v704
    %v706 = vpop.f32.mrb[0].mxu0
    %v707 = vand.u32 %v308, 4294901760
    %v708 = vsub.f32 %v308, %v707
    %v709 = vand.u32 %v708, 4294901760
    %v710 = vsub.f32 %v708, %v709
    %v711 = vand.u32 %v710, 4294901760
    %712 = vmatprep.mubr.f32.mxu0 %v711
    %v713 = vand.u32 %v307, 4294901760
    %v714 = vsub.f32 %v307, %v713
    %v715 = vand.u32 %v714, 4294901760
    %v716 = vsub.f32 %v714, %v715
    %v717 = vand.u32 %v716, 4294901760
    %718 = vmatmul.mubr.f32.gmra.mrb[0].mxu0 %v717
    %v719 = vpop.f32.mrb[0].mxu0
    %v720 = vadd.f32 0.0, %v719
    %v721 = vpop.f32.mrb[0].mxu0
    %v722 = vand.u32 %v310, 4294901760
    %v723 = vsub.f32 %v310, %v722
    %v724 = vand.u32 %v723, 4294901760
    %v725 = vsub.f32 %v723, %v724
    %v726 = vand.u32 %v725, 4294901760
    %727 = vmatprep.mubr.f32.mxu0 %v726
    %v728 = vand.u32 %v309, 4294901760
    %v729 = vsub.f32 %v309, %v728
    %v730 = vand.u32 %v729, 4294901760
    %v731 = vsub.f32 %v729, %v730
    %v732 = vand.u32 %v731, 4294901760
    %733 = vmatmul.mubr.f32.gmra.mrb[0].mxu0 %v732
    %v734 = vpop.f32.mrb[0].mxu0
    %v735 = vadd.f32 0.0, %v734
    %v736 = vpop.f32.mrb[0].mxu0
    %v737 = vand.u32 %v312, 4294901760
    %v738 = vsub.f32 %v312, %v737
    %v739 = vand.u32 %v738, 4294901760
    %v740 = vsub.f32 %v738, %v739
    %v741 = vand.u32 %v740, 4294901760
    %742 = vmatprep.mubr.f32.mxu0 %v741
    %v743 = vand.u32 %v311, 4294901760
    %v744 = vsub.f32 %v311, %v743
    %v745 = vand.u32 %v744, 4294901760
    %v746 = vsub.f32 %v744, %v745
    %v747 = vand.u32 %v746, 4294901760
    %748 = vmatmul.mubr.f32.gmra.mrb[0].mxu0 %v747
    %v749 = vpop.f32.mrb[0].mxu0
    %v750 = vadd.f32 0.0, %v749
    %v751 = vpop.f32.mrb[0].mxu0
    %v752 = vand.u32 %v314, 4294901760
    %v753 = vsub.f32 %v314, %v752
    %v754 = vand.u32 %v753, 4294901760
    %v755 = vsub.f32 %v753, %v754
    %v756 = vand.u32 %v755, 4294901760
    %757 = vmatprep.mubr.f32.mxu0 %v756
    %v758 = vand.u32 %v313, 4294901760
    %v759 = vsub.f32 %v313, %v758
    %v760 = vand.u32 %v759, 4294901760
    %v761 = vsub.f32 %v759, %v760
    %v762 = vand.u32 %v761, 4294901760
    %763 = vmatmul.mubr.f32.gmra.mrb[0].mxu0 %v762
    %v764 = vpop.f32.mrb[0].mxu0
    %v765 = vadd.f32 0.0, %v764
    %v766 = vpop.f32.mrb[0].mxu0
    %v767 = vand.u32 %v316, 4294901760
    %v768 = vsub.f32 %v316, %v767
    %v769 = vand.u32 %v768, 4294901760
    %v770 = vsub.f32 %v768, %v769
    %v771 = vand.u32 %v770, 4294901760
    %772 = vmatprep.mubr.f32.mxu0 %v771
    %v773 = vand.u32 %v315, 4294901760
    %v774 = vsub.f32 %v315, %v773
    %v775 = vand.u32 %v774, 4294901760
    %v776 = vsub.f32 %v774, %v775
    %v777 = vand.u32 %v776, 4294901760
    %778 = vmatmul.mubr.f32.gmra.mrb[0].mxu0 %v777
    %v779 = vpop.f32.mrb[0].mxu0
    %v780 = vadd.f32 0.0, %v779
    %v781 = vpop.f32.mrb[0].mxu0
    %v782 = vand.u32 %v318, 4294901760
    %v783 = vsub.f32 %v318, %v782
    %v784 = vand.u32 %v783, 4294901760
    %v785 = vsub.f32 %v783, %v784
    %v786 = vand.u32 %v785, 4294901760
    %787 = vmatprep.mubr.f32.mxu0 %v786
    %v788 = vand.u32 %v317, 4294901760
    %v789 = vsub.f32 %v317, %v788
    %v790 = vand.u32 %v789, 4294901760
    %v791 = vsub.f32 %v789, %v790
    %v792 = vand.u32 %v791, 4294901760
    %793 = vmatmul.mubr.f32.gmra.mrb[0].mxu0 %v792
    %v794 = vpop.f32.mrb[0].mxu0
    %v795 = vadd.f32 0.0, %v794
    %v796 = vpop.f32.mrb[0].mxu0
    %v797 = vand.u32 %v320, 4294901760
    %v798 = vsub.f32 %v320, %v797
    %v799 = vand.u32 %v798, 4294901760
    %v800 = vsub.f32 %v798, %v799
    %v801 = vand.u32 %v800, 4294901760
    %802 = vmatprep.mubr.f32.mxu0 %v801
    %v803 = vand.u32 %v319, 4294901760
    %v804 = vsub.f32 %v319, %v803
    %v805 = vand.u32 %v804, 4294901760
    %v806 = vsub.f32 %v804, %v805
    %v807 = vand.u32 %v806, 4294901760
    %808 = vmatmul.mubr.f32.gmra.mrb[0].mxu0 %v807
    %v809 = vpop.f32.mrb[0].mxu0
    %v810 = vadd.f32 0.0, %v809
    %v811 = vpop.f32.mrb[0].mxu0
    %v812 = vand.u32 %v322, 4294901760
    %v813 = vsub.f32 %v322, %v812
    %v814 = vand.u32 %v813, 4294901760
    %v815 = vsub.f32 %v813, %v814
    %v816 = vand.u32 %v815, 4294901760
    %817 = vmatprep.mubr.f32.mxu0 %v816
    %v818 = vand.u32 %v321, 4294901760
    %v819 = vsub.f32 %v321, %v818
    %v820 = vand.u32 %v819, 4294901760
    %v821 = vsub.f32 %v819, %v820
    %v822 = vand.u32 %v821, 4294901760
    %823 = vmatmul.mubr.f32.gmra.mrb[0].mxu0 %v822
    %v824 = vpop.f32.mrb[0].mxu0
    %v825 = vadd.f32 0.0, %v824
    %v826 = vpop.f32.mrb[0].mxu0
    %v827 = vand.u32 %v324, 4294901760
    %v828 = vsub.f32 %v324, %v827
    %v829 = vand.u32 %v828, 4294901760
    %v830 = vsub.f32 %v828, %v829
    %v831 = vand.u32 %v830, 4294901760
    %832 = vmatprep.mubr.f32.mxu0 %v831
    %v833 = vand.u32 %v323, 4294901760
    %v834 = vsub.f32 %v323, %v833
    %v835 = vand.u32 %v834, 4294901760
    %v836 = vsub.f32 %v834, %v835
    %v837 = vand.u32 %v836, 4294901760
    %838 = vmatmul.mubr.f32.gmra.mrb[0].mxu0 %v837
    %v839 = vpop.f32.mrb[0].mxu0
    %v840 = vadd.f32 0.0, %v839
    %v841 = vpop.f32.mrb[0].mxu0
    %v842 = vand.u32 %v326, 4294901760
    %v843 = vsub.f32 %v326, %v842
    %v844 = vand.u32 %v843, 4294901760
    %v845 = vsub.f32 %v843, %v844
    %v846 = vand.u32 %v845, 4294901760
    %847 = vmatprep.mubr.f32.mxu0 %v846
    %v848 = vand.u32 %v325, 4294901760
    %v849 = vsub.f32 %v325, %v848
    %v850 = vand.u32 %v849, 4294901760
    %v851 = vsub.f32 %v849, %v850
    %v852 = vand.u32 %v851, 4294901760
    %853 = vmatmul.mubr.f32.gmra.mrb[0].mxu0 %v852
    %v854 = vpop.f32.mrb[0].mxu0
    %v855 = vadd.f32 0.0, %v854
    %v856 = vpop.f32.mrb[0].mxu0
    %v857 = vand.u32 %v328, 4294901760
    %v858 = vsub.f32 %v328, %v857
    %v859 = vand.u32 %v858, 4294901760
    %v860 = vsub.f32 %v858, %v859
    %v861 = vand.u32 %v860, 4294901760
    %862 = vmatprep.mubr.f32.mxu0 %v861
    %v863 = vand.u32 %v327, 4294901760
    %v864 = vsub.f32 %v327, %v863
    %v865 = vand.u32 %v864, 4294901760
    %v866 = vsub.f32 %v864, %v865
    %v867 = vand.u32 %v866, 4294901760
    %868 = vmatmul.mubr.f32.gmra.mrb[0].mxu0 %v867
    %v869 = vpop.f32.mrb[0].mxu0
    %v870 = vadd.f32 0.0, %v869
    %v871 = vpop.f32.mrb[0].mxu0
    %v872 = vand.u32 %v330, 4294901760
    %v873 = vsub.f32 %v330, %v872
    %v874 = vand.u32 %v873, 4294901760
    %v875 = vsub.f32 %v873, %v874
    %v876 = vand.u32 %v875, 4294901760
    %877 = vmatprep.mubr.f32.mxu0 %v876
    %v878 = vand.u32 %v329, 4294901760
    %v879 = vsub.f32 %v329, %v878
    %v880 = vand.u32 %v879, 4294901760
    %v881 = vsub.f32 %v879, %v880
    %v882 = vand.u32 %v881, 4294901760
    %883 = vmatmul.mubr.f32.gmra.mrb[0].mxu0 %v882
    %v884 = vpop.f32.mrb[0].mxu0
    %v885 = vadd.f32 0.0, %v884
    %v886 = vpop.f32.mrb[0].mxu0
    %v887 = vand.u32 %v332, 4294901760
    %v888 = vsub.f32 %v332, %v887
    %v889 = vand.u32 %v888, 4294901760
    %v890 = vsub.f32 %v888, %v889
    %v891 = vand.u32 %v890, 4294901760
    %892 = vmatprep.mubr.f32.mxu0 %v891
    %v893 = vand.u32 %v331, 4294901760
    %v894 = vsub.f32 %v331, %v893
    %v895 = vand.u32 %v894, 4294901760
    %v896 = vsub.f32 %v894, %v895
    %v897 = vand.u32 %v896, 4294901760
    %898 = vmatmul.mubr.f32.gmra.mrb[0].mxu0 %v897
    %v899 = vpop.f32.mrb[0].mxu0
    %v900 = vadd.f32 0.0, %v899
    %v901 = vpop.f32.mrb[0].mxu0
    %v902 = vand.u32 %v334, 4294901760
    %v903 = vsub.f32 %v334, %v902
    %v904 = vand.u32 %v903, 4294901760
    %v905 = vsub.f32 %v903, %v904
    %v906 = vand.u32 %v905, 4294901760
    %907 = vmatprep.mubr.f32.mxu0 %v906
    %v908 = vand.u32 %v333, 4294901760
    %v909 = vsub.f32 %v333, %v908
    %v910 = vand.u32 %v909, 4294901760
    %v911 = vsub.f32 %v909, %v910
    %v912 = vand.u32 %v911, 4294901760
    %913 = vmatmul.mubr.f32.gmra.mrb[0].mxu0 %v912
    %v914 = vpop.f32.mrb[0].mxu0
    %v915 = vadd.f32 0.0, %v914
    %v916 = vpop.f32.mrb[0].mxu0
    %v917 = vand.u32 %v336, 4294901760
    %v918 = vsub.f32 %v336, %v917
    %v919 = vand.u32 %v918, 4294901760
    %v920 = vsub.f32 %v918, %v919
    %v921 = vand.u32 %v920, 4294901760
    %922 = vmatprep.mubr.f32.mxu0 %v921
    %v923 = vand.u32 %v335, 4294901760
    %v924 = vsub.f32 %v335, %v923
    %v925 = vand.u32 %v924, 4294901760
    %v926 = vsub.f32 %v924, %v925
    %v927 = vand.u32 %v926, 4294901760
    %928 = vmatmul.mubr.f32.gmra.mrb[0].mxu0 %v927
    %v929 = vpop.f32.mrb[0].mxu0
    %v930 = vadd.f32 0.0, %v929
    %v931 = vpop.f32.mrb[0].mxu0
    %v932 = vand.u32 %v338, 4294901760
    %v933 = vsub.f32 %v338, %v932
    %v934 = vand.u32 %v933, 4294901760
    %v935 = vsub.f32 %v933, %v934
    %v936 = vand.u32 %v935, 4294901760
    %937 = vmatprep.mubr.f32.mxu0 %v936
    %v938 = vand.u32 %v337, 4294901760
    %v939 = vsub.f32 %v337, %v938
    %v940 = vand.u32 %v939, 4294901760
    %v941 = vsub.f32 %v939, %v940
    %v942 = vand.u32 %v941, 4294901760
    %943 = vmatmul.mubr.f32.gmra.mrb[0].mxu0 %v942
    %v944 = vpop.f32.mrb[0].mxu0
    %v945 = vadd.f32 0.0, %v944
    %v946 = vpop.f32.mrb[0].mxu0
    %947 = vdwg.mxu0
    %948 = vmatprep.subr.mxu0 0.0
    %v949 = vand.u32 %v339, 4294901760
    %v950 = vsub.f32 %v339, %v949
    %v951 = vand.u32 %v950, 4294901760
    %v952 = vsub.f32 %v950, %v951
    %v953 = vand.u32 %v952, 4294901760
    %954 = vmatpush1.msra.mxu0 %v953
    %955 = vmatprep.subr.mxu0 0.0
    %v956 = vand.u32 %v340, 4294901760
    %v957 = vsub.f32 %v340, %v956
    %v958 = vand.u32 %v957, 4294901760
    %v959 = vsub.f32 %v957, %v958
    %v960 = vand.u32 %v959, 4294901760
    %961 = vmatpush1.msra.mxu0 %v960
    %962 = vmatprep.subr.mxu0 0.0
    %v963 = vand.u32 %v341, 4294901760
    %v964 = vsub.f32 %v341, %v963
    %v965 = vand.u32 %v964, 4294901760
    %v966 = vsub.f32 %v964, %v965
    %v967 = vand.u32 %v966, 4294901760
    %968 = vmatpush1.msra.mxu0 %v967
    %969 = vmatprep.subr.mxu0 0.0
    %v970 = vand.u32 %v342, 4294901760
    %v971 = vsub.f32 %v342, %v970
    %v972 = vand.u32 %v971, 4294901760
    %v973 = vsub.f32 %v971, %v972
    %v974 = vand.u32 %v973, 4294901760
    %975 = vmatpush1.msra.mxu0 %v974
    %976 = vmatprep.subr.mxu0 0.0
    %v977 = vand.u32 %v343, 4294901760
    %v978 = vsub.f32 %v343, %v977
    %v979 = vand.u32 %v978, 4294901760
    %v980 = vsub.f32 %v978, %v979
    %v981 = vand.u32 %v980, 4294901760
    %982 = vmatpush1.msra.mxu0 %v981
    %983 = vmatprep.subr.mxu0 0.0
    %v984 = vand.u32 %v344, 4294901760
    %v985 = vsub.f32 %v344, %v984
    %v986 = vand.u32 %v985, 4294901760
    %v987 = vsub.f32 %v985, %v986
    %v988 = vand.u32 %v987, 4294901760
    %989 = vmatpush1.msra.mxu0 %v988
    %990 = vmatprep.subr.mxu0 0.0
    %v991 = vand.u32 %v345, 4294901760
    %v992 = vsub.f32 %v345, %v991
    %v993 = vand.u32 %v992, 4294901760
    %v994 = vsub.f32 %v992, %v993
    %v995 = vand.u32 %v994, 4294901760
    %996 = vmatpush1.msra.mxu0 %v995
    %997 = vmatprep.subr.mxu0 0.0
    %v998 = vand.u32 %v346, 4294901760
    %v999 = vsub.f32 %v346, %v998
    %v1000 = vand.u32 %v999, 4294901760
    %v1001 = vsub.f32 %v999, %v1000
    %v1002 = vand.u32 %v1001, 4294901760
    %1003 = vmatpush1.msra.mxu0 %v1002
    %1004 = vmatprep.subr.mxu0 0.0
    %v1005 = vand.u32 %v347, 4294901760
    %v1006 = vsub.f32 %v347, %v1005
    %v1007 = vand.u32 %v1006, 4294901760
    %v1008 = vsub.f32 %v1006, %v1007
    %v1009 = vand.u32 %v1008, 4294901760
    %1010 = vmatpush1.msra.mxu0 %v1009
    %1011 = vmatprep.subr.mxu0 0.0
    %v1012 = vand.u32 %v348, 4294901760
    %v1013 = vsub.f32 %v348, %v1012
    %v1014 = vand.u32 %v1013, 4294901760
    %v1015 = vsub.f32 %v1013, %v1014
    %v1016 = vand.u32 %v1015, 4294901760
    %1017 = vmatpush1.msra.mxu0 %v1016
    %1018 = vmatprep.subr.mxu0 0.0
    %v1019 = vand.u32 %v349, 4294901760
    %v1020 = vsub.f32 %v349, %v1019
    %v1021 = vand.u32 %v1020, 4294901760
    %v1022 = vsub.f32 %v1020, %v1021
    %v1023 = vand.u32 %v1022, 4294901760
    %1024 = vmatpush1.msra.mxu0 %v1023
    %1025 = vmatprep.subr.mxu0 0.0
    %v1026 = vand.u32 %v350, 4294901760
    %v1027 = vsub.f32 %v350, %v1026
    %v1028 = vand.u32 %v1027, 4294901760
    %v1029 = vsub.f32 %v1027, %v1028
    %v1030 = vand.u32 %v1029, 4294901760
    %1031 = vmatpush1.msra.mxu0 %v1030
    %1032 = vmatprep.subr.mxu0 0.0
    %v1033 = vand.u32 %v351, 4294901760
    %v1034 = vsub.f32 %v351, %v1033
    %v1035 = vand.u32 %v1034, 4294901760
    %v1036 = vsub.f32 %v1034, %v1035
    %v1037 = vand.u32 %v1036, 4294901760
    %1038 = vmatpush1.msra.mxu0 %v1037
    %1039 = vmatprep.subr.mxu0 0.0
    %v1040 = vand.u32 %v352, 4294901760
    %v1041 = vsub.f32 %v352, %v1040
    %v1042 = vand.u32 %v1041, 4294901760
    %v1043 = vsub.f32 %v1041, %v1042
    %v1044 = vand.u32 %v1043, 4294901760
    %1045 = vmatpush1.msra.mxu0 %v1044
    %1046 = vmatprep.subr.mxu0 0.0
    %v1047 = vand.u32 %v353, 4294901760
    %v1048 = vsub.f32 %v353, %v1047
    %v1049 = vand.u32 %v1048, 4294901760
    %v1050 = vsub.f32 %v1048, %v1049
    %v1051 = vand.u32 %v1050, 4294901760
    %1052 = vmatpush1.msra.mxu0 %v1051
    %1053 = vmatprep.subr.mxu0 0.0
    %v1054 = vand.u32 %v354, 4294901760
    %v1055 = vsub.f32 %v354, %v1054
    %v1056 = vand.u32 %v1055, 4294901760
    %v1057 = vsub.f32 %v1055, %v1056
    %v1058 = vand.u32 %v1057, 4294901760
    %1059 = vmatpush1.msra.mxu0 %v1058
    %1060 = vmatprep.subr.mxu0 0.0
    %v1061 = vand.u32 %v355, 4294901760
    %v1062 = vsub.f32 %v355, %v1061
    %v1063 = vand.u32 %v1062, 4294901760
    %v1064 = vsub.f32 %v1062, %v1063
    %v1065 = vand.u32 %v1064, 4294901760
    %1066 = vmatpush1.msra.mxu0 %v1065
    %1067 = vmatprep.subr.mxu0 0.0
    %v1068 = vand.u32 %v356, 4294901760
    %v1069 = vsub.f32 %v356, %v1068
    %v1070 = vand.u32 %v1069, 4294901760
    %v1071 = vsub.f32 %v1069, %v1070
    %v1072 = vand.u32 %v1071, 4294901760
    %1073 = vmatpush1.msra.mxu0 %v1072
    %1074 = vmatprep.subr.mxu0 0.0
    %v1075 = vand.u32 %v357, 4294901760
    %v1076 = vsub.f32 %v357, %v1075
    %v1077 = vand.u32 %v1076, 4294901760
    %v1078 = vsub.f32 %v1076, %v1077
    %v1079 = vand.u32 %v1078, 4294901760
    %1080 = vmatpush1.msra.mxu0 %v1079
    %1081 = vmatprep.subr.mxu0 0.0
    %v1082 = vand.u32 %v358, 4294901760
    %v1083 = vsub.f32 %v358, %v1082
    %v1084 = vand.u32 %v1083, 4294901760
    %v1085 = vsub.f32 %v1083, %v1084
    %v1086 = vand.u32 %v1085, 4294901760
    %1087 = vmatpush1.msra.mxu0 %v1086
    %1088 = vmatprep.subr.mxu0 0.0
    %v1089 = vand.u32 %v359, 4294901760
    %v1090 = vsub.f32 %v359, %v1089
    %v1091 = vand.u32 %v1090, 4294901760
    %v1092 = vsub.f32 %v1090, %v1091
    %v1093 = vand.u32 %v1092, 4294901760
    %1094 = vmatpush1.msra.mxu0 %v1093
    %1095 = vmatprep.subr.mxu0 0.0
    %v1096 = vand.u32 %v360, 4294901760
    %v1097 = vsub.f32 %v360, %v1096
    %v1098 = vand.u32 %v1097, 4294901760
    %v1099 = vsub.f32 %v1097, %v1098
    %v1100 = vand.u32 %v1099, 4294901760
    %1101 = vmatpush1.msra.mxu0 %v1100
    %1102 = vmatprep.subr.mxu0 0.0
    %v1103 = vand.u32 %v361, 4294901760
    %v1104 = vsub.f32 %v361, %v1103
    %v1105 = vand.u32 %v1104, 4294901760
    %v1106 = vsub.f32 %v1104, %v1105
    %v1107 = vand.u32 %v1106, 4294901760
    %1108 = vmatpush1.msra.mxu0 %v1107
    %1109 = vmatprep.subr.mxu0 0.0
    %v1110 = vand.u32 %v362, 4294901760
    %v1111 = vsub.f32 %v362, %v1110
    %v1112 = vand.u32 %v1111, 4294901760
    %v1113 = vsub.f32 %v1111, %v1112
    %v1114 = vand.u32 %v1113, 4294901760
    %1115 = vmatpush1.msra.mxu0 %v1114
    %1116 = vmatprep.subr.mxu0 0.0
    %v1117 = vand.u32 %v363, 4294901760
    %v1118 = vsub.f32 %v363, %v1117
    %v1119 = vand.u32 %v1118, 4294901760
    %v1120 = vsub.f32 %v1118, %v1119
    %v1121 = vand.u32 %v1120, 4294901760
    %1122 = vmatpush1.msra.mxu0 %v1121
    %1123 = vmatprep.subr.mxu0 0.0
    %v1124 = vand.u32 %v364, 4294901760
    %v1125 = vsub.f32 %v364, %v1124
    %v1126 = vand.u32 %v1125, 4294901760
    %v1127 = vsub.f32 %v1125, %v1126
    %v1128 = vand.u32 %v1127, 4294901760
    %1129 = vmatpush1.msra.mxu0 %v1128
    %1130 = vmatprep.subr.mxu0 0.0
    %v1131 = vand.u32 %v365, 4294901760
    %v1132 = vsub.f32 %v365, %v1131
    %v1133 = vand.u32 %v1132, 4294901760
    %v1134 = vsub.f32 %v1132, %v1133
    %v1135 = vand.u32 %v1134, 4294901760
    %1136 = vmatpush1.msra.mxu0 %v1135
    %1137 = vmatprep.subr.mxu0 0.0
    %v1138 = vand.u32 %v366, 4294901760
    %v1139 = vsub.f32 %v366, %v1138
    %v1140 = vand.u32 %v1139, 4294901760
    %v1141 = vsub.f32 %v1139, %v1140
    %v1142 = vand.u32 %v1141, 4294901760
    %1143 = vmatpush1.msra.mxu0 %v1142
    %1144 = vmatprep.subr.mxu0 0.0
    %v1145 = vand.u32 %v367, 4294901760
    %v1146 = vsub.f32 %v367, %v1145
    %v1147 = vand.u32 %v1146, 4294901760
    %v1148 = vsub.f32 %v1146, %v1147
    %v1149 = vand.u32 %v1148, 4294901760
    %1150 = vmatpush1.msra.mxu0 %v1149
    %1151 = vmatprep.subr.mxu0 0.0
    %v1152 = vand.u32 %v368, 4294901760
    %v1153 = vsub.f32 %v368, %v1152
    %v1154 = vand.u32 %v1153, 4294901760
    %v1155 = vsub.f32 %v1153, %v1154
    %v1156 = vand.u32 %v1155, 4294901760
    %1157 = vmatpush1.msra.mxu0 %v1156
    %1158 = vmatprep.subr.mxu0 0.0
    %v1159 = vand.u32 %v369, 4294901760
    %v1160 = vsub.f32 %v369, %v1159
    %v1161 = vand.u32 %v1160, 4294901760
    %v1162 = vsub.f32 %v1160, %v1161
    %v1163 = vand.u32 %v1162, 4294901760
    %1164 = vmatpush1.msra.mxu0 %v1163
    %1165 = vmatprep.subr.mxu0 0.0
    %v1166 = vand.u32 %v370, 4294901760
    %v1167 = vsub.f32 %v370, %v1166
    %v1168 = vand.u32 %v1167, 4294901760
    %v1169 = vsub.f32 %v1167, %v1168
    %v1170 = vand.u32 %v1169, 4294901760
    %1171 = vmatpush1.msra.mxu0 %v1170
    %v1172 = vand.u32 %v276, 4294901760
    %1173 = vmatprep.mubr.f32.mxu0 %v1172
    %v1174 = vand.u32 %v275, 4294901760
    %1175 = vmatmul.mubr.f32.gmra.mrb[0].mxu0 %v1174
    %v1176 = vpop.f32.mrb[0].mxu0
    %v1177 = vadd.f32 %v480, %v1176
    %v1178 = vpop.f32.mrb[0].mxu0
    %v1179 = vand.u32 %v278, 4294901760
    %1180 = vmatprep.mubr.f32.mxu0 %v1179
    %v1181 = vand.u32 %v277, 4294901760
    %1182 = vmatmul.mubr.f32.gmra.mrb[0].mxu0 %v1181
    %v1183 = vpop.f32.mrb[0].mxu0
    %v1184 = vadd.f32 %v495, %v1183
    %v1185 = vpop.f32.mrb[0].mxu0
    %v1186 = vand.u32 %v280, 4294901760
    %1187 = vmatprep.mubr.f32.mxu0 %v1186
    %v1188 = vand.u32 %v279, 4294901760
    %1189 = vmatmul.mubr.f32.gmra.mrb[0].mxu0 %v1188
    %v1190 = vpop.f32.mrb[0].mxu0
    %v1191 = vadd.f32 %v510, %v1190
    %v1192 = vpop.f32.mrb[0].mxu0
    %v1193 = vand.u32 %v282, 4294901760
    %1194 = vmatprep.mubr.f32.mxu0 %v1193
    %v1195 = vand.u32 %v281, 4294901760
    %1196 = vmatmul.mubr.f32.gmra.mrb[0].mxu0 %v1195
    %v1197 = vpop.f32.mrb[0].mxu0
    %v1198 = vadd.f32 %v525, %v1197
    %v1199 = vpop.f32.mrb[0].mxu0
    %v1200 = vand.u32 %v284, 4294901760
    %1201 = vmatprep.mubr.f32.mxu0 %v1200
    %v1202 = vand.u32 %v283, 4294901760
    %1203 = vmatmul.mubr.f32.gmra.mrb[0].mxu0 %v1202
    %v1204 = vpop.f32.mrb[0].mxu0
    %v1205 = vadd.f32 %v540, %v1204
    %v1206 = vpop.f32.mrb[0].mxu0
    %v1207 = vand.u32 %v286, 4294901760
    %1208 = vmatprep.mubr.f32.mxu0 %v1207
    %v1209 = vand.u32 %v285, 4294901760
    %1210 = vmatmul.mubr.f32.gmra.mrb[0].mxu0 %v1209
    %v1211 = vpop.f32.mrb[0].mxu0
    %v1212 = vadd.f32 %v555, %v1211
    %v1213 = vpop.f32.mrb[0].mxu0
    %v1214 = vand.u32 %v288, 4294901760
    %1215 = vmatprep.mubr.f32.mxu0 %v1214
    %v1216 = vand.u32 %v287, 4294901760
    %1217 = vmatmul.mubr.f32.gmra.mrb[0].mxu0 %v1216
    %v1218 = vpop.f32.mrb[0].mxu0
    %v1219 = vadd.f32 %v570, %v1218
    %v1220 = vpop.f32.mrb[0].mxu0
    %v1221 = vand.u32 %v290, 4294901760
    %1222 = vmatprep.mubr.f32.mxu0 %v1221
    %v1223 = vand.u32 %v289, 4294901760
    %1224 = vmatmul.mubr.f32.gmra.mrb[0].mxu0 %v1223
    %v1225 = vpop.f32.mrb[0].mxu0
    %v1226 = vadd.f32 %v585, %v1225
    %v1227 = vpop.f32.mrb[0].mxu0
    %v1228 = vand.u32 %v292, 4294901760
    %1229 = vmatprep.mubr.f32.mxu0 %v1228
    %v1230 = vand.u32 %v291, 4294901760
    %1231 = vmatmul.mubr.f32.gmra.mrb[0].mxu0 %v1230
    %v1232 = vpop.f32.mrb[0].mxu0
    %v1233 = vadd.f32 %v600, %v1232
    %v1234 = vpop.f32.mrb[0].mxu0
    %v1235 = vand.u32 %v294, 4294901760
    %1236 = vmatprep.mubr.f32.mxu0 %v1235
    %v1237 = vand.u32 %v293, 4294901760
    %1238 = vmatmul.mubr.f32.gmra.mrb[0].mxu0 %v1237
    %v1239 = vpop.f32.mrb[0].mxu0
    %v1240 = vadd.f32 %v615, %v1239
    %v1241 = vpop.f32.mrb[0].mxu0
    %v1242 = vand.u32 %v296, 4294901760
    %1243 = vmatprep.mubr.f32.mxu0 %v1242
    %v1244 = vand.u32 %v295, 4294901760
    %1245 = vmatmul.mubr.f32.gmra.mrb[0].mxu0 %v1244
    %v1246 = vpop.f32.mrb[0].mxu0
    %v1247 = vadd.f32 %v630, %v1246
    %v1248 = vpop.f32.mrb[0].mxu0
    %v1249 = vand.u32 %v298, 4294901760
    %1250 = vmatprep.mubr.f32.mxu0 %v1249
    %v1251 = vand.u32 %v297, 4294901760
    %1252 = vmatmul.mubr.f32.gmra.mrb[0].mxu0 %v1251
    %v1253 = vpop.f32.mrb[0].mxu0
    %v1254 = vadd.f32 %v645, %v1253
    %v1255 = vpop.f32.mrb[0].mxu0
    %v1256 = vand.u32 %v300, 4294901760
    %1257 = vmatprep.mubr.f32.mxu0 %v1256
    %v1258 = vand.u32 %v299, 4294901760
    %1259 = vmatmul.mubr.f32.gmra.mrb[0].mxu0 %v1258
    %v1260 = vpop.f32.mrb[0].mxu0
    %v1261 = vadd.f32 %v660, %v1260
    %v1262 = vpop.f32.mrb[0].mxu0
    %v1263 = vand.u32 %v302, 4294901760
    %1264 = vmatprep.mubr.f32.mxu0 %v1263
    %v1265 = vand.u32 %v301, 4294901760
    %1266 = vmatmul.mubr.f32.gmra.mrb[0].mxu0 %v1265
    %v1267 = vpop.f32.mrb[0].mxu0
    %v1268 = vadd.f32 %v675, %v1267
    %v1269 = vpop.f32.mrb[0].mxu0
    %v1270 = vand.u32 %v304, 4294901760
    %1271 = vmatprep.mubr.f32.mxu0 %v1270
    %v1272 = vand.u32 %v303, 4294901760
    %1273 = vmatmul.mubr.f32.gmra.mrb[0].mxu0 %v1272
    %v1274 = vpop.f32.mrb[0].mxu0
    %v1275 = vadd.f32 %v690, %v1274
    %v1276 = vpop.f32.mrb[0].mxu0
    %v1277 = vand.u32 %v306, 4294901760
    %1278 = vmatprep.mubr.f32.mxu0 %v1277
    %v1279 = vand.u32 %v305, 4294901760
    %1280 = vmatmul.mubr.f32.gmra.mrb[0].mxu0 %v1279
    %v1281 = vpop.f32.mrb[0].mxu0
    %v1282 = vadd.f32 %v705, %v1281
    %v1283 = vpop.f32.mrb[0].mxu0
    %v1284 = vand.u32 %v308, 4294901760
    %1285 = vmatprep.mubr.f32.mxu0 %v1284
    %v1286 = vand.u32 %v307, 4294901760
    %1287 = vmatmul.mubr.f32.gmra.mrb[0].mxu0 %v1286
    %v1288 = vpop.f32.mrb[0].mxu0
    %v1289 = vadd.f32 %v720, %v1288
    %v1290 = vpop.f32.mrb[0].mxu0
    %v1291 = vand.u32 %v310, 4294901760
    %1292 = vmatprep.mubr.f32.mxu0 %v1291
    %v1293 = vand.u32 %v309, 4294901760
    %1294 = vmatmul.mubr.f32.gmra.mrb[0].mxu0 %v1293
    %v1295 = vpop.f32.mrb[0].mxu0
    %v1296 = vadd.f32 %v735, %v1295
    %v1297 = vpop.f32.mrb[0].mxu0
    %v1298 = vand.u32 %v312, 4294901760
    %1299 = vmatprep.mubr.f32.mxu0 %v1298
    %v1300 = vand.u32 %v311, 4294901760
    %1301 = vmatmul.mubr.f32.gmra.mrb[0].mxu0 %v1300
    %v1302 = vpop.f32.mrb[0].mxu0
    %v1303 = vadd.f32 %v750, %v1302
    %v1304 = vpop.f32.mrb[0].mxu0
    %v1305 = vand.u32 %v314, 4294901760
    %1306 = vmatprep.mubr.f32.mxu0 %v1305
    %v1307 = vand.u32 %v313, 4294901760
    %1308 = vmatmul.mubr.f32.gmra.mrb[0].mxu0 %v1307
    %v1309 = vpop.f32.mrb[0].mxu0
    %v1310 = vadd.f32 %v765, %v1309
    %v1311 = vpop.f32.mrb[0].mxu0
    %v1312 = vand.u32 %v316, 4294901760
    %1313 = vmatprep.mubr.f32.mxu0 %v1312
    %v1314 = vand.u32 %v315, 4294901760
    %1315 = vmatmul.mubr.f32.gmra.mrb[0].mxu0 %v1314
    %v1316 = vpop.f32.mrb[0].mxu0
    %v1317 = vadd.f32 %v780, %v1316
    %v1318 = vpop.f32.mrb[0].mxu0
    %v1319 = vand.u32 %v318, 4294901760
    %1320 = vmatprep.mubr.f32.mxu0 %v1319
    %v1321 = vand.u32 %v317, 4294901760
    %1322 = vmatmul.mubr.f32.gmra.mrb[0].mxu0 %v1321
    %v1323 = vpop.f32.mrb[0].mxu0
    %v1324 = vadd.f32 %v795, %v1323
    %v1325 = vpop.f32.mrb[0].mxu0
    %v1326 = vand.u32 %v320, 4294901760
    %1327 = vmatprep.mubr.f32.mxu0 %v1326
    %v1328 = vand.u32 %v319, 4294901760
    %1329 = vmatmul.mubr.f32.gmra.mrb[0].mxu0 %v1328
    %v1330 = vpop.f32.mrb[0].mxu0
    %v1331 = vadd.f32 %v810, %v1330
    %v1332 = vpop.f32.mrb[0].mxu0
    %v1333 = vand.u32 %v322, 4294901760
    %1334 = vmatprep.mubr.f32.mxu0 %v1333
    %v1335 = vand.u32 %v321, 4294901760
    %1336 = vmatmul.mubr.f32.gmra.mrb[0].mxu0 %v1335
    %v1337 = vpop.f32.mrb[0].mxu0
    %v1338 = vadd.f32 %v825, %v1337
    %v1339 = vpop.f32.mrb[0].mxu0
    %v1340 = vand.u32 %v324, 4294901760
    %1341 = vmatprep.mubr.f32.mxu0 %v1340
    %v1342 = vand.u32 %v323, 4294901760
    %1343 = vmatmul.mubr.f32.gmra.mrb[0].mxu0 %v1342
    %v1344 = vpop.f32.mrb[0].mxu0
    %v1345 = vadd.f32 %v840, %v1344
    %v1346 = vpop.f32.mrb[0].mxu0
    %v1347 = vand.u32 %v326, 4294901760
    %1348 = vmatprep.mubr.f32.mxu0 %v1347
    %v1349 = vand.u32 %v325, 4294901760
    %1350 = vmatmul.mubr.f32.gmra.mrb[0].mxu0 %v1349
    %v1351 = vpop.f32.mrb[0].mxu0
    %v1352 = vadd.f32 %v855, %v1351
    %v1353 = vpop.f32.mrb[0].mxu0
    %v1354 = vand.u32 %v328, 4294901760
    %1355 = vmatprep.mubr.f32.mxu0 %v1354
    %v1356 = vand.u32 %v327, 4294901760
    %1357 = vmatmul.mubr.f32.gmra.mrb[0].mxu0 %v1356
    %v1358 = vpop.f32.mrb[0].mxu0
    %v1359 = vadd.f32 %v870, %v1358
    %v1360 = vpop.f32.mrb[0].mxu0
    %v1361 = vand.u32 %v330, 4294901760
    %1362 = vmatprep.mubr.f32.mxu0 %v1361
    %v1363 = vand.u32 %v329, 4294901760
    %1364 = vmatmul.mubr.f32.gmra.mrb[0].mxu0 %v1363
    %v1365 = vpop.f32.mrb[0].mxu0
    %v1366 = vadd.f32 %v885, %v1365
    %v1367 = vpop.f32.mrb[0].mxu0
    %v1368 = vand.u32 %v332, 4294901760
    %1369 = vmatprep.mubr.f32.mxu0 %v1368
    %v1370 = vand.u32 %v331, 4294901760
    %1371 = vmatmul.mubr.f32.gmra.mrb[0].mxu0 %v1370
    %v1372 = vpop.f32.mrb[0].mxu0
    %v1373 = vadd.f32 %v900, %v1372
    %v1374 = vpop.f32.mrb[0].mxu0
    %v1375 = vand.u32 %v334, 4294901760
    %1376 = vmatprep.mubr.f32.mxu0 %v1375
    %v1377 = vand.u32 %v333, 4294901760
    %1378 = vmatmul.mubr.f32.gmra.mrb[0].mxu0 %v1377
    %v1379 = vpop.f32.mrb[0].mxu0
    %v1380 = vadd.f32 %v915, %v1379
    %v1381 = vpop.f32.mrb[0].mxu0
    %v1382 = vand.u32 %v336, 4294901760
    %1383 = vmatprep.mubr.f32.mxu0 %v1382
    %v1384 = vand.u32 %v335, 4294901760
    %1385 = vmatmul.mubr.f32.gmra.mrb[0].mxu0 %v1384
    %v1386 = vpop.f32.mrb[0].mxu0
    %v1387 = vadd.f32 %v930, %v1386
    %v1388 = vpop.f32.mrb[0].mxu0
    %v1389 = vand.u32 %v338, 4294901760
    %1390 = vmatprep.mubr.f32.mxu0 %v1389
    %v1391 = vand.u32 %v337, 4294901760
    %1392 = vmatmul.mubr.f32.gmra.mrb[0].mxu0 %v1391
    %v1393 = vpop.f32.mrb[0].mxu0
    %v1394 = vadd.f32 %v945, %v1393
    %v1395 = vpop.f32.mrb[0].mxu0
    %1396 = vdwg.mxu0
    %1397 = vmatprep.subr.mxu0 0.0
    %v1398 = vand.u32 %v339, 4294901760
    %v1399 = vsub.f32 %v339, %v1398
    %1400 = vmatpush1.msra.mxu0 %v1399
    %1401 = vmatprep.subr.mxu0 0.0
    %v1402 = vand.u32 %v340, 4294901760
    %v1403 = vsub.f32 %v340, %v1402
    %1404 = vmatpush1.msra.mxu0 %v1403
    %1405 = vmatprep.subr.mxu0 0.0
    %v1406 = vand.u32 %v341, 4294901760
    %v1407 = vsub.f32 %v341, %v1406
    %1408 = vmatpush1.msra.mxu0 %v1407
    %1409 = vmatprep.subr.mxu0 0.0
    %v1410 = vand.u32 %v342, 4294901760
    %v1411 = vsub.f32 %v342, %v1410
    %1412 = vmatpush1.msra.mxu0 %v1411
    %1413 = vmatprep.subr.mxu0 0.0
    %v1414 = vand.u32 %v343, 4294901760
    %v1415 = vsub.f32 %v343, %v1414
    %1416 = vmatpush1.msra.mxu0 %v1415
    %1417 = vmatprep.subr.mxu0 0.0
    %v1418 = vand.u32 %v344, 4294901760
    %v1419 = vsub.f32 %v344, %v1418
    %1420 = vmatpush1.msra.mxu0 %v1419
    %1421 = vmatprep.subr.mxu0 0.0
    %v1422 = vand.u32 %v345, 4294901760
    %v1423 = vsub.f32 %v345, %v1422
    %1424 = vmatpush1.msra.mxu0 %v1423
    %1425 = vmatprep.subr.mxu0 0.0
    %v1426 = vand.u32 %v346, 4294901760
    %v1427 = vsub.f32 %v346, %v1426
    %1428 = vmatpush1.msra.mxu0 %v1427
    %1429 = vmatprep.subr.mxu0 0.0
    %v1430 = vand.u32 %v347, 4294901760
    %v1431 = vsub.f32 %v347, %v1430
    %1432 = vmatpush1.msra.mxu0 %v1431
    %1433 = vmatprep.subr.mxu0 0.0
    %v1434 = vand.u32 %v348, 4294901760
    %v1435 = vsub.f32 %v348, %v1434
    %1436 = vmatpush1.msra.mxu0 %v1435
    %1437 = vmatprep.subr.mxu0 0.0
    %v1438 = vand.u32 %v349, 4294901760
    %v1439 = vsub.f32 %v349, %v1438
    %1440 = vmatpush1.msra.mxu0 %v1439
    %1441 = vmatprep.subr.mxu0 0.0
    %v1442 = vand.u32 %v350, 4294901760
    %v1443 = vsub.f32 %v350, %v1442
    %1444 = vmatpush1.msra.mxu0 %v1443
    %1445 = vmatprep.subr.mxu0 0.0
    %v1446 = vand.u32 %v351, 4294901760
    %v1447 = vsub.f32 %v351, %v1446
    %1448 = vmatpush1.msra.mxu0 %v1447
    %1449 = vmatprep.subr.mxu0 0.0
    %v1450 = vand.u32 %v352, 4294901760
    %v1451 = vsub.f32 %v352, %v1450
    %1452 = vmatpush1.msra.mxu0 %v1451
    %1453 = vmatprep.subr.mxu0 0.0
    %v1454 = vand.u32 %v353, 4294901760
    %v1455 = vsub.f32 %v353, %v1454
    %1456 = vmatpush1.msra.mxu0 %v1455
    %1457 = vmatprep.subr.mxu0 0.0
    %v1458 = vand.u32 %v354, 4294901760
    %v1459 = vsub.f32 %v354, %v1458
    %1460 = vmatpush1.msra.mxu0 %v1459
    %1461 = vmatprep.subr.mxu0 0.0
    %v1462 = vand.u32 %v355, 4294901760
    %v1463 = vsub.f32 %v355, %v1462
    %1464 = vmatpush1.msra.mxu0 %v1463
    %1465 = vmatprep.subr.mxu0 0.0
    %v1466 = vand.u32 %v356, 4294901760
    %v1467 = vsub.f32 %v356, %v1466
    %1468 = vmatpush1.msra.mxu0 %v1467
    %1469 = vmatprep.subr.mxu0 0.0
    %v1470 = vand.u32 %v357, 4294901760
    %v1471 = vsub.f32 %v357, %v1470
    %1472 = vmatpush1.msra.mxu0 %v1471
    %1473 = vmatprep.subr.mxu0 0.0
    %v1474 = vand.u32 %v358, 4294901760
    %v1475 = vsub.f32 %v358, %v1474
    %1476 = vmatpush1.msra.mxu0 %v1475
    %1477 = vmatprep.subr.mxu0 0.0
    %v1478 = vand.u32 %v359, 4294901760
    %v1479 = vsub.f32 %v359, %v1478
    %1480 = vmatpush1.msra.mxu0 %v1479
    %1481 = vmatprep.subr.mxu0 0.0
    %v1482 = vand.u32 %v360, 4294901760
    %v1483 = vsub.f32 %v360, %v1482
    %1484 = vmatpush1.msra.mxu0 %v1483
    %1485 = vmatprep.subr.mxu0 0.0
    %v1486 = vand.u32 %v361, 4294901760
    %v1487 = vsub.f32 %v361, %v1486
    %1488 = vmatpush1.msra.mxu0 %v1487
    %1489 = vmatprep.subr.mxu0 0.0
    %v1490 = vand.u32 %v362, 4294901760
    %v1491 = vsub.f32 %v362, %v1490
    %1492 = vmatpush1.msra.mxu0 %v1491
    %1493 = vmatprep.subr.mxu0 0.0
    %v1494 = vand.u32 %v363, 4294901760
    %v1495 = vsub.f32 %v363, %v1494
    %1496 = vmatpush1.msra.mxu0 %v1495
    %1497 = vmatprep.subr.mxu0 0.0
    %v1498 = vand.u32 %v364, 4294901760
    %v1499 = vsub.f32 %v364, %v1498
    %1500 = vmatpush1.msra.mxu0 %v1499
    %1501 = vmatprep.subr.mxu0 0.0
    %v1502 = vand.u32 %v365, 4294901760
    %v1503 = vsub.f32 %v365, %v1502
    %1504 = vmatpush1.msra.mxu0 %v1503
    %1505 = vmatprep.subr.mxu0 0.0
    %v1506 = vand.u32 %v366, 4294901760
    %v1507 = vsub.f32 %v366, %v1506
    %1508 = vmatpush1.msra.mxu0 %v1507
    %1509 = vmatprep.subr.mxu0 0.0
    %v1510 = vand.u32 %v367, 4294901760
    %v1511 = vsub.f32 %v367, %v1510
    %1512 = vmatpush1.msra.mxu0 %v1511
    %1513 = vmatprep.subr.mxu0 0.0
    %v1514 = vand.u32 %v368, 4294901760
    %v1515 = vsub.f32 %v368, %v1514
    %1516 = vmatpush1.msra.mxu0 %v1515
    %1517 = vmatprep.subr.mxu0 0.0
    %v1518 = vand.u32 %v369, 4294901760
    %v1519 = vsub.f32 %v369, %v1518
    %1520 = vmatpush1.msra.mxu0 %v1519
    %1521 = vmatprep.subr.mxu0 0.0
    %v1522 = vand.u32 %v370, 4294901760
    %v1523 = vsub.f32 %v370, %v1522
    %1524 = vmatpush1.msra.mxu0 %v1523
    %v1525 = vand.u32 %v276, 4294901760
    %v1526 = vsub.f32 %v276, %v1525
    %1527 = vmatprep.mubr.f32.mxu0 %v1526
    %v1528 = vand.u32 %v275, 4294901760
    %v1529 = vsub.f32 %v275, %v1528
    %1530 = vmatmul.mubr.f32.gmra.mrb[0].mxu0 %v1529
    %v1531 = vpop.f32.mrb[0].mxu0
    %v1532 = vadd.f32 %v1177, %v1531
    %v1533 = vpop.f32.mrb[0].mxu0
    %v1534 = vand.u32 %v278, 4294901760
    %v1535 = vsub.f32 %v278, %v1534
    %1536 = vmatprep.mubr.f32.mxu0 %v1535
    %v1537 = vand.u32 %v277, 4294901760
    %v1538 = vsub.f32 %v277, %v1537
    %1539 = vmatmul.mubr.f32.gmra.mrb[0].mxu0 %v1538
    %v1540 = vpop.f32.mrb[0].mxu0
    %v1541 = vadd.f32 %v1184, %v1540
    %v1542 = vpop.f32.mrb[0].mxu0
    %v1543 = vand.u32 %v280, 4294901760
    %v1544 = vsub.f32 %v280, %v1543
    %1545 = vmatprep.mubr.f32.mxu0 %v1544
    %v1546 = vand.u32 %v279, 4294901760
    %v1547 = vsub.f32 %v279, %v1546
    %1548 = vmatmul.mubr.f32.gmra.mrb[0].mxu0 %v1547
    %v1549 = vpop.f32.mrb[0].mxu0
    %v1550 = vadd.f32 %v1191, %v1549
    %v1551 = vpop.f32.mrb[0].mxu0
    %v1552 = vand.u32 %v282, 4294901760
    %v1553 = vsub.f32 %v282, %v1552
    %1554 = vmatprep.mubr.f32.mxu0 %v1553
    %v1555 = vand.u32 %v281, 4294901760
    %v1556 = vsub.f32 %v281, %v1555
    %1557 = vmatmul.mubr.f32.gmra.mrb[0].mxu0 %v1556
    %v1558 = vpop.f32.mrb[0].mxu0
    %v1559 = vadd.f32 %v1198, %v1558
    %v1560 = vpop.f32.mrb[0].mxu0
    %v1561 = vand.u32 %v284, 4294901760
    %v1562 = vsub.f32 %v284, %v1561
    %1563 = vmatprep.mubr.f32.mxu0 %v1562
    %v1564 = vand.u32 %v283, 4294901760
    %v1565 = vsub.f32 %v283, %v1564
    %1566 = vmatmul.mubr.f32.gmra.mrb[0].mxu0 %v1565
    %v1567 = vpop.f32.mrb[0].mxu0
    %v1568 = vadd.f32 %v1205, %v1567
    %v1569 = vpop.f32.mrb[0].mxu0
    %v1570 = vand.u32 %v286, 4294901760
    %v1571 = vsub.f32 %v286, %v1570
    %1572 = vmatprep.mubr.f32.mxu0 %v1571
    %v1573 = vand.u32 %v285, 4294901760
    %v1574 = vsub.f32 %v285, %v1573
    %1575 = vmatmul.mubr.f32.gmra.mrb[0].mxu0 %v1574
    %v1576 = vpop.f32.mrb[0].mxu0
    %v1577 = vadd.f32 %v1212, %v1576
    %v1578 = vpop.f32.mrb[0].mxu0
    %v1579 = vand.u32 %v288, 4294901760
    %v1580 = vsub.f32 %v288, %v1579
    %1581 = vmatprep.mubr.f32.mxu0 %v1580
    %v1582 = vand.u32 %v287, 4294901760
    %v1583 = vsub.f32 %v287, %v1582
    %1584 = vmatmul.mubr.f32.gmra.mrb[0].mxu0 %v1583
    %v1585 = vpop.f32.mrb[0].mxu0
    %v1586 = vadd.f32 %v1219, %v1585
    %v1587 = vpop.f32.mrb[0].mxu0
    %v1588 = vand.u32 %v290, 4294901760
    %v1589 = vsub.f32 %v290, %v1588
    %1590 = vmatprep.mubr.f32.mxu0 %v1589
    %v1591 = vand.u32 %v289, 4294901760
    %v1592 = vsub.f32 %v289, %v1591
    %1593 = vmatmul.mubr.f32.gmra.mrb[0].mxu0 %v1592
    %v1594 = vpop.f32.mrb[0].mxu0
    %v1595 = vadd.f32 %v1226, %v1594
    %v1596 = vpop.f32.mrb[0].mxu0
    %v1597 = vand.u32 %v292, 4294901760
    %v1598 = vsub.f32 %v292, %v1597
    %1599 = vmatprep.mubr.f32.mxu0 %v1598
    %v1600 = vand.u32 %v291, 4294901760
    %v1601 = vsub.f32 %v291, %v1600
    %1602 = vmatmul.mubr.f32.gmra.mrb[0].mxu0 %v1601
    %v1603 = vpop.f32.mrb[0].mxu0
    %v1604 = vadd.f32 %v1233, %v1603
    %v1605 = vpop.f32.mrb[0].mxu0
    %v1606 = vand.u32 %v294, 4294901760
    %v1607 = vsub.f32 %v294, %v1606
    %1608 = vmatprep.mubr.f32.mxu0 %v1607
    %v1609 = vand.u32 %v293, 4294901760
    %v1610 = vsub.f32 %v293, %v1609
    %1611 = vmatmul.mubr.f32.gmra.mrb[0].mxu0 %v1610
    %v1612 = vpop.f32.mrb[0].mxu0
    %v1613 = vadd.f32 %v1240, %v1612
    %v1614 = vpop.f32.mrb[0].mxu0
    %v1615 = vand.u32 %v296, 4294901760
    %v1616 = vsub.f32 %v296, %v1615
    %1617 = vmatprep.mubr.f32.mxu0 %v1616
    %v1618 = vand.u32 %v295, 4294901760
    %v1619 = vsub.f32 %v295, %v1618
    %1620 = vmatmul.mubr.f32.gmra.mrb[0].mxu0 %v1619
    %v1621 = vpop.f32.mrb[0].mxu0
    %v1622 = vadd.f32 %v1247, %v1621
    %v1623 = vpop.f32.mrb[0].mxu0
    %v1624 = vand.u32 %v298, 4294901760
    %v1625 = vsub.f32 %v298, %v1624
    %1626 = vmatprep.mubr.f32.mxu0 %v1625
    %v1627 = vand.u32 %v297, 4294901760
    %v1628 = vsub.f32 %v297, %v1627
    %1629 = vmatmul.mubr.f32.gmra.mrb[0].mxu0 %v1628
    %v1630 = vpop.f32.mrb[0].mxu0
    %v1631 = vadd.f32 %v1254, %v1630
    %v1632 = vpop.f32.mrb[0].mxu0
    %v1633 = vand.u32 %v300, 4294901760
    %v1634 = vsub.f32 %v300, %v1633
    %1635 = vmatprep.mubr.f32.mxu0 %v1634
    %v1636 = vand.u32 %v299, 4294901760
    %v1637 = vsub.f32 %v299, %v1636
    %1638 = vmatmul.mubr.f32.gmra.mrb[0].mxu0 %v1637
    %v1639 = vpop.f32.mrb[0].mxu0
    %v1640 = vadd.f32 %v1261, %v1639
    %v1641 = vpop.f32.mrb[0].mxu0
    %v1642 = vand.u32 %v302, 4294901760
    %v1643 = vsub.f32 %v302, %v1642
    %1644 = vmatprep.mubr.f32.mxu0 %v1643
    %v1645 = vand.u32 %v301, 4294901760
    %v1646 = vsub.f32 %v301, %v1645
    %1647 = vmatmul.mubr.f32.gmra.mrb[0].mxu0 %v1646
    %v1648 = vpop.f32.mrb[0].mxu0
    %v1649 = vadd.f32 %v1268, %v1648
    %v1650 = vpop.f32.mrb[0].mxu0
    %v1651 = vand.u32 %v304, 4294901760
    %v1652 = vsub.f32 %v304, %v1651
    %1653 = vmatprep.mubr.f32.mxu0 %v1652
    %v1654 = vand.u32 %v303, 4294901760
    %v1655 = vsub.f32 %v303, %v1654
    %1656 = vmatmul.mubr.f32.gmra.mrb[0].mxu0 %v1655
    %v1657 = vpop.f32.mrb[0].mxu0
    %v1658 = vadd.f32 %v1275, %v1657
    %v1659 = vpop.f32.mrb[0].mxu0
    %v1660 = vand.u32 %v306, 4294901760
    %v1661 = vsub.f32 %v306, %v1660
    %1662 = vmatprep.mubr.f32.mxu0 %v1661
    %v1663 = vand.u32 %v305, 4294901760
    %v1664 = vsub.f32 %v305, %v1663
    %1665 = vmatmul.mubr.f32.gmra.mrb[0].mxu0 %v1664
    %v1666 = vpop.f32.mrb[0].mxu0
    %v1667 = vadd.f32 %v1282, %v1666
    %v1668 = vpop.f32.mrb[0].mxu0
    %v1669 = vand.u32 %v308, 4294901760
    %v1670 = vsub.f32 %v308, %v1669
    %1671 = vmatprep.mubr.f32.mxu0 %v1670
    %v1672 = vand.u32 %v307, 4294901760
    %v1673 = vsub.f32 %v307, %v1672
    %1674 = vmatmul.mubr.f32.gmra.mrb[0].mxu0 %v1673
    %v1675 = vpop.f32.mrb[0].mxu0
    %v1676 = vadd.f32 %v1289, %v1675
    %v1677 = vpop.f32.mrb[0].mxu0
    %v1678 = vand.u32 %v310, 4294901760
    %v1679 = vsub.f32 %v310, %v1678
    %1680 = vmatprep.mubr.f32.mxu0 %v1679
    %v1681 = vand.u32 %v309, 4294901760
    %v1682 = vsub.f32 %v309, %v1681
    %1683 = vmatmul.mubr.f32.gmra.mrb[0].mxu0 %v1682
    %v1684 = vpop.f32.mrb[0].mxu0
    %v1685 = vadd.f32 %v1296, %v1684
    %v1686 = vpop.f32.mrb[0].mxu0
    %v1687 = vand.u32 %v312, 4294901760
    %v1688 = vsub.f32 %v312, %v1687
    %1689 = vmatprep.mubr.f32.mxu0 %v1688
    %v1690 = vand.u32 %v311, 4294901760
    %v1691 = vsub.f32 %v311, %v1690
    %1692 = vmatmul.mubr.f32.gmra.mrb[0].mxu0 %v1691
    %v1693 = vpop.f32.mrb[0].mxu0
    %v1694 = vadd.f32 %v1303, %v1693
    %v1695 = vpop.f32.mrb[0].mxu0
    %v1696 = vand.u32 %v314, 4294901760
    %v1697 = vsub.f32 %v314, %v1696
    %1698 = vmatprep.mubr.f32.mxu0 %v1697
    %v1699 = vand.u32 %v313, 4294901760
    %v1700 = vsub.f32 %v313, %v1699
    %1701 = vmatmul.mubr.f32.gmra.mrb[0].mxu0 %v1700
    %v1702 = vpop.f32.mrb[0].mxu0
    %v1703 = vadd.f32 %v1310, %v1702
    %v1704 = vpop.f32.mrb[0].mxu0
    %v1705 = vand.u32 %v316, 4294901760
    %v1706 = vsub.f32 %v316, %v1705
    %1707 = vmatprep.mubr.f32.mxu0 %v1706
    %v1708 = vand.u32 %v315, 4294901760
    %v1709 = vsub.f32 %v315, %v1708
    %1710 = vmatmul.mubr.f32.gmra.mrb[0].mxu0 %v1709
    %v1711 = vpop.f32.mrb[0].mxu0
    %v1712 = vadd.f32 %v1317, %v1711
    %v1713 = vpop.f32.mrb[0].mxu0
    %v1714 = vand.u32 %v318, 4294901760
    %v1715 = vsub.f32 %v318, %v1714
    %1716 = vmatprep.mubr.f32.mxu0 %v1715
    %v1717 = vand.u32 %v317, 4294901760
    %v1718 = vsub.f32 %v317, %v1717
    %1719 = vmatmul.mubr.f32.gmra.mrb[0].mxu0 %v1718
    %v1720 = vpop.f32.mrb[0].mxu0
    %v1721 = vadd.f32 %v1324, %v1720
    %v1722 = vpop.f32.mrb[0].mxu0
    %v1723 = vand.u32 %v320, 4294901760
    %v1724 = vsub.f32 %v320, %v1723
    %1725 = vmatprep.mubr.f32.mxu0 %v1724
    %v1726 = vand.u32 %v319, 4294901760
    %v1727 = vsub.f32 %v319, %v1726
    %1728 = vmatmul.mubr.f32.gmra.mrb[0].mxu0 %v1727
    %v1729 = vpop.f32.mrb[0].mxu0
    %v1730 = vadd.f32 %v1331, %v1729
    %v1731 = vpop.f32.mrb[0].mxu0
    %v1732 = vand.u32 %v322, 4294901760
    %v1733 = vsub.f32 %v322, %v1732
    %1734 = vmatprep.mubr.f32.mxu0 %v1733
    %v1735 = vand.u32 %v321, 4294901760
    %v1736 = vsub.f32 %v321, %v1735
    %1737 = vmatmul.mubr.f32.gmra.mrb[0].mxu0 %v1736
    %v1738 = vpop.f32.mrb[0].mxu0
    %v1739 = vadd.f32 %v1338, %v1738
    %v1740 = vpop.f32.mrb[0].mxu0
    %v1741 = vand.u32 %v324, 4294901760
    %v1742 = vsub.f32 %v324, %v1741
    %1743 = vmatprep.mubr.f32.mxu0 %v1742
    %v1744 = vand.u32 %v323, 4294901760
    %v1745 = vsub.f32 %v323, %v1744
    %1746 = vmatmul.mubr.f32.gmra.mrb[0].mxu0 %v1745
    %v1747 = vpop.f32.mrb[0].mxu0
    %v1748 = vadd.f32 %v1345, %v1747
    %v1749 = vpop.f32.mrb[0].mxu0
    %v1750 = vand.u32 %v326, 4294901760
    %v1751 = vsub.f32 %v326, %v1750
    %1752 = vmatprep.mubr.f32.mxu0 %v1751
    %v1753 = vand.u32 %v325, 4294901760
    %v1754 = vsub.f32 %v325, %v1753
    %1755 = vmatmul.mubr.f32.gmra.mrb[0].mxu0 %v1754
    %v1756 = vpop.f32.mrb[0].mxu0
    %v1757 = vadd.f32 %v1352, %v1756
    %v1758 = vpop.f32.mrb[0].mxu0
    %v1759 = vand.u32 %v328, 4294901760
    %v1760 = vsub.f32 %v328, %v1759
    %1761 = vmatprep.mubr.f32.mxu0 %v1760
    %v1762 = vand.u32 %v327, 4294901760
    %v1763 = vsub.f32 %v327, %v1762
    %1764 = vmatmul.mubr.f32.gmra.mrb[0].mxu0 %v1763
    %v1765 = vpop.f32.mrb[0].mxu0
    %v1766 = vadd.f32 %v1359, %v1765
    %v1767 = vpop.f32.mrb[0].mxu0
    %v1768 = vand.u32 %v330, 4294901760
    %v1769 = vsub.f32 %v330, %v1768
    %1770 = vmatprep.mubr.f32.mxu0 %v1769
    %v1771 = vand.u32 %v329, 4294901760
    %v1772 = vsub.f32 %v329, %v1771
    %1773 = vmatmul.mubr.f32.gmra.mrb[0].mxu0 %v1772
    %v1774 = vpop.f32.mrb[0].mxu0
    %v1775 = vadd.f32 %v1366, %v1774
    %v1776 = vpop.f32.mrb[0].mxu0
    %v1777 = vand.u32 %v332, 4294901760
    %v1778 = vsub.f32 %v332, %v1777
    %1779 = vmatprep.mubr.f32.mxu0 %v1778
    %v1780 = vand.u32 %v331, 4294901760
    %v1781 = vsub.f32 %v331, %v1780
    %1782 = vmatmul.mubr.f32.gmra.mrb[0].mxu0 %v1781
    %v1783 = vpop.f32.mrb[0].mxu0
    %v1784 = vadd.f32 %v1373, %v1783
    %v1785 = vpop.f32.mrb[0].mxu0
    %v1786 = vand.u32 %v334, 4294901760
    %v1787 = vsub.f32 %v334, %v1786
    %1788 = vmatprep.mubr.f32.mxu0 %v1787
    %v1789 = vand.u32 %v333, 4294901760
    %v1790 = vsub.f32 %v333, %v1789
    %1791 = vmatmul.mubr.f32.gmra.mrb[0].mxu0 %v1790
    %v1792 = vpop.f32.mrb[0].mxu0
    %v1793 = vadd.f32 %v1380, %v1792
    %v1794 = vpop.f32.mrb[0].mxu0
    %v1795 = vand.u32 %v336, 4294901760
    %v1796 = vsub.f32 %v336, %v1795
    %1797 = vmatprep.mubr.f32.mxu0 %v1796
    %v1798 = vand.u32 %v335, 4294901760
    %v1799 = vsub.f32 %v335, %v1798
    %1800 = vmatmul.mubr.f32.gmra.mrb[0].mxu0 %v1799
    %v1801 = vpop.f32.mrb[0].mxu0
    %v1802 = vadd.f32 %v1387, %v1801
    %v1803 = vpop.f32.mrb[0].mxu0
    %v1804 = vand.u32 %v338, 4294901760
    %v1805 = vsub.f32 %v338, %v1804
    %1806 = vmatprep.mubr.f32.mxu0 %v1805
    %v1807 = vand.u32 %v337, 4294901760
    %v1808 = vsub.f32 %v337, %v1807
    %1809 = vmatmul.mubr.f32.gmra.mrb[0].mxu0 %v1808
    %v1810 = vpop.f32.mrb[0].mxu0
    %v1811 = vadd.f32 %v1394, %v1810
    %v1812 = vpop.f32.mrb[0].mxu0
    %1813 = vdwg.mxu0
    %1814 = vmatprep.subr.mxu0 0.0
    %v1815 = vand.u32 %v339, 4294901760
    %1816 = vmatpush1.msra.mxu0 %v1815
    %1817 = vmatprep.subr.mxu0 0.0
    %v1818 = vand.u32 %v340, 4294901760
    %1819 = vmatpush1.msra.mxu0 %v1818
    %1820 = vmatprep.subr.mxu0 0.0
    %v1821 = vand.u32 %v341, 4294901760
    %1822 = vmatpush1.msra.mxu0 %v1821
    %1823 = vmatprep.subr.mxu0 0.0
    %v1824 = vand.u32 %v342, 4294901760
    %1825 = vmatpush1.msra.mxu0 %v1824
    %1826 = vmatprep.subr.mxu0 0.0
    %v1827 = vand.u32 %v343, 4294901760
    %1828 = vmatpush1.msra.mxu0 %v1827
    %1829 = vmatprep.subr.mxu0 0.0
    %v1830 = vand.u32 %v344, 4294901760
    %1831 = vmatpush1.msra.mxu0 %v1830
    %1832 = vmatprep.subr.mxu0 0.0
    %v1833 = vand.u32 %v345, 4294901760
    %1834 = vmatpush1.msra.mxu0 %v1833
    %1835 = vmatprep.subr.mxu0 0.0
    %v1836 = vand.u32 %v346, 4294901760
    %1837 = vmatpush1.msra.mxu0 %v1836
    %1838 = vmatprep.subr.mxu0 0.0
    %v1839 = vand.u32 %v347, 4294901760
    %1840 = vmatpush1.msra.mxu0 %v1839
    %1841 = vmatprep.subr.mxu0 0.0
    %v1842 = vand.u32 %v348, 4294901760
    %1843 = vmatpush1.msra.mxu0 %v1842
    %1844 = vmatprep.subr.mxu0 0.0
    %v1845 = vand.u32 %v349, 4294901760
    %1846 = vmatpush1.msra.mxu0 %v1845
    %1847 = vmatprep.subr.mxu0 0.0
    %v1848 = vand.u32 %v350, 4294901760
    %1849 = vmatpush1.msra.mxu0 %v1848
    %1850 = vmatprep.subr.mxu0 0.0
    %v1851 = vand.u32 %v351, 4294901760
    %1852 = vmatpush1.msra.mxu0 %v1851
    %1853 = vmatprep.subr.mxu0 0.0
    %v1854 = vand.u32 %v352, 4294901760
    %1855 = vmatpush1.msra.mxu0 %v1854
    %1856 = vmatprep.subr.mxu0 0.0
    %v1857 = vand.u32 %v353, 4294901760
    %1858 = vmatpush1.msra.mxu0 %v1857
    %1859 = vmatprep.subr.mxu0 0.0
    %v1860 = vand.u32 %v354, 4294901760
    %1861 = vmatpush1.msra.mxu0 %v1860
    %1862 = vmatprep.subr.mxu0 0.0
    %v1863 = vand.u32 %v355, 4294901760
    %1864 = vmatpush1.msra.mxu0 %v1863
    %1865 = vmatprep.subr.mxu0 0.0
    %v1866 = vand.u32 %v356, 4294901760
    %1867 = vmatpush1.msra.mxu0 %v1866
    %1868 = vmatprep.subr.mxu0 0.0
    %v1869 = vand.u32 %v357, 4294901760
    %1870 = vmatpush1.msra.mxu0 %v1869
    %1871 = vmatprep.subr.mxu0 0.0
    %v1872 = vand.u32 %v358, 4294901760
    %1873 = vmatpush1.msra.mxu0 %v1872
    %1874 = vmatprep.subr.mxu0 0.0
    %v1875 = vand.u32 %v359, 4294901760
    %1876 = vmatpush1.msra.mxu0 %v1875
    %1877 = vmatprep.subr.mxu0 0.0
    %v1878 = vand.u32 %v360, 4294901760
    %1879 = vmatpush1.msra.mxu0 %v1878
    %1880 = vmatprep.subr.mxu0 0.0
    %v1881 = vand.u32 %v361, 4294901760
    %1882 = vmatpush1.msra.mxu0 %v1881
    %1883 = vmatprep.subr.mxu0 0.0
    %v1884 = vand.u32 %v362, 4294901760
    %1885 = vmatpush1.msra.mxu0 %v1884
    %1886 = vmatprep.subr.mxu0 0.0
    %v1887 = vand.u32 %v363, 4294901760
    %1888 = vmatpush1.msra.mxu0 %v1887
    %1889 = vmatprep.subr.mxu0 0.0
    %v1890 = vand.u32 %v364, 4294901760
    %1891 = vmatpush1.msra.mxu0 %v1890
    %1892 = vmatprep.subr.mxu0 0.0
    %v1893 = vand.u32 %v365, 4294901760
    %1894 = vmatpush1.msra.mxu0 %v1893
    %1895 = vmatprep.subr.mxu0 0.0
    %v1896 = vand.u32 %v366, 4294901760
    %1897 = vmatpush1.msra.mxu0 %v1896
    %1898 = vmatprep.subr.mxu0 0.0
    %v1899 = vand.u32 %v367, 4294901760
    %1900 = vmatpush1.msra.mxu0 %v1899
    %1901 = vmatprep.subr.mxu0 0.0
    %v1902 = vand.u32 %v368, 4294901760
    %1903 = vmatpush1.msra.mxu0 %v1902
    %1904 = vmatprep.subr.mxu0 0.0
    %v1905 = vand.u32 %v369, 4294901760
    %1906 = vmatpush1.msra.mxu0 %v1905
    %1907 = vmatprep.subr.mxu0 0.0
    %v1908 = vand.u32 %v370, 4294901760
    %1909 = vmatpush1.msra.mxu0 %v1908
    %v1910 = vand.u32 %v276, 4294901760
    %v1911 = vsub.f32 %v276, %v1910
    %v1912 = vand.u32 %v1911, 4294901760
    %1913 = vmatprep.mubr.f32.mxu0 %v1912
    %v1914 = vand.u32 %v275, 4294901760
    %v1915 = vsub.f32 %v275, %v1914
    %v1916 = vand.u32 %v1915, 4294901760
    %1917 = vmatmul.mubr.f32.gmra.mrb[0].mxu0 %v1916
    %v1918 = vpop.f32.mrb[0].mxu0
    %v1919 = vadd.f32 %v1532, %v1918
    %v1920 = vpop.f32.mrb[0].mxu0
    %v1921 = vand.u32 %v278, 4294901760
    %v1922 = vsub.f32 %v278, %v1921
    %v1923 = vand.u32 %v1922, 4294901760
    %1924 = vmatprep.mubr.f32.mxu0 %v1923
    %v1925 = vand.u32 %v277, 4294901760
    %v1926 = vsub.f32 %v277, %v1925
    %v1927 = vand.u32 %v1926, 4294901760
    %1928 = vmatmul.mubr.f32.gmra.mrb[0].mxu0 %v1927
    %v1929 = vpop.f32.mrb[0].mxu0
    %v1930 = vadd.f32 %v1541, %v1929
    %v1931 = vpop.f32.mrb[0].mxu0
    %v1932 = vand.u32 %v280, 4294901760
    %v1933 = vsub.f32 %v280, %v1932
    %v1934 = vand.u32 %v1933, 4294901760
    %1935 = vmatprep.mubr.f32.mxu0 %v1934
    %v1936 = vand.u32 %v279, 4294901760
    %v1937 = vsub.f32 %v279, %v1936
    %v1938 = vand.u32 %v1937, 4294901760
    %1939 = vmatmul.mubr.f32.gmra.mrb[0].mxu0 %v1938
    %v1940 = vpop.f32.mrb[0].mxu0
    %v1941 = vadd.f32 %v1550, %v1940
    %v1942 = vpop.f32.mrb[0].mxu0
    %v1943 = vand.u32 %v282, 4294901760
    %v1944 = vsub.f32 %v282, %v1943
    %v1945 = vand.u32 %v1944, 4294901760
    %1946 = vmatprep.mubr.f32.mxu0 %v1945
    %v1947 = vand.u32 %v281, 4294901760
    %v1948 = vsub.f32 %v281, %v1947
    %v1949 = vand.u32 %v1948, 4294901760
    %1950 = vmatmul.mubr.f32.gmra.mrb[0].mxu0 %v1949
    %v1951 = vpop.f32.mrb[0].mxu0
    %v1952 = vadd.f32 %v1559, %v1951
    %v1953 = vpop.f32.mrb[0].mxu0
    %v1954 = vand.u32 %v284, 4294901760
    %v1955 = vsub.f32 %v284, %v1954
    %v1956 = vand.u32 %v1955, 4294901760
    %1957 = vmatprep.mubr.f32.mxu0 %v1956
    %v1958 = vand.u32 %v283, 4294901760
    %v1959 = vsub.f32 %v283, %v1958
    %v1960 = vand.u32 %v1959, 4294901760
    %1961 = vmatmul.mubr.f32.gmra.mrb[0].mxu0 %v1960
    %v1962 = vpop.f32.mrb[0].mxu0
    %v1963 = vadd.f32 %v1568, %v1962
    %v1964 = vpop.f32.mrb[0].mxu0
    %v1965 = vand.u32 %v286, 4294901760
    %v1966 = vsub.f32 %v286, %v1965
    %v1967 = vand.u32 %v1966, 4294901760
    %1968 = vmatprep.mubr.f32.mxu0 %v1967
    %v1969 = vand.u32 %v285, 4294901760
    %v1970 = vsub.f32 %v285, %v1969
    %v1971 = vand.u32 %v1970, 4294901760
    %1972 = vmatmul.mubr.f32.gmra.mrb[0].mxu0 %v1971
    %v1973 = vpop.f32.mrb[0].mxu0
    %v1974 = vadd.f32 %v1577, %v1973
    %v1975 = vpop.f32.mrb[0].mxu0
    %v1976 = vand.u32 %v288, 4294901760
    %v1977 = vsub.f32 %v288, %v1976
    %v1978 = vand.u32 %v1977, 4294901760
    %1979 = vmatprep.mubr.f32.mxu0 %v1978
    %v1980 = vand.u32 %v287, 4294901760
    %v1981 = vsub.f32 %v287, %v1980
    %v1982 = vand.u32 %v1981, 4294901760
    %1983 = vmatmul.mubr.f32.gmra.mrb[0].mxu0 %v1982
    %v1984 = vpop.f32.mrb[0].mxu0
    %v1985 = vadd.f32 %v1586, %v1984
    %v1986 = vpop.f32.mrb[0].mxu0
    %v1987 = vand.u32 %v290, 4294901760
    %v1988 = vsub.f32 %v290, %v1987
    %v1989 = vand.u32 %v1988, 4294901760
    %1990 = vmatprep.mubr.f32.mxu0 %v1989
    %v1991 = vand.u32 %v289, 4294901760
    %v1992 = vsub.f32 %v289, %v1991
    %v1993 = vand.u32 %v1992, 4294901760
    %1994 = vmatmul.mubr.f32.gmra.mrb[0].mxu0 %v1993
    %v1995 = vpop.f32.mrb[0].mxu0
    %v1996 = vadd.f32 %v1595, %v1995
    %v1997 = vpop.f32.mrb[0].mxu0
    %v1998 = vand.u32 %v292, 4294901760
    %v1999 = vsub.f32 %v292, %v1998
    %v2000 = vand.u32 %v1999, 4294901760
    %2001 = vmatprep.mubr.f32.mxu0 %v2000
    %v2002 = vand.u32 %v291, 4294901760
    %v2003 = vsub.f32 %v291, %v2002
    %v2004 = vand.u32 %v2003, 4294901760
    %2005 = vmatmul.mubr.f32.gmra.mrb[0].mxu0 %v2004
    %v2006 = vpop.f32.mrb[0].mxu0
    %v2007 = vadd.f32 %v1604, %v2006
    %v2008 = vpop.f32.mrb[0].mxu0
    %v2009 = vand.u32 %v294, 4294901760
    %v2010 = vsub.f32 %v294, %v2009
    %v2011 = vand.u32 %v2010, 4294901760
    %2012 = vmatprep.mubr.f32.mxu0 %v2011
    %v2013 = vand.u32 %v293, 4294901760
    %v2014 = vsub.f32 %v293, %v2013
    %v2015 = vand.u32 %v2014, 4294901760
    %2016 = vmatmul.mubr.f32.gmra.mrb[0].mxu0 %v2015
    %v2017 = vpop.f32.mrb[0].mxu0
    %v2018 = vadd.f32 %v1613, %v2017
    %v2019 = vpop.f32.mrb[0].mxu0
    %v2020 = vand.u32 %v296, 4294901760
    %v2021 = vsub.f32 %v296, %v2020
    %v2022 = vand.u32 %v2021, 4294901760
    %2023 = vmatprep.mubr.f32.mxu0 %v2022
    %v2024 = vand.u32 %v295, 4294901760
    %v2025 = vsub.f32 %v295, %v2024
    %v2026 = vand.u32 %v2025, 4294901760
    %2027 = vmatmul.mubr.f32.gmra.mrb[0].mxu0 %v2026
    %v2028 = vpop.f32.mrb[0].mxu0
    %v2029 = vadd.f32 %v1622, %v2028
    %v2030 = vpop.f32.mrb[0].mxu0
    %v2031 = vand.u32 %v298, 4294901760
    %v2032 = vsub.f32 %v298, %v2031
    %v2033 = vand.u32 %v2032, 4294901760
    %2034 = vmatprep.mubr.f32.mxu0 %v2033
    %v2035 = vand.u32 %v297, 4294901760
    %v2036 = vsub.f32 %v297, %v2035
    %v2037 = vand.u32 %v2036, 4294901760
    %2038 = vmatmul.mubr.f32.gmra.mrb[0].mxu0 %v2037
    %v2039 = vpop.f32.mrb[0].mxu0
    %v2040 = vadd.f32 %v1631, %v2039
    %v2041 = vpop.f32.mrb[0].mxu0
    %v2042 = vand.u32 %v300, 4294901760
    %v2043 = vsub.f32 %v300, %v2042
    %v2044 = vand.u32 %v2043, 4294901760
    %2045 = vmatprep.mubr.f32.mxu0 %v2044
    %v2046 = vand.u32 %v299, 4294901760
    %v2047 = vsub.f32 %v299, %v2046
    %v2048 = vand.u32 %v2047, 4294901760
    %2049 = vmatmul.mubr.f32.gmra.mrb[0].mxu0 %v2048
    %v2050 = vpop.f32.mrb[0].mxu0
    %v2051 = vadd.f32 %v1640, %v2050
    %v2052 = vpop.f32.mrb[0].mxu0
    %v2053 = vand.u32 %v302, 4294901760
    %v2054 = vsub.f32 %v302, %v2053
    %v2055 = vand.u32 %v2054, 4294901760
    %2056 = vmatprep.mubr.f32.mxu0 %v2055
    %v2057 = vand.u32 %v301, 4294901760
    %v2058 = vsub.f32 %v301, %v2057
    %v2059 = vand.u32 %v2058, 4294901760
    %2060 = vmatmul.mubr.f32.gmra.mrb[0].mxu0 %v2059
    %v2061 = vpop.f32.mrb[0].mxu0
    %v2062 = vadd.f32 %v1649, %v2061
    %v2063 = vpop.f32.mrb[0].mxu0
    %v2064 = vand.u32 %v304, 4294901760
    %v2065 = vsub.f32 %v304, %v2064
    %v2066 = vand.u32 %v2065, 4294901760
    %2067 = vmatprep.mubr.f32.mxu0 %v2066
    %v2068 = vand.u32 %v303, 4294901760
    %v2069 = vsub.f32 %v303, %v2068
    %v2070 = vand.u32 %v2069, 4294901760
    %2071 = vmatmul.mubr.f32.gmra.mrb[0].mxu0 %v2070
    %v2072 = vpop.f32.mrb[0].mxu0
    %v2073 = vadd.f32 %v1658, %v2072
    %v2074 = vpop.f32.mrb[0].mxu0
    %v2075 = vand.u32 %v306, 4294901760
    %v2076 = vsub.f32 %v306, %v2075
    %v2077 = vand.u32 %v2076, 4294901760
    %2078 = vmatprep.mubr.f32.mxu0 %v2077
    %v2079 = vand.u32 %v305, 4294901760
    %v2080 = vsub.f32 %v305, %v2079
    %v2081 = vand.u32 %v2080, 4294901760
    %2082 = vmatmul.mubr.f32.gmra.mrb[0].mxu0 %v2081
    %v2083 = vpop.f32.mrb[0].mxu0
    %v2084 = vadd.f32 %v1667, %v2083
    %v2085 = vpop.f32.mrb[0].mxu0
    %v2086 = vand.u32 %v308, 4294901760
    %v2087 = vsub.f32 %v308, %v2086
    %v2088 = vand.u32 %v2087, 4294901760
    %2089 = vmatprep.mubr.f32.mxu0 %v2088
    %v2090 = vand.u32 %v307, 4294901760
    %v2091 = vsub.f32 %v307, %v2090
    %v2092 = vand.u32 %v2091, 4294901760
    %2093 = vmatmul.mubr.f32.gmra.mrb[0].mxu0 %v2092
    %v2094 = vpop.f32.mrb[0].mxu0
    %v2095 = vadd.f32 %v1676, %v2094
    %v2096 = vpop.f32.mrb[0].mxu0
    %v2097 = vand.u32 %v310, 4294901760
    %v2098 = vsub.f32 %v310, %v2097
    %v2099 = vand.u32 %v2098, 4294901760
    %2100 = vmatprep.mubr.f32.mxu0 %v2099
    %v2101 = vand.u32 %v309, 4294901760
    %v2102 = vsub.f32 %v309, %v2101
    %v2103 = vand.u32 %v2102, 4294901760
    %2104 = vmatmul.mubr.f32.gmra.mrb[0].mxu0 %v2103
    %v2105 = vpop.f32.mrb[0].mxu0
    %v2106 = vadd.f32 %v1685, %v2105
    %v2107 = vpop.f32.mrb[0].mxu0
    %v2108 = vand.u32 %v312, 4294901760
    %v2109 = vsub.f32 %v312, %v2108
    %v2110 = vand.u32 %v2109, 4294901760
    %2111 = vmatprep.mubr.f32.mxu0 %v2110
    %v2112 = vand.u32 %v311, 4294901760
    %v2113 = vsub.f32 %v311, %v2112
    %v2114 = vand.u32 %v2113, 4294901760
    %2115 = vmatmul.mubr.f32.gmra.mrb[0].mxu0 %v2114
    %v2116 = vpop.f32.mrb[0].mxu0
    %v2117 = vadd.f32 %v1694, %v2116
    %v2118 = vpop.f32.mrb[0].mxu0
    %v2119 = vand.u32 %v314, 4294901760
    %v2120 = vsub.f32 %v314, %v2119
    %v2121 = vand.u32 %v2120, 4294901760
    %2122 = vmatprep.mubr.f32.mxu0 %v2121
    %v2123 = vand.u32 %v313, 4294901760
    %v2124 = vsub.f32 %v313, %v2123
    %v2125 = vand.u32 %v2124, 4294901760
    %2126 = vmatmul.mubr.f32.gmra.mrb[0].mxu0 %v2125
    %v2127 = vpop.f32.mrb[0].mxu0
    %v2128 = vadd.f32 %v1703, %v2127
    %v2129 = vpop.f32.mrb[0].mxu0
    %v2130 = vand.u32 %v316, 4294901760
    %v2131 = vsub.f32 %v316, %v2130
    %v2132 = vand.u32 %v2131, 4294901760
    %2133 = vmatprep.mubr.f32.mxu0 %v2132
    %v2134 = vand.u32 %v315, 4294901760
    %v2135 = vsub.f32 %v315, %v2134
    %v2136 = vand.u32 %v2135, 4294901760
    %2137 = vmatmul.mubr.f32.gmra.mrb[0].mxu0 %v2136
    %v2138 = vpop.f32.mrb[0].mxu0
    %v2139 = vadd.f32 %v1712, %v2138
    %v2140 = vpop.f32.mrb[0].mxu0
    %v2141 = vand.u32 %v318, 4294901760
    %v2142 = vsub.f32 %v318, %v2141
    %v2143 = vand.u32 %v2142, 4294901760
    %2144 = vmatprep.mubr.f32.mxu0 %v2143
    %v2145 = vand.u32 %v317, 4294901760
    %v2146 = vsub.f32 %v317, %v2145
    %v2147 = vand.u32 %v2146, 4294901760
    %2148 = vmatmul.mubr.f32.gmra.mrb[0].mxu0 %v2147
    %v2149 = vpop.f32.mrb[0].mxu0
    %v2150 = vadd.f32 %v1721, %v2149
    %v2151 = vpop.f32.mrb[0].mxu0
    %v2152 = vand.u32 %v320, 4294901760
    %v2153 = vsub.f32 %v320, %v2152
    %v2154 = vand.u32 %v2153, 4294901760
    %2155 = vmatprep.mubr.f32.mxu0 %v2154
    %v2156 = vand.u32 %v319, 4294901760
    %v2157 = vsub.f32 %v319, %v2156
    %v2158 = vand.u32 %v2157, 4294901760
    %2159 = vmatmul.mubr.f32.gmra.mrb[0].mxu0 %v2158
    %v2160 = vpop.f32.mrb[0].mxu0
    %v2161 = vadd.f32 %v1730, %v2160
    %v2162 = vpop.f32.mrb[0].mxu0
    %v2163 = vand.u32 %v322, 4294901760
    %v2164 = vsub.f32 %v322, %v2163
    %v2165 = vand.u32 %v2164, 4294901760
    %2166 = vmatprep.mubr.f32.mxu0 %v2165
    %v2167 = vand.u32 %v321, 4294901760
    %v2168 = vsub.f32 %v321, %v2167
    %v2169 = vand.u32 %v2168, 4294901760
    %2170 = vmatmul.mubr.f32.gmra.mrb[0].mxu0 %v2169
    %v2171 = vpop.f32.mrb[0].mxu0
    %v2172 = vadd.f32 %v1739, %v2171
    %v2173 = vpop.f32.mrb[0].mxu0
    %v2174 = vand.u32 %v324, 4294901760
    %v2175 = vsub.f32 %v324, %v2174
    %v2176 = vand.u32 %v2175, 4294901760
    %2177 = vmatprep.mubr.f32.mxu0 %v2176
    %v2178 = vand.u32 %v323, 4294901760
    %v2179 = vsub.f32 %v323, %v2178
    %v2180 = vand.u32 %v2179, 4294901760
    %2181 = vmatmul.mubr.f32.gmra.mrb[0].mxu0 %v2180
    %v2182 = vpop.f32.mrb[0].mxu0
    %v2183 = vadd.f32 %v1748, %v2182
    %v2184 = vpop.f32.mrb[0].mxu0
    %v2185 = vand.u32 %v326, 4294901760
    %v2186 = vsub.f32 %v326, %v2185
    %v2187 = vand.u32 %v2186, 4294901760
    %2188 = vmatprep.mubr.f32.mxu0 %v2187
    %v2189 = vand.u32 %v325, 4294901760
    %v2190 = vsub.f32 %v325, %v2189
    %v2191 = vand.u32 %v2190, 4294901760
    %2192 = vmatmul.mubr.f32.gmra.mrb[0].mxu0 %v2191
    %v2193 = vpop.f32.mrb[0].mxu0
    %v2194 = vadd.f32 %v1757, %v2193
    %v2195 = vpop.f32.mrb[0].mxu0
    %v2196 = vand.u32 %v328, 4294901760
    %v2197 = vsub.f32 %v328, %v2196
    %v2198 = vand.u32 %v2197, 4294901760
    %2199 = vmatprep.mubr.f32.mxu0 %v2198
    %v2200 = vand.u32 %v327, 4294901760
    %v2201 = vsub.f32 %v327, %v2200
    %v2202 = vand.u32 %v2201, 4294901760
    %2203 = vmatmul.mubr.f32.gmra.mrb[0].mxu0 %v2202
    %v2204 = vpop.f32.mrb[0].mxu0
    %v2205 = vadd.f32 %v1766, %v2204
    %v2206 = vpop.f32.mrb[0].mxu0
    %v2207 = vand.u32 %v330, 4294901760
    %v2208 = vsub.f32 %v330, %v2207
    %v2209 = vand.u32 %v2208, 4294901760
    %2210 = vmatprep.mubr.f32.mxu0 %v2209
    %v2211 = vand.u32 %v329, 4294901760
    %v2212 = vsub.f32 %v329, %v2211
    %v2213 = vand.u32 %v2212, 4294901760
    %2214 = vmatmul.mubr.f32.gmra.mrb[0].mxu0 %v2213
    %v2215 = vpop.f32.mrb[0].mxu0
    %v2216 = vadd.f32 %v1775, %v2215
    %v2217 = vpop.f32.mrb[0].mxu0
    %v2218 = vand.u32 %v332, 4294901760
    %v2219 = vsub.f32 %v332, %v2218
    %v2220 = vand.u32 %v2219, 4294901760
    %2221 = vmatprep.mubr.f32.mxu0 %v2220
    %v2222 = vand.u32 %v331, 4294901760
    %v2223 = vsub.f32 %v331, %v2222
    %v2224 = vand.u32 %v2223, 4294901760
    %2225 = vmatmul.mubr.f32.gmra.mrb[0].mxu0 %v2224
    %v2226 = vpop.f32.mrb[0].mxu0
    %v2227 = vadd.f32 %v1784, %v2226
    %v2228 = vpop.f32.mrb[0].mxu0
    %v2229 = vand.u32 %v334, 4294901760
    %v2230 = vsub.f32 %v334, %v2229
    %v2231 = vand.u32 %v2230, 4294901760
    %2232 = vmatprep.mubr.f32.mxu0 %v2231
    %v2233 = vand.u32 %v333, 4294901760
    %v2234 = vsub.f32 %v333, %v2233
    %v2235 = vand.u32 %v2234, 4294901760
    %2236 = vmatmul.mubr.f32.gmra.mrb[0].mxu0 %v2235
    %v2237 = vpop.f32.mrb[0].mxu0
    %v2238 = vadd.f32 %v1793, %v2237
    %v2239 = vpop.f32.mrb[0].mxu0
    %v2240 = vand.u32 %v336, 4294901760
    %v2241 = vsub.f32 %v336, %v2240
    %v2242 = vand.u32 %v2241, 4294901760
    %2243 = vmatprep.mubr.f32.mxu0 %v2242
    %v2244 = vand.u32 %v335, 4294901760
    %v2245 = vsub.f32 %v335, %v2244
    %v2246 = vand.u32 %v2245, 4294901760
    %2247 = vmatmul.mubr.f32.gmra.mrb[0].mxu0 %v2246
    %v2248 = vpop.f32.mrb[0].mxu0
    %v2249 = vadd.f32 %v1802, %v2248
    %v2250 = vpop.f32.mrb[0].mxu0
    %v2251 = vand.u32 %v338, 4294901760
    %v2252 = vsub.f32 %v338, %v2251
    %v2253 = vand.u32 %v2252, 4294901760
    %2254 = vmatprep.mubr.f32.mxu0 %v2253
    %v2255 = vand.u32 %v337, 4294901760
    %v2256 = vsub.f32 %v337, %v2255
    %v2257 = vand.u32 %v2256, 4294901760
    %2258 = vmatmul.mubr.f32.gmra.mrb[0].mxu0 %v2257
    %v2259 = vpop.f32.mrb[0].mxu0
    %v2260 = vadd.f32 %v1811, %v2259
    %v2261 = vpop.f32.mrb[0].mxu0
    %2262 = vdwg.mxu0
    %2263 = vmatprep.subr.mxu0 0.0
    %v2264 = vand.u32 %v339, 4294901760
    %v2265 = vsub.f32 %v339, %v2264
    %v2266 = vand.u32 %v2265, 4294901760
    %2267 = vmatpush1.msra.mxu0 %v2266
    %2268 = vmatprep.subr.mxu0 0.0
    %v2269 = vand.u32 %v340, 4294901760
    %v2270 = vsub.f32 %v340, %v2269
    %v2271 = vand.u32 %v2270, 4294901760
    %2272 = vmatpush1.msra.mxu0 %v2271
    %2273 = vmatprep.subr.mxu0 0.0
    %v2274 = vand.u32 %v341, 4294901760
    %v2275 = vsub.f32 %v341, %v2274
    %v2276 = vand.u32 %v2275, 4294901760
    %2277 = vmatpush1.msra.mxu0 %v2276
    %2278 = vmatprep.subr.mxu0 0.0
    %v2279 = vand.u32 %v342, 4294901760
    %v2280 = vsub.f32 %v342, %v2279
    %v2281 = vand.u32 %v2280, 4294901760
    %2282 = vmatpush1.msra.mxu0 %v2281
    %2283 = vmatprep.subr.mxu0 0.0
    %v2284 = vand.u32 %v343, 4294901760
    %v2285 = vsub.f32 %v343, %v2284
    %v2286 = vand.u32 %v2285, 4294901760
    %2287 = vmatpush1.msra.mxu0 %v2286
    %2288 = vmatprep.subr.mxu0 0.0
    %v2289 = vand.u32 %v344, 4294901760
    %v2290 = vsub.f32 %v344, %v2289
    %v2291 = vand.u32 %v2290, 4294901760
    %2292 = vmatpush1.msra.mxu0 %v2291
    %2293 = vmatprep.subr.mxu0 0.0
    %v2294 = vand.u32 %v345, 4294901760
    %v2295 = vsub.f32 %v345, %v2294
    %v2296 = vand.u32 %v2295, 4294901760
    %2297 = vmatpush1.msra.mxu0 %v2296
    %2298 = vmatprep.subr.mxu0 0.0
    %v2299 = vand.u32 %v346, 4294901760
    %v2300 = vsub.f32 %v346, %v2299
    %v2301 = vand.u32 %v2300, 4294901760
    %2302 = vmatpush1.msra.mxu0 %v2301
    %2303 = vmatprep.subr.mxu0 0.0
    %v2304 = vand.u32 %v347, 4294901760
    %v2305 = vsub.f32 %v347, %v2304
    %v2306 = vand.u32 %v2305, 4294901760
    %2307 = vmatpush1.msra.mxu0 %v2306
    %2308 = vmatprep.subr.mxu0 0.0
    %v2309 = vand.u32 %v348, 4294901760
    %v2310 = vsub.f32 %v348, %v2309
    %v2311 = vand.u32 %v2310, 4294901760
    %2312 = vmatpush1.msra.mxu0 %v2311
    %2313 = vmatprep.subr.mxu0 0.0
    %v2314 = vand.u32 %v349, 4294901760
    %v2315 = vsub.f32 %v349, %v2314
    %v2316 = vand.u32 %v2315, 4294901760
    %2317 = vmatpush1.msra.mxu0 %v2316
    %2318 = vmatprep.subr.mxu0 0.0
    %v2319 = vand.u32 %v350, 4294901760
    %v2320 = vsub.f32 %v350, %v2319
    %v2321 = vand.u32 %v2320, 4294901760
    %2322 = vmatpush1.msra.mxu0 %v2321
    %2323 = vmatprep.subr.mxu0 0.0
    %v2324 = vand.u32 %v351, 4294901760
    %v2325 = vsub.f32 %v351, %v2324
    %v2326 = vand.u32 %v2325, 4294901760
    %2327 = vmatpush1.msra.mxu0 %v2326
    %2328 = vmatprep.subr.mxu0 0.0
    %v2329 = vand.u32 %v352, 4294901760
    %v2330 = vsub.f32 %v352, %v2329
    %v2331 = vand.u32 %v2330, 4294901760
    %2332 = vmatpush1.msra.mxu0 %v2331
    %2333 = vmatprep.subr.mxu0 0.0
    %v2334 = vand.u32 %v353, 4294901760
    %v2335 = vsub.f32 %v353, %v2334
    %v2336 = vand.u32 %v2335, 4294901760
    %2337 = vmatpush1.msra.mxu0 %v2336
    %2338 = vmatprep.subr.mxu0 0.0
    %v2339 = vand.u32 %v354, 4294901760
    %v2340 = vsub.f32 %v354, %v2339
    %v2341 = vand.u32 %v2340, 4294901760
    %2342 = vmatpush1.msra.mxu0 %v2341
    %2343 = vmatprep.subr.mxu0 0.0
    %v2344 = vand.u32 %v355, 4294901760
    %v2345 = vsub.f32 %v355, %v2344
    %v2346 = vand.u32 %v2345, 4294901760
    %2347 = vmatpush1.msra.mxu0 %v2346
    %2348 = vmatprep.subr.mxu0 0.0
    %v2349 = vand.u32 %v356, 4294901760
    %v2350 = vsub.f32 %v356, %v2349
    %v2351 = vand.u32 %v2350, 4294901760
    %2352 = vmatpush1.msra.mxu0 %v2351
    %2353 = vmatprep.subr.mxu0 0.0
    %v2354 = vand.u32 %v357, 4294901760
    %v2355 = vsub.f32 %v357, %v2354
    %v2356 = vand.u32 %v2355, 4294901760
    %2357 = vmatpush1.msra.mxu0 %v2356
    %2358 = vmatprep.subr.mxu0 0.0
    %v2359 = vand.u32 %v358, 4294901760
    %v2360 = vsub.f32 %v358, %v2359
    %v2361 = vand.u32 %v2360, 4294901760
    %2362 = vmatpush1.msra.mxu0 %v2361
    %2363 = vmatprep.subr.mxu0 0.0
    %v2364 = vand.u32 %v359, 4294901760
    %v2365 = vsub.f32 %v359, %v2364
    %v2366 = vand.u32 %v2365, 4294901760
    %2367 = vmatpush1.msra.mxu0 %v2366
    %2368 = vmatprep.subr.mxu0 0.0
    %v2369 = vand.u32 %v360, 4294901760
    %v2370 = vsub.f32 %v360, %v2369
    %v2371 = vand.u32 %v2370, 4294901760
    %2372 = vmatpush1.msra.mxu0 %v2371
    %2373 = vmatprep.subr.mxu0 0.0
    %v2374 = vand.u32 %v361, 4294901760
    %v2375 = vsub.f32 %v361, %v2374
    %v2376 = vand.u32 %v2375, 4294901760
    %2377 = vmatpush1.msra.mxu0 %v2376
    %2378 = vmatprep.subr.mxu0 0.0
    %v2379 = vand.u32 %v362, 4294901760
    %v2380 = vsub.f32 %v362, %v2379
    %v2381 = vand.u32 %v2380, 4294901760
    %2382 = vmatpush1.msra.mxu0 %v2381
    %2383 = vmatprep.subr.mxu0 0.0
    %v2384 = vand.u32 %v363, 4294901760
    %v2385 = vsub.f32 %v363, %v2384
    %v2386 = vand.u32 %v2385, 4294901760
    %2387 = vmatpush1.msra.mxu0 %v2386
    %2388 = vmatprep.subr.mxu0 0.0
    %v2389 = vand.u32 %v364, 4294901760
    %v2390 = vsub.f32 %v364, %v2389
    %v2391 = vand.u32 %v2390, 4294901760
    %2392 = vmatpush1.msra.mxu0 %v2391
    %2393 = vmatprep.subr.mxu0 0.0
    %v2394 = vand.u32 %v365, 4294901760
    %v2395 = vsub.f32 %v365, %v2394
    %v2396 = vand.u32 %v2395, 4294901760
    %2397 = vmatpush1.msra.mxu0 %v2396
    %2398 = vmatprep.subr.mxu0 0.0
    %v2399 = vand.u32 %v366, 4294901760
    %v2400 = vsub.f32 %v366, %v2399
    %v2401 = vand.u32 %v2400, 4294901760
    %2402 = vmatpush1.msra.mxu0 %v2401
    %2403 = vmatprep.subr.mxu0 0.0
    %v2404 = vand.u32 %v367, 4294901760
    %v2405 = vsub.f32 %v367, %v2404
    %v2406 = vand.u32 %v2405, 4294901760
    %2407 = vmatpush1.msra.mxu0 %v2406
    %2408 = vmatprep.subr.mxu0 0.0
    %v2409 = vand.u32 %v368, 4294901760
    %v2410 = vsub.f32 %v368, %v2409
    %v2411 = vand.u32 %v2410, 4294901760
    %2412 = vmatpush1.msra.mxu0 %v2411
    %2413 = vmatprep.subr.mxu0 0.0
    %v2414 = vand.u32 %v369, 4294901760
    %v2415 = vsub.f32 %v369, %v2414
    %v2416 = vand.u32 %v2415, 4294901760
    %2417 = vmatpush1.msra.mxu0 %v2416
    %2418 = vmatprep.subr.mxu0 0.0
    %v2419 = vand.u32 %v370, 4294901760
    %v2420 = vsub.f32 %v370, %v2419
    %v2421 = vand.u32 %v2420, 4294901760
    %2422 = vmatpush1.msra.mxu0 %v2421
    %v2423 = vand.u32 %v276, 4294901760
    %2424 = vmatprep.mubr.f32.mxu0 %v2423
    %v2425 = vand.u32 %v275, 4294901760
    %2426 = vmatmul.mubr.f32.gmra.mrb[0].mxu0 %v2425
    %v2427 = vpop.f32.mrb[0].mxu0
    %v2428 = vadd.f32 %v1919, %v2427
    %v2429 = vpop.f32.mrb[0].mxu0
    %v2430 = vand.u32 %v278, 4294901760
    %2431 = vmatprep.mubr.f32.mxu0 %v2430
    %v2432 = vand.u32 %v277, 4294901760
    %2433 = vmatmul.mubr.f32.gmra.mrb[0].mxu0 %v2432
    %v2434 = vpop.f32.mrb[0].mxu0
    %v2435 = vadd.f32 %v1930, %v2434
    %v2436 = vpop.f32.mrb[0].mxu0
    %v2437 = vand.u32 %v280, 4294901760
    %2438 = vmatprep.mubr.f32.mxu0 %v2437
    %v2439 = vand.u32 %v279, 4294901760
    %2440 = vmatmul.mubr.f32.gmra.mrb[0].mxu0 %v2439
    %v2441 = vpop.f32.mrb[0].mxu0
    %v2442 = vadd.f32 %v1941, %v2441
    %v2443 = vpop.f32.mrb[0].mxu0
    %v2444 = vand.u32 %v282, 4294901760
    %2445 = vmatprep.mubr.f32.mxu0 %v2444
    %v2446 = vand.u32 %v281, 4294901760
    %2447 = vmatmul.mubr.f32.gmra.mrb[0].mxu0 %v2446
    %v2448 = vpop.f32.mrb[0].mxu0
    %v2449 = vadd.f32 %v1952, %v2448
    %v2450 = vpop.f32.mrb[0].mxu0
    %v2451 = vand.u32 %v284, 4294901760
    %2452 = vmatprep.mubr.f32.mxu0 %v2451
    %v2453 = vand.u32 %v283, 4294901760
    %2454 = vmatmul.mubr.f32.gmra.mrb[0].mxu0 %v2453
    %v2455 = vpop.f32.mrb[0].mxu0
    %v2456 = vadd.f32 %v1963, %v2455
    %v2457 = vpop.f32.mrb[0].mxu0
    %v2458 = vand.u32 %v286, 4294901760
    %2459 = vmatprep.mubr.f32.mxu0 %v2458
    %v2460 = vand.u32 %v285, 4294901760
    %2461 = vmatmul.mubr.f32.gmra.mrb[0].mxu0 %v2460
    %v2462 = vpop.f32.mrb[0].mxu0
    %v2463 = vadd.f32 %v1974, %v2462
    %v2464 = vpop.f32.mrb[0].mxu0
    %v2465 = vand.u32 %v288, 4294901760
    %2466 = vmatprep.mubr.f32.mxu0 %v2465
    %v2467 = vand.u32 %v287, 4294901760
    %2468 = vmatmul.mubr.f32.gmra.mrb[0].mxu0 %v2467
    %v2469 = vpop.f32.mrb[0].mxu0
    %v2470 = vadd.f32 %v1985, %v2469
    %v2471 = vpop.f32.mrb[0].mxu0
    %v2472 = vand.u32 %v290, 4294901760
    %2473 = vmatprep.mubr.f32.mxu0 %v2472
    %v2474 = vand.u32 %v289, 4294901760
    %2475 = vmatmul.mubr.f32.gmra.mrb[0].mxu0 %v2474
    %v2476 = vpop.f32.mrb[0].mxu0
    %v2477 = vadd.f32 %v1996, %v2476
    %v2478 = vpop.f32.mrb[0].mxu0
    %v2479 = vand.u32 %v292, 4294901760
    %2480 = vmatprep.mubr.f32.mxu0 %v2479
    %v2481 = vand.u32 %v291, 4294901760
    %2482 = vmatmul.mubr.f32.gmra.mrb[0].mxu0 %v2481
    %v2483 = vpop.f32.mrb[0].mxu0
    %v2484 = vadd.f32 %v2007, %v2483
    %v2485 = vpop.f32.mrb[0].mxu0
    %v2486 = vand.u32 %v294, 4294901760
    %2487 = vmatprep.mubr.f32.mxu0 %v2486
    %v2488 = vand.u32 %v293, 4294901760
    %2489 = vmatmul.mubr.f32.gmra.mrb[0].mxu0 %v2488
    %v2490 = vpop.f32.mrb[0].mxu0
    %v2491 = vadd.f32 %v2018, %v2490
    %v2492 = vpop.f32.mrb[0].mxu0
    %v2493 = vand.u32 %v296, 4294901760
    %2494 = vmatprep.mubr.f32.mxu0 %v2493
    %v2495 = vand.u32 %v295, 4294901760
    %2496 = vmatmul.mubr.f32.gmra.mrb[0].mxu0 %v2495
    %v2497 = vpop.f32.mrb[0].mxu0
    %v2498 = vadd.f32 %v2029, %v2497
    %v2499 = vpop.f32.mrb[0].mxu0
    %v2500 = vand.u32 %v298, 4294901760
    %2501 = vmatprep.mubr.f32.mxu0 %v2500
    %v2502 = vand.u32 %v297, 4294901760
    %2503 = vmatmul.mubr.f32.gmra.mrb[0].mxu0 %v2502
    %v2504 = vpop.f32.mrb[0].mxu0
    %v2505 = vadd.f32 %v2040, %v2504
    %v2506 = vpop.f32.mrb[0].mxu0
    %v2507 = vand.u32 %v300, 4294901760
    %2508 = vmatprep.mubr.f32.mxu0 %v2507
    %v2509 = vand.u32 %v299, 4294901760
    %2510 = vmatmul.mubr.f32.gmra.mrb[0].mxu0 %v2509
    %v2511 = vpop.f32.mrb[0].mxu0
    %v2512 = vadd.f32 %v2051, %v2511
    %v2513 = vpop.f32.mrb[0].mxu0
    %v2514 = vand.u32 %v302, 4294901760
    %2515 = vmatprep.mubr.f32.mxu0 %v2514
    %v2516 = vand.u32 %v301, 4294901760
    %2517 = vmatmul.mubr.f32.gmra.mrb[0].mxu0 %v2516
    %v2518 = vpop.f32.mrb[0].mxu0
    %v2519 = vadd.f32 %v2062, %v2518
    %v2520 = vpop.f32.mrb[0].mxu0
    %v2521 = vand.u32 %v304, 4294901760
    %2522 = vmatprep.mubr.f32.mxu0 %v2521
    %v2523 = vand.u32 %v303, 4294901760
    %2524 = vmatmul.mubr.f32.gmra.mrb[0].mxu0 %v2523
    %v2525 = vpop.f32.mrb[0].mxu0
    %v2526 = vadd.f32 %v2073, %v2525
    %v2527 = vpop.f32.mrb[0].mxu0
    %v2528 = vand.u32 %v306, 4294901760
    %2529 = vmatprep.mubr.f32.mxu0 %v2528
    %v2530 = vand.u32 %v305, 4294901760
    %2531 = vmatmul.mubr.f32.gmra.mrb[0].mxu0 %v2530
    %v2532 = vpop.f32.mrb[0].mxu0
    %v2533 = vadd.f32 %v2084, %v2532
    %v2534 = vpop.f32.mrb[0].mxu0
    %v2535 = vand.u32 %v308, 4294901760
    %2536 = vmatprep.mubr.f32.mxu0 %v2535
    %v2537 = vand.u32 %v307, 4294901760
    %2538 = vmatmul.mubr.f32.gmra.mrb[0].mxu0 %v2537
    %v2539 = vpop.f32.mrb[0].mxu0
    %v2540 = vadd.f32 %v2095, %v2539
    %v2541 = vpop.f32.mrb[0].mxu0
    %v2542 = vand.u32 %v310, 4294901760
    %2543 = vmatprep.mubr.f32.mxu0 %v2542
    %v2544 = vand.u32 %v309, 4294901760
    %2545 = vmatmul.mubr.f32.gmra.mrb[0].mxu0 %v2544
    %v2546 = vpop.f32.mrb[0].mxu0
    %v2547 = vadd.f32 %v2106, %v2546
    %v2548 = vpop.f32.mrb[0].mxu0
    %v2549 = vand.u32 %v312, 4294901760
    %2550 = vmatprep.mubr.f32.mxu0 %v2549
    %v2551 = vand.u32 %v311, 4294901760
    %2552 = vmatmul.mubr.f32.gmra.mrb[0].mxu0 %v2551
    %v2553 = vpop.f32.mrb[0].mxu0
    %v2554 = vadd.f32 %v2117, %v2553
    %v2555 = vpop.f32.mrb[0].mxu0
    %v2556 = vand.u32 %v314, 4294901760
    %2557 = vmatprep.mubr.f32.mxu0 %v2556
    %v2558 = vand.u32 %v313, 4294901760
    %2559 = vmatmul.mubr.f32.gmra.mrb[0].mxu0 %v2558
    %v2560 = vpop.f32.mrb[0].mxu0
    %v2561 = vadd.f32 %v2128, %v2560
    %v2562 = vpop.f32.mrb[0].mxu0
    %v2563 = vand.u32 %v316, 4294901760
    %2564 = vmatprep.mubr.f32.mxu0 %v2563
    %v2565 = vand.u32 %v315, 4294901760
    %2566 = vmatmul.mubr.f32.gmra.mrb[0].mxu0 %v2565
    %v2567 = vpop.f32.mrb[0].mxu0
    %v2568 = vadd.f32 %v2139, %v2567
    %v2569 = vpop.f32.mrb[0].mxu0
    %v2570 = vand.u32 %v318, 4294901760
    %2571 = vmatprep.mubr.f32.mxu0 %v2570
    %v2572 = vand.u32 %v317, 4294901760
    %2573 = vmatmul.mubr.f32.gmra.mrb[0].mxu0 %v2572
    %v2574 = vpop.f32.mrb[0].mxu0
    %v2575 = vadd.f32 %v2150, %v2574
    %v2576 = vpop.f32.mrb[0].mxu0
    %v2577 = vand.u32 %v320, 4294901760
    %2578 = vmatprep.mubr.f32.mxu0 %v2577
    %v2579 = vand.u32 %v319, 4294901760
    %2580 = vmatmul.mubr.f32.gmra.mrb[0].mxu0 %v2579
    %v2581 = vpop.f32.mrb[0].mxu0
    %v2582 = vadd.f32 %v2161, %v2581
    %v2583 = vpop.f32.mrb[0].mxu0
    %v2584 = vand.u32 %v322, 4294901760
    %2585 = vmatprep.mubr.f32.mxu0 %v2584
    %v2586 = vand.u32 %v321, 4294901760
    %2587 = vmatmul.mubr.f32.gmra.mrb[0].mxu0 %v2586
    %v2588 = vpop.f32.mrb[0].mxu0
    %v2589 = vadd.f32 %v2172, %v2588
    %v2590 = vpop.f32.mrb[0].mxu0
    %v2591 = vand.u32 %v324, 4294901760
    %2592 = vmatprep.mubr.f32.mxu0 %v2591
    %v2593 = vand.u32 %v323, 4294901760
    %2594 = vmatmul.mubr.f32.gmra.mrb[0].mxu0 %v2593
    %v2595 = vpop.f32.mrb[0].mxu0
    %v2596 = vadd.f32 %v2183, %v2595
    %v2597 = vpop.f32.mrb[0].mxu0
    %v2598 = vand.u32 %v326, 4294901760
    %2599 = vmatprep.mubr.f32.mxu0 %v2598
    %v2600 = vand.u32 %v325, 4294901760
    %2601 = vmatmul.mubr.f32.gmra.mrb[0].mxu0 %v2600
    %v2602 = vpop.f32.mrb[0].mxu0
    %v2603 = vadd.f32 %v2194, %v2602
    %v2604 = vpop.f32.mrb[0].mxu0
    %v2605 = vand.u32 %v328, 4294901760
    %2606 = vmatprep.mubr.f32.mxu0 %v2605
    %v2607 = vand.u32 %v327, 4294901760
    %2608 = vmatmul.mubr.f32.gmra.mrb[0].mxu0 %v2607
    %v2609 = vpop.f32.mrb[0].mxu0
    %v2610 = vadd.f32 %v2205, %v2609
    %v2611 = vpop.f32.mrb[0].mxu0
    %v2612 = vand.u32 %v330, 4294901760
    %2613 = vmatprep.mubr.f32.mxu0 %v2612
    %v2614 = vand.u32 %v329, 4294901760
    %2615 = vmatmul.mubr.f32.gmra.mrb[0].mxu0 %v2614
    %v2616 = vpop.f32.mrb[0].mxu0
    %v2617 = vadd.f32 %v2216, %v2616
    %v2618 = vpop.f32.mrb[0].mxu0
    %v2619 = vand.u32 %v332, 4294901760
    %2620 = vmatprep.mubr.f32.mxu0 %v2619
    %v2621 = vand.u32 %v331, 4294901760
    %2622 = vmatmul.mubr.f32.gmra.mrb[0].mxu0 %v2621
    %v2623 = vpop.f32.mrb[0].mxu0
    %v2624 = vadd.f32 %v2227, %v2623
    %v2625 = vpop.f32.mrb[0].mxu0
    %v2626 = vand.u32 %v334, 4294901760
    %2627 = vmatprep.mubr.f32.mxu0 %v2626
    %v2628 = vand.u32 %v333, 4294901760
    %2629 = vmatmul.mubr.f32.gmra.mrb[0].mxu0 %v2628
    %v2630 = vpop.f32.mrb[0].mxu0
    %v2631 = vadd.f32 %v2238, %v2630
    %v2632 = vpop.f32.mrb[0].mxu0
    %v2633 = vand.u32 %v336, 4294901760
    %2634 = vmatprep.mubr.f32.mxu0 %v2633
    %v2635 = vand.u32 %v335, 4294901760
    %2636 = vmatmul.mubr.f32.gmra.mrb[0].mxu0 %v2635
    %v2637 = vpop.f32.mrb[0].mxu0
    %v2638 = vadd.f32 %v2249, %v2637
    %v2639 = vpop.f32.mrb[0].mxu0
    %v2640 = vand.u32 %v338, 4294901760
    %2641 = vmatprep.mubr.f32.mxu0 %v2640
    %v2642 = vand.u32 %v337, 4294901760
    %2643 = vmatmul.mubr.f32.gmra.mrb[0].mxu0 %v2642
    %v2644 = vpop.f32.mrb[0].mxu0
    %v2645 = vadd.f32 %v2260, %v2644
    %v2646 = vpop.f32.mrb[0].mxu0
    %2647 = vdwg.mxu0
    %2648 = vmatprep.subr.mxu0 0.0
    %v2649 = vand.u32 %v339, 4294901760
    %2650 = vmatpush1.msra.mxu0 %v2649
    %2651 = vmatprep.subr.mxu0 0.0
    %v2652 = vand.u32 %v340, 4294901760
    %2653 = vmatpush1.msra.mxu0 %v2652
    %2654 = vmatprep.subr.mxu0 0.0
    %v2655 = vand.u32 %v341, 4294901760
    %2656 = vmatpush1.msra.mxu0 %v2655
    %2657 = vmatprep.subr.mxu0 0.0
    %v2658 = vand.u32 %v342, 4294901760
    %2659 = vmatpush1.msra.mxu0 %v2658
    %2660 = vmatprep.subr.mxu0 0.0
    %v2661 = vand.u32 %v343, 4294901760
    %2662 = vmatpush1.msra.mxu0 %v2661
    %2663 = vmatprep.subr.mxu0 0.0
    %v2664 = vand.u32 %v344, 4294901760
    %2665 = vmatpush1.msra.mxu0 %v2664
    %2666 = vmatprep.subr.mxu0 0.0
    %v2667 = vand.u32 %v345, 4294901760
    %2668 = vmatpush1.msra.mxu0 %v2667
    %2669 = vmatprep.subr.mxu0 0.0
    %v2670 = vand.u32 %v346, 4294901760
    %2671 = vmatpush1.msra.mxu0 %v2670
    %2672 = vmatprep.subr.mxu0 0.0
    %v2673 = vand.u32 %v347, 4294901760
    %2674 = vmatpush1.msra.mxu0 %v2673
    %2675 = vmatprep.subr.mxu0 0.0
    %v2676 = vand.u32 %v348, 4294901760
    %2677 = vmatpush1.msra.mxu0 %v2676
    %2678 = vmatprep.subr.mxu0 0.0
    %v2679 = vand.u32 %v349, 4294901760
    %2680 = vmatpush1.msra.mxu0 %v2679
    %2681 = vmatprep.subr.mxu0 0.0
    %v2682 = vand.u32 %v350, 4294901760
    %2683 = vmatpush1.msra.mxu0 %v2682
    %2684 = vmatprep.subr.mxu0 0.0
    %v2685 = vand.u32 %v351, 4294901760
    %2686 = vmatpush1.msra.mxu0 %v2685
    %2687 = vmatprep.subr.mxu0 0.0
    %v2688 = vand.u32 %v352, 4294901760
    %2689 = vmatpush1.msra.mxu0 %v2688
    %2690 = vmatprep.subr.mxu0 0.0
    %v2691 = vand.u32 %v353, 4294901760
    %2692 = vmatpush1.msra.mxu0 %v2691
    %2693 = vmatprep.subr.mxu0 0.0
    %v2694 = vand.u32 %v354, 4294901760
    %2695 = vmatpush1.msra.mxu0 %v2694
    %2696 = vmatprep.subr.mxu0 0.0
    %v2697 = vand.u32 %v355, 4294901760
    %2698 = vmatpush1.msra.mxu0 %v2697
    %2699 = vmatprep.subr.mxu0 0.0
    %v2700 = vand.u32 %v356, 4294901760
    %2701 = vmatpush1.msra.mxu0 %v2700
    %2702 = vmatprep.subr.mxu0 0.0
    %v2703 = vand.u32 %v357, 4294901760
    %2704 = vmatpush1.msra.mxu0 %v2703
    %2705 = vmatprep.subr.mxu0 0.0
    %v2706 = vand.u32 %v358, 4294901760
    %2707 = vmatpush1.msra.mxu0 %v2706
    %2708 = vmatprep.subr.mxu0 0.0
    %v2709 = vand.u32 %v359, 4294901760
    %2710 = vmatpush1.msra.mxu0 %v2709
    %2711 = vmatprep.subr.mxu0 0.0
    %v2712 = vand.u32 %v360, 4294901760
    %2713 = vmatpush1.msra.mxu0 %v2712
    %2714 = vmatprep.subr.mxu0 0.0
    %v2715 = vand.u32 %v361, 4294901760
    %2716 = vmatpush1.msra.mxu0 %v2715
    %2717 = vmatprep.subr.mxu0 0.0
    %v2718 = vand.u32 %v362, 4294901760
    %2719 = vmatpush1.msra.mxu0 %v2718
    %2720 = vmatprep.subr.mxu0 0.0
    %v2721 = vand.u32 %v363, 4294901760
    %2722 = vmatpush1.msra.mxu0 %v2721
    %2723 = vmatprep.subr.mxu0 0.0
    %v2724 = vand.u32 %v364, 4294901760
    %2725 = vmatpush1.msra.mxu0 %v2724
    %2726 = vmatprep.subr.mxu0 0.0
    %v2727 = vand.u32 %v365, 4294901760
    %2728 = vmatpush1.msra.mxu0 %v2727
    %2729 = vmatprep.subr.mxu0 0.0
    %v2730 = vand.u32 %v366, 4294901760
    %2731 = vmatpush1.msra.mxu0 %v2730
    %2732 = vmatprep.subr.mxu0 0.0
    %v2733 = vand.u32 %v367, 4294901760
    %2734 = vmatpush1.msra.mxu0 %v2733
    %2735 = vmatprep.subr.mxu0 0.0
    %v2736 = vand.u32 %v368, 4294901760
    %2737 = vmatpush1.msra.mxu0 %v2736
    %2738 = vmatprep.subr.mxu0 0.0
    %v2739 = vand.u32 %v369, 4294901760
    %2740 = vmatpush1.msra.mxu0 %v2739
    %2741 = vmatprep.subr.mxu0 0.0
    %v2742 = vand.u32 %v370, 4294901760
    %2743 = vmatpush1.msra.mxu0 %v2742
    %v2744 = vand.u32 %v276, 4294901760
    %2745 = vmatprep.mubr.f32.mxu0 %v2744
    %v2746 = vand.u32 %v275, 4294901760
    %2747 = vmatmul.mubr.f32.gmra.mrb[0].mxu0 %v2746
    %v2748 = vpop.f32.mrb[0].mxu0
    %v2749 = vadd.f32 %v2428, %v2748
    %v2750 = vpop.f32.mrb[0].mxu0
    %v2751 = vand.u32 %v278, 4294901760
    %2752 = vmatprep.mubr.f32.mxu0 %v2751
    %v2753 = vand.u32 %v277, 4294901760
    %2754 = vmatmul.mubr.f32.gmra.mrb[0].mxu0 %v2753
    %v2755 = vpop.f32.mrb[0].mxu0
    %v2756 = vadd.f32 %v2435, %v2755
    %v2757 = vpop.f32.mrb[0].mxu0
    %v2758 = vand.u32 %v280, 4294901760
    %2759 = vmatprep.mubr.f32.mxu0 %v2758
    %v2760 = vand.u32 %v279, 4294901760
    %2761 = vmatmul.mubr.f32.gmra.mrb[0].mxu0 %v2760
    %v2762 = vpop.f32.mrb[0].mxu0
    %v2763 = vadd.f32 %v2442, %v2762
    %v2764 = vpop.f32.mrb[0].mxu0
    %v2765 = vand.u32 %v282, 4294901760
    %2766 = vmatprep.mubr.f32.mxu0 %v2765
    %v2767 = vand.u32 %v281, 4294901760
    %2768 = vmatmul.mubr.f32.gmra.mrb[0].mxu0 %v2767
    %v2769 = vpop.f32.mrb[0].mxu0
    %v2770 = vadd.f32 %v2449, %v2769
    %v2771 = vpop.f32.mrb[0].mxu0
    %v2772 = vand.u32 %v284, 4294901760
    %2773 = vmatprep.mubr.f32.mxu0 %v2772
    %v2774 = vand.u32 %v283, 4294901760
    %2775 = vmatmul.mubr.f32.gmra.mrb[0].mxu0 %v2774
    %v2776 = vpop.f32.mrb[0].mxu0
    %v2777 = vadd.f32 %v2456, %v2776
    %v2778 = vpop.f32.mrb[0].mxu0
    %v2779 = vand.u32 %v286, 4294901760
    %2780 = vmatprep.mubr.f32.mxu0 %v2779
    %v2781 = vand.u32 %v285, 4294901760
    %2782 = vmatmul.mubr.f32.gmra.mrb[0].mxu0 %v2781
    %v2783 = vpop.f32.mrb[0].mxu0
    %v2784 = vadd.f32 %v2463, %v2783
    %v2785 = vpop.f32.mrb[0].mxu0
    %v2786 = vand.u32 %v288, 4294901760
    %2787 = vmatprep.mubr.f32.mxu0 %v2786
    %v2788 = vand.u32 %v287, 4294901760
    %2789 = vmatmul.mubr.f32.gmra.mrb[0].mxu0 %v2788
    %v2790 = vpop.f32.mrb[0].mxu0
    %v2791 = vadd.f32 %v2470, %v2790
    %v2792 = vpop.f32.mrb[0].mxu0
    %v2793 = vand.u32 %v290, 4294901760
    %2794 = vmatprep.mubr.f32.mxu0 %v2793
    %v2795 = vand.u32 %v289, 4294901760
    %2796 = vmatmul.mubr.f32.gmra.mrb[0].mxu0 %v2795
    %v2797 = vpop.f32.mrb[0].mxu0
    %v2798 = vadd.f32 %v2477, %v2797
    %v2799 = vpop.f32.mrb[0].mxu0
    %v2800 = vand.u32 %v292, 4294901760
    %2801 = vmatprep.mubr.f32.mxu0 %v2800
    %v2802 = vand.u32 %v291, 4294901760
    %2803 = vmatmul.mubr.f32.gmra.mrb[0].mxu0 %v2802
    %v2804 = vpop.f32.mrb[0].mxu0
    %v2805 = vadd.f32 %v2484, %v2804
    %v2806 = vpop.f32.mrb[0].mxu0
    %v2807 = vand.u32 %v294, 4294901760
    %2808 = vmatprep.mubr.f32.mxu0 %v2807
    %v2809 = vand.u32 %v293, 4294901760
    %2810 = vmatmul.mubr.f32.gmra.mrb[0].mxu0 %v2809
    %v2811 = vpop.f32.mrb[0].mxu0
    %v2812 = vadd.f32 %v2491, %v2811
    %v2813 = vpop.f32.mrb[0].mxu0
    %v2814 = vand.u32 %v296, 4294901760
    %2815 = vmatprep.mubr.f32.mxu0 %v2814
    %v2816 = vand.u32 %v295, 4294901760
    %2817 = vmatmul.mubr.f32.gmra.mrb[0].mxu0 %v2816
    %v2818 = vpop.f32.mrb[0].mxu0
    %v2819 = vadd.f32 %v2498, %v2818
    %v2820 = vpop.f32.mrb[0].mxu0
    %v2821 = vand.u32 %v298, 4294901760
    %2822 = vmatprep.mubr.f32.mxu0 %v2821
    %v2823 = vand.u32 %v297, 4294901760
    %2824 = vmatmul.mubr.f32.gmra.mrb[0].mxu0 %v2823
    %v2825 = vpop.f32.mrb[0].mxu0
    %v2826 = vadd.f32 %v2505, %v2825
    %v2827 = vpop.f32.mrb[0].mxu0
    %v2828 = vand.u32 %v300, 4294901760
    %2829 = vmatprep.mubr.f32.mxu0 %v2828
    %v2830 = vand.u32 %v299, 4294901760
    %2831 = vmatmul.mubr.f32.gmra.mrb[0].mxu0 %v2830
    %v2832 = vpop.f32.mrb[0].mxu0
    %v2833 = vadd.f32 %v2512, %v2832
    %v2834 = vpop.f32.mrb[0].mxu0
    %v2835 = vand.u32 %v302, 4294901760
    %2836 = vmatprep.mubr.f32.mxu0 %v2835
    %v2837 = vand.u32 %v301, 4294901760
    %2838 = vmatmul.mubr.f32.gmra.mrb[0].mxu0 %v2837
    %v2839 = vpop.f32.mrb[0].mxu0
    %v2840 = vadd.f32 %v2519, %v2839
    %v2841 = vpop.f32.mrb[0].mxu0
    %v2842 = vand.u32 %v304, 4294901760
    %2843 = vmatprep.mubr.f32.mxu0 %v2842
    %v2844 = vand.u32 %v303, 4294901760
    %2845 = vmatmul.mubr.f32.gmra.mrb[0].mxu0 %v2844
    %v2846 = vpop.f32.mrb[0].mxu0
    %v2847 = vadd.f32 %v2526, %v2846
    %v2848 = vpop.f32.mrb[0].mxu0
    %v2849 = vand.u32 %v306, 4294901760
    %2850 = vmatprep.mubr.f32.mxu0 %v2849
    %v2851 = vand.u32 %v305, 4294901760
    %2852 = vmatmul.mubr.f32.gmra.mrb[0].mxu0 %v2851
    %v2853 = vpop.f32.mrb[0].mxu0
    %v2854 = vadd.f32 %v2533, %v2853
    %v2855 = vpop.f32.mrb[0].mxu0
    %v2856 = vand.u32 %v308, 4294901760
    %2857 = vmatprep.mubr.f32.mxu0 %v2856
    %v2858 = vand.u32 %v307, 4294901760
    %2859 = vmatmul.mubr.f32.gmra.mrb[0].mxu0 %v2858
    %v2860 = vpop.f32.mrb[0].mxu0
    %v2861 = vadd.f32 %v2540, %v2860
    %v2862 = vpop.f32.mrb[0].mxu0
    %v2863 = vand.u32 %v310, 4294901760
    %2864 = vmatprep.mubr.f32.mxu0 %v2863
    %v2865 = vand.u32 %v309, 4294901760
    %2866 = vmatmul.mubr.f32.gmra.mrb[0].mxu0 %v2865
    %v2867 = vpop.f32.mrb[0].mxu0
    %v2868 = vadd.f32 %v2547, %v2867
    %v2869 = vpop.f32.mrb[0].mxu0
    %v2870 = vand.u32 %v312, 4294901760
    %2871 = vmatprep.mubr.f32.mxu0 %v2870
    %v2872 = vand.u32 %v311, 4294901760
    %2873 = vmatmul.mubr.f32.gmra.mrb[0].mxu0 %v2872
    %v2874 = vpop.f32.mrb[0].mxu0
    %v2875 = vadd.f32 %v2554, %v2874
    %v2876 = vpop.f32.mrb[0].mxu0
    %v2877 = vand.u32 %v314, 4294901760
    %2878 = vmatprep.mubr.f32.mxu0 %v2877
    %v2879 = vand.u32 %v313, 4294901760
    %2880 = vmatmul.mubr.f32.gmra.mrb[0].mxu0 %v2879
    %v2881 = vpop.f32.mrb[0].mxu0
    %v2882 = vadd.f32 %v2561, %v2881
    %v2883 = vpop.f32.mrb[0].mxu0
    %v2884 = vand.u32 %v316, 4294901760
    %2885 = vmatprep.mubr.f32.mxu0 %v2884
    %v2886 = vand.u32 %v315, 4294901760
    %2887 = vmatmul.mubr.f32.gmra.mrb[0].mxu0 %v2886
    %v2888 = vpop.f32.mrb[0].mxu0
    %v2889 = vadd.f32 %v2568, %v2888
    %v2890 = vpop.f32.mrb[0].mxu0
    %v2891 = vand.u32 %v318, 4294901760
    %2892 = vmatprep.mubr.f32.mxu0 %v2891
    %v2893 = vand.u32 %v317, 4294901760
    %2894 = vmatmul.mubr.f32.gmra.mrb[0].mxu0 %v2893
    %v2895 = vpop.f32.mrb[0].mxu0
    %v2896 = vadd.f32 %v2575, %v2895
    %v2897 = vpop.f32.mrb[0].mxu0
    %v2898 = vand.u32 %v320, 4294901760
    %2899 = vmatprep.mubr.f32.mxu0 %v2898
    %v2900 = vand.u32 %v319, 4294901760
    %2901 = vmatmul.mubr.f32.gmra.mrb[0].mxu0 %v2900
    %v2902 = vpop.f32.mrb[0].mxu0
    %v2903 = vadd.f32 %v2582, %v2902
    %v2904 = vpop.f32.mrb[0].mxu0
    %v2905 = vand.u32 %v322, 4294901760
    %2906 = vmatprep.mubr.f32.mxu0 %v2905
    %v2907 = vand.u32 %v321, 4294901760
    %2908 = vmatmul.mubr.f32.gmra.mrb[0].mxu0 %v2907
    %v2909 = vpop.f32.mrb[0].mxu0
    %v2910 = vadd.f32 %v2589, %v2909
    %v2911 = vpop.f32.mrb[0].mxu0
    %v2912 = vand.u32 %v324, 4294901760
    %2913 = vmatprep.mubr.f32.mxu0 %v2912
    %v2914 = vand.u32 %v323, 4294901760
    %2915 = vmatmul.mubr.f32.gmra.mrb[0].mxu0 %v2914
    %v2916 = vpop.f32.mrb[0].mxu0
    %v2917 = vadd.f32 %v2596, %v2916
    %v2918 = vpop.f32.mrb[0].mxu0
    %v2919 = vand.u32 %v326, 4294901760
    %2920 = vmatprep.mubr.f32.mxu0 %v2919
    %v2921 = vand.u32 %v325, 4294901760
    %2922 = vmatmul.mubr.f32.gmra.mrb[0].mxu0 %v2921
    %v2923 = vpop.f32.mrb[0].mxu0
    %v2924 = vadd.f32 %v2603, %v2923
    %v2925 = vpop.f32.mrb[0].mxu0
    %v2926 = vand.u32 %v328, 4294901760
    %2927 = vmatprep.mubr.f32.mxu0 %v2926
    %v2928 = vand.u32 %v327, 4294901760
    %2929 = vmatmul.mubr.f32.gmra.mrb[0].mxu0 %v2928
    %v2930 = vpop.f32.mrb[0].mxu0
    %v2931 = vadd.f32 %v2610, %v2930
    %v2932 = vpop.f32.mrb[0].mxu0
    %v2933 = vand.u32 %v330, 4294901760
    %2934 = vmatprep.mubr.f32.mxu0 %v2933
    %v2935 = vand.u32 %v329, 4294901760
    %2936 = vmatmul.mubr.f32.gmra.mrb[0].mxu0 %v2935
    %v2937 = vpop.f32.mrb[0].mxu0
    %v2938 = vadd.f32 %v2617, %v2937
    %v2939 = vpop.f32.mrb[0].mxu0
    %v2940 = vand.u32 %v332, 4294901760
    %2941 = vmatprep.mubr.f32.mxu0 %v2940
    %v2942 = vand.u32 %v331, 4294901760
    %2943 = vmatmul.mubr.f32.gmra.mrb[0].mxu0 %v2942
    %v2944 = vpop.f32.mrb[0].mxu0
    %v2945 = vadd.f32 %v2624, %v2944
    %v2946 = vpop.f32.mrb[0].mxu0
    %v2947 = vand.u32 %v334, 4294901760
    %2948 = vmatprep.mubr.f32.mxu0 %v2947
    %v2949 = vand.u32 %v333, 4294901760
    %2950 = vmatmul.mubr.f32.gmra.mrb[0].mxu0 %v2949
    %v2951 = vpop.f32.mrb[0].mxu0
    %v2952 = vadd.f32 %v2631, %v2951
    %v2953 = vpop.f32.mrb[0].mxu0
    %v2954 = vand.u32 %v336, 4294901760
    %2955 = vmatprep.mubr.f32.mxu0 %v2954
    %v2956 = vand.u32 %v335, 4294901760
    %2957 = vmatmul.mubr.f32.gmra.mrb[0].mxu0 %v2956
    %v2958 = vpop.f32.mrb[0].mxu0
    %v2959 = vadd.f32 %v2638, %v2958
    %v2960 = vpop.f32.mrb[0].mxu0
    %v2961 = vand.u32 %v338, 4294901760
    %2962 = vmatprep.mubr.f32.mxu0 %v2961
    %v2963 = vand.u32 %v337, 4294901760
    %2964 = vmatmul.mubr.f32.gmra.mrb[0].mxu0 %v2963
    %v2965 = vpop.f32.mrb[0].mxu0
    %v2966 = vadd.f32 %v2645, %v2965
    %v2967 = vpop.f32.mrb[0].mxu0
    %2968 = vdwg.mxu0
    %p2969 = scmp.eq.s32.totalorder 0, 0
    // Predicated region
    $region10: #{tpu_custom_call.1} parent=1 // pred_check
      %p2970 = pneg %p2969
    $region11: #{tpu_custom_call.1} parent=1 // pred_check_branch
      %2972 = sbr.rel (%p2970) target = $region13
    $region12: #{tpu_custom_call.1} parent=1 // pred_region
      %2973 = vst [vmem:[#allocation2] sm:$0xff] %v2749
      %2974 = vst [vmem:[#allocation2 + $0x8] sm:$0xff] %v2756
      %2975 = vst [vmem:[#allocation2 + $0x10] sm:$0xff] %v2763
      %2976 = vst [vmem:[#allocation2 + $0x18] sm:$0xff] %v2770
      %2977 = vst [vmem:[#allocation2 + $0x20] sm:$0xff] %v2777
      %2978 = vst [vmem:[#allocation2 + $0x28] sm:$0xff] %v2784
      %2979 = vst [vmem:[#allocation2 + $0x30] sm:$0xff] %v2791
      %2980 = vst [vmem:[#allocation2 + $0x38] sm:$0xff] %v2798
      %2981 = vst [vmem:[#allocation2 + $0x40] sm:$0xff] %v2805
      %2982 = vst [vmem:[#allocation2 + $0x48] sm:$0xff] %v2812
      %2983 = vst [vmem:[#allocation2 + $0x50] sm:$0xff] %v2819
      %2984 = vst [vmem:[#allocation2 + $0x58] sm:$0xff] %v2826
      %2985 = vst [vmem:[#allocation2 + $0x60] sm:$0xff] %v2833
      %2986 = vst [vmem:[#allocation2 + $0x68] sm:$0xff] %v2840
      %2987 = vst [vmem:[#allocation2 + $0x70] sm:$0xff] %v2847
      %2988 = vst [vmem:[#allocation2 + $0x78] sm:$0xff] %v2854
      %2989 = vst [vmem:[#allocation2 + $0x80] sm:$0xff] %v2861
      %2990 = vst [vmem:[#allocation2 + $0x88] sm:$0xff] %v2868
      %2991 = vst [vmem:[#allocation2 + $0x90] sm:$0xff] %v2875
      %2992 = vst [vmem:[#allocation2 + $0x98] sm:$0xff] %v2882
      %2993 = vst [vmem:[#allocation2 + $0xa0] sm:$0xff] %v2889
      %2994 = vst [vmem:[#allocation2 + $0xa8] sm:$0xff] %v2896
      %2995 = vst [vmem:[#allocation2 + $0xb0] sm:$0xff] %v2903
      %2996 = vst [vmem:[#allocation2 + $0xb8] sm:$0xff] %v2910
      %2997 = vst [vmem:[#allocation2 + $0xc0] sm:$0xff] %v2917
      %2998 = vst [vmem:[#allocation2 + $0xc8] sm:$0xff] %v2924
      %2999 = vst [vmem:[#allocation2 + $0xd0] sm:$0xff] %v2931
      %3000 = vst [vmem:[#allocation2 + $0xd8] sm:$0xff] %v2938
      %3001 = vst [vmem:[#allocation2 + $0xe0] sm:$0xff] %v2945
      %3002 = vst [vmem:[#allocation2 + $0xe8] sm:$0xff] %v2952
      %3003 = vst [vmem:[#allocation2 + $0xf0] sm:$0xff] %v2959
      %3004 = vst [vmem:[#allocation2 + $0xf8] sm:$0xff] %v2966
    $region13: #{tpu_custom_call.1} parent=1 // pred_fallthru
      _
    %p3005 = scmp.gt.s32.totalorder 0, 0
    // Predicated region
    $region14: #{tpu_custom_call.1} parent=1 // pred_check
      %p3006 = pneg %p3005
    $region15: #{tpu_custom_call.1} parent=1 // pred_check_branch
      %3008 = sbr.rel (%p3006) target = $region17
    $region16: #{tpu_custom_call.1} parent=1 // pred_region
      %v3009 = vld [vmem:[#allocation2] sm:$0xff]
      %v3010 = vld [vmem:[#allocation2 + $0x8] sm:$0xff]
      %v3011 = vld [vmem:[#allocation2 + $0x10] sm:$0xff]
      %v3012 = vld [vmem:[#allocation2 + $0x18] sm:$0xff]
      %v3013 = vld [vmem:[#allocation2 + $0x20] sm:$0xff]
      %v3014 = vld [vmem:[#allocation2 + $0x28] sm:$0xff]
      %v3015 = vld [vmem:[#allocation2 + $0x30] sm:$0xff]
      %v3016 = vld [vmem:[#allocation2 + $0x38] sm:$0xff]
      %v3017 = vld [vmem:[#allocation2 + $0x40] sm:$0xff]
      %v3018 = vld [vmem:[#allocation2 + $0x48] sm:$0xff]
      %v3019 = vld [vmem:[#allocation2 + $0x50] sm:$0xff]
      %v3020 = vld [vmem:[#allocation2 + $0x58] sm:$0xff]
      %v3021 = vld [vmem:[#allocation2 + $0x60] sm:$0xff]
      %v3022 = vld [vmem:[#allocation2 + $0x68] sm:$0xff]
      %v3023 = vld [vmem:[#allocation2 + $0x70] sm:$0xff]
      %v3024 = vld [vmem:[#allocation2 + $0x78] sm:$0xff]
      %v3025 = vld [vmem:[#allocation2 + $0x80] sm:$0xff]
      %v3026 = vld [vmem:[#allocation2 + $0x88] sm:$0xff]
      %v3027 = vld [vmem:[#allocation2 + $0x90] sm:$0xff]
      %v3028 = vld [vmem:[#allocation2 + $0x98] sm:$0xff]
      %v3029 = vld [vmem:[#allocation2 + $0xa0] sm:$0xff]
      %v3030 = vld [vmem:[#allocation2 + $0xa8] sm:$0xff]
      %v3031 = vld [vmem:[#allocation2 + $0xb0] sm:$0xff]
      %v3032 = vld [vmem:[#allocation2 + $0xb8] sm:$0xff]
      %v3033 = vld [vmem:[#allocation2 + $0xc0] sm:$0xff]
      %v3034 = vld [vmem:[#allocation2 + $0xc8] sm:$0xff]
      %v3035 = vld [vmem:[#allocation2 + $0xd0] sm:$0xff]
      %v3036 = vld [vmem:[#allocation2 + $0xd8] sm:$0xff]
      %v3037 = vld [vmem:[#allocation2 + $0xe0] sm:$0xff]
      %v3038 = vld [vmem:[#allocation2 + $0xe8] sm:$0xff]
      %v3039 = vld [vmem:[#allocation2 + $0xf0] sm:$0xff]
      %v3040 = vld [vmem:[#allocation2 + $0xf8] sm:$0xff]
      %v3041 = vadd.f32 %v3009, %v2749
      %v3042 = vadd.f32 %v3010, %v2756
      %v3043 = vadd.f32 %v3011, %v2763
      %v3044 = vadd.f32 %v3012, %v2770
      %v3045 = vadd.f32 %v3013, %v2777
      %v3046 = vadd.f32 %v3014, %v2784
      %v3047 = vadd.f32 %v3015, %v2791
      %v3048 = vadd.f32 %v3016, %v2798
      %v3049 = vadd.f32 %v3017, %v2805
      %v3050 = vadd.f32 %v3018, %v2812
      %v3051 = vadd.f32 %v3019, %v2819
      %v3052 = vadd.f32 %v3020, %v2826
      %v3053 = vadd.f32 %v3021, %v2833
      %v3054 = vadd.f32 %v3022, %v2840
      %v3055 = vadd.f32 %v3023, %v2847
      %v3056 = vadd.f32 %v3024, %v2854
      %v3057 = vadd.f32 %v3025, %v2861
      %v3058 = vadd.f32 %v3026, %v2868
      %v3059 = vadd.f32 %v3027, %v2875
      %v3060 = vadd.f32 %v3028, %v2882
      %v3061 = vadd.f32 %v3029, %v2889
      %v3062 = vadd.f32 %v3030, %v2896
      %v3063 = vadd.f32 %v3031, %v2903
      %v3064 = vadd.f32 %v3032, %v2910
      %v3065 = vadd.f32 %v3033, %v2917
      %v3066 = vadd.f32 %v3034, %v2924
      %v3067 = vadd.f32 %v3035, %v2931
      %v3068 = vadd.f32 %v3036, %v2938
      %v3069 = vadd.f32 %v3037, %v2945
      %v3070 = vadd.f32 %v3038, %v2952
      %v3071 = vadd.f32 %v3039, %v2959
      %v3072 = vadd.f32 %v3040, %v2966
      %3073 = vst [vmem:[#allocation2] sm:$0xff] %v3041
      %3074 = vst [vmem:[#allocation2 + $0x8] sm:$0xff] %v3042
      %3075 = vst [vmem:[#allocation2 + $0x10] sm:$0xff] %v3043
      %3076 = vst [vmem:[#allocation2 + $0x18] sm:$0xff] %v3044
      %3077 = vst [vmem:[#allocation2 + $0x20] sm:$0xff] %v3045
      %3078 = vst [vmem:[#allocation2 + $0x28] sm:$0xff] %v3046
      %3079 = vst [vmem:[#allocation2 + $0x30] sm:$0xff] %v3047
      %3080 = vst [vmem:[#allocation2 + $0x38] sm:$0xff] %v3048
      %3081 = vst [vmem:[#allocation2 + $0x40] sm:$0xff] %v3049
      %3082 = vst [vmem:[#allocation2 + $0x48] sm:$0xff] %v3050
      %3083 = vst [vmem:[#allocation2 + $0x50] sm:$0xff] %v3051
      %3084 = vst [vmem:[#allocation2 + $0x58] sm:$0xff] %v3052
      %3085 = vst [vmem:[#allocation2 + $0x60] sm:$0xff] %v3053
      %3086 = vst [vmem:[#allocation2 + $0x68] sm:$0xff] %v3054
      %3087 = vst [vmem:[#allocation2 + $0x70] sm:$0xff] %v3055
      %3088 = vst [vmem:[#allocation2 + $0x78] sm:$0xff] %v3056
      %3089 = vst [vmem:[#allocation2 + $0x80] sm:$0xff] %v3057
      %3090 = vst [vmem:[#allocation2 + $0x88] sm:$0xff] %v3058
      %3091 = vst [vmem:[#allocation2 + $0x90] sm:$0xff] %v3059
      %3092 = vst [vmem:[#allocation2 + $0x98] sm:$0xff] %v3060
      %3093 = vst [vmem:[#allocation2 + $0xa0] sm:$0xff] %v3061
      %3094 = vst [vmem:[#allocation2 + $0xa8] sm:$0xff] %v3062
      %3095 = vst [vmem:[#allocation2 + $0xb0] sm:$0xff] %v3063
      %3096 = vst [vmem:[#allocation2 + $0xb8] sm:$0xff] %v3064
      %3097 = vst [vmem:[#allocation2 + $0xc0] sm:$0xff] %v3065
      %3098 = vst [vmem:[#allocation2 + $0xc8] sm:$0xff] %v3066
      %3099 = vst [vmem:[#allocation2 + $0xd0] sm:$0xff] %v3067
      %3100 = vst [vmem:[#allocation2 + $0xd8] sm:$0xff] %v3068
      %3101 = vst [vmem:[#allocation2 + $0xe0] sm:$0xff] %v3069
      %3102 = vst [vmem:[#allocation2 + $0xe8] sm:$0xff] %v3070
      %3103 = vst [vmem:[#allocation2 + $0xf0] sm:$0xff] %v3071
      %3104 = vst [vmem:[#allocation2 + $0xf8] sm:$0xff] %v3072
    $region17: #{tpu_custom_call.1} parent=1 // pred_fallthru
      _
    // Predicated region
    $region18: #{tpu_custom_call.1} parent=1 // pred_check
      %p3105 = pneg %p2969
    $region19: #{tpu_custom_call.1} parent=1 // pred_check_branch
      %3107 = sbr.rel (%p3105) target = $region21
    $region20: #{tpu_custom_call.1} parent=1 // pred_region
      %v3108 = vld [vmem:[#allocation2] sm:$0xff]
      %v3109 = vld [vmem:[#allocation2 + $0x8] sm:$0xff]
      %v3110 = vld [vmem:[#allocation2 + $0x10] sm:$0xff]
      %v3111 = vld [vmem:[#allocation2 + $0x18] sm:$0xff]
      %v3112 = vld [vmem:[#allocation2 + $0x20] sm:$0xff]
      %v3113 = vld [vmem:[#allocation2 + $0x28] sm:$0xff]
      %v3114 = vld [vmem:[#allocation2 + $0x30] sm:$0xff]
      %v3115 = vld [vmem:[#allocation2 + $0x38] sm:$0xff]
      %v3116 = vld [vmem:[#allocation2 + $0x40] sm:$0xff]
      %v3117 = vld [vmem:[#allocation2 + $0x48] sm:$0xff]
      %v3118 = vld [vmem:[#allocation2 + $0x50] sm:$0xff]
      %v3119 = vld [vmem:[#allocation2 + $0x58] sm:$0xff]
      %v3120 = vld [vmem:[#allocation2 + $0x60] sm:$0xff]
      %v3121 = vld [vmem:[#allocation2 + $0x68] sm:$0xff]
      %v3122 = vld [vmem:[#allocation2 + $0x70] sm:$0xff]
      %v3123 = vld [vmem:[#allocation2 + $0x78] sm:$0xff]
      %v3124 = vld [vmem:[#allocation2 + $0x80] sm:$0xff]
      %v3125 = vld [vmem:[#allocation2 + $0x88] sm:$0xff]
      %v3126 = vld [vmem:[#allocation2 + $0x90] sm:$0xff]
      %v3127 = vld [vmem:[#allocation2 + $0x98] sm:$0xff]
      %v3128 = vld [vmem:[#allocation2 + $0xa0] sm:$0xff]
      %v3129 = vld [vmem:[#allocation2 + $0xa8] sm:$0xff]
      %v3130 = vld [vmem:[#allocation2 + $0xb0] sm:$0xff]
      %v3131 = vld [vmem:[#allocation2 + $0xb8] sm:$0xff]
      %v3132 = vld [vmem:[#allocation2 + $0xc0] sm:$0xff]
      %v3133 = vld [vmem:[#allocation2 + $0xc8] sm:$0xff]
      %v3134 = vld [vmem:[#allocation2 + $0xd0] sm:$0xff]
      %v3135 = vld [vmem:[#allocation2 + $0xd8] sm:$0xff]
      %v3136 = vld [vmem:[#allocation2 + $0xe0] sm:$0xff]
      %v3137 = vld [vmem:[#allocation2 + $0xe8] sm:$0xff]
      %v3138 = vld [vmem:[#allocation2 + $0xf0] sm:$0xff]
      %v3139 = vld [vmem:[#allocation2 + $0xf8] sm:$0xff]
      %3140 = vst [vmem:[#allocation3] sm:$0xff] %v3108
      %3141 = vst [vmem:[#allocation3 + $0x8] sm:$0xff] %v3109
      %3142 = vst [vmem:[#allocation3 + $0x10] sm:$0xff] %v3110
      %3143 = vst [vmem:[#allocation3 + $0x18] sm:$0xff] %v3111
      %3144 = vst [vmem:[#allocation3 + $0x20] sm:$0xff] %v3112
      %3145 = vst [vmem:[#allocation3 + $0x28] sm:$0xff] %v3113
      %3146 = vst [vmem:[#allocation3 + $0x30] sm:$0xff] %v3114
      %3147 = vst [vmem:[#allocation3 + $0x38] sm:$0xff] %v3115
      %3148 = vst [vmem:[#allocation3 + $0x40] sm:$0xff] %v3116
      %3149 = vst [vmem:[#allocation3 + $0x48] sm:$0xff] %v3117
      %3150 = vst [vmem:[#allocation3 + $0x50] sm:$0xff] %v3118
      %3151 = vst [vmem:[#allocation3 + $0x58] sm:$0xff] %v3119
      %3152 = vst [vmem:[#allocation3 + $0x60] sm:$0xff] %v3120
      %3153 = vst [vmem:[#allocation3 + $0x68] sm:$0xff] %v3121
      %3154 = vst [vmem:[#allocation3 + $0x70] sm:$0xff] %v3122
      %3155 = vst [vmem:[#allocation3 + $0x78] sm:$0xff] %v3123
      %3156 = vst [vmem:[#allocation3 + $0x80] sm:$0xff] %v3124
      %3157 = vst [vmem:[#allocation3 + $0x88] sm:$0xff] %v3125
      %3158 = vst [vmem:[#allocation3 + $0x90] sm:$0xff] %v3126
      %3159 = vst [vmem:[#allocation3 + $0x98] sm:$0xff] %v3127
      %3160 = vst [vmem:[#allocation3 + $0xa0] sm:$0xff] %v3128
      %3161 = vst [vmem:[#allocation3 + $0xa8] sm:$0xff] %v3129
      %3162 = vst [vmem:[#allocation3 + $0xb0] sm:$0xff] %v3130
      %3163 = vst [vmem:[#allocation3 + $0xb8] sm:$0xff] %v3131
      %3164 = vst [vmem:[#allocation3 + $0xc0] sm:$0xff] %v3132
      %3165 = vst [vmem:[#allocation3 + $0xc8] sm:$0xff] %v3133
      %3166 = vst [vmem:[#allocation3 + $0xd0] sm:$0xff] %v3134
      %3167 = vst [vmem:[#allocation3 + $0xd8] sm:$0xff] %v3135
      %3168 = vst [vmem:[#allocation3 + $0xe0] sm:$0xff] %v3136
      %3169 = vst [vmem:[#allocation3 + $0xe8] sm:$0xff] %v3137
      %3170 = vst [vmem:[#allocation3 + $0xf0] sm:$0xff] %v3138
      %3171 = vst [vmem:[#allocation3 + $0xf8] sm:$0xff] %v3139
    $region21: #{tpu_custom_call.1} parent=1 // pred_fallthru
      _
    // Predicated region
    $region22: #{tpu_custom_call.1} parent=1 // pred_check
      _
    $region23: #{tpu_custom_call.1} parent=1 // pred_check_branch
      %3173 = sbr.rel (0) target = $region25
    $region24: #{tpu_custom_call.1} parent=1 // pred_region
      %s3175 = ssub.s32 4096, 4096
      %3176 = vsyncadd [#allocation4], %s3175
      %s3177 = sshll.u32 [#allocation3], 4
      %s3178 = int_to_ptr.vmem [resolvable:$true] %s3177
      %3183 = dma.vmem_to_hbm [thread:$0]  %s3178, 4096, %s2, [#allocation4], 128, 128, 8
    $region25: #{tpu_custom_call.1} parent=1 // pred_fallthru
      _
    // Predicated region
    $region26: #{tpu_custom_call.1} parent=1 // pred_check
      _
    $region27: #{tpu_custom_call.1} parent=1 // pred_check_branch
      %3185 = sbr.rel (0) target = $region29
    $region28: #{tpu_custom_call.1} parent=1 // pred_region
      %3186 = dma.done [#allocation4], 4096
    $region29: #{tpu_custom_call.1} parent=1 // pred_fallthru
      _
    %3187 = vsyncpa [#allocation4], 1

</llo_original>
